<compile_context>
chip_gen: v5e
topology: v5e:2x2
jax: 0.10.0
libtpu: 0.0.40
codegen_flags: <defaults>
</compile_context>

<pallas_src>
import functools

import jax
import jax.numpy as jnp
from jax.experimental import pallas as pl
from jax.experimental.pallas import tpu as pltpu


# ------------------------------ fused kernel ------------------------------

def _helformer_kernel(x_ref, in_w_ref, in_b_ref,
                      wqkv_ref, bqkv_ref, wo_ref, bo_ref,
                      ln1_g_ref, ln1_b_ref,
                      w1_ref, b1_ref, w2_ref, b2_ref,
                      ln2_g_ref, ln2_b_ref,
                      wih_ref, b_lstm_ref, whh_ref,
                      fc_w_ref, fc_b_ref,
                      out_ref, xw_scr,
                      *, n_heads, n_layers, d_model, hidden):
    S = x_ref.shape[1]
    D = d_model
    F = hidden
    dh = D // n_heads
    scale = 1.0 / float(dh) ** 0.5
    f32 = jnp.float32
    bf16 = jnp.bfloat16

    def mm(a, w):
        # bf16 MXU operands, f32 accumulation.
        return jnp.dot(a.astype(bf16), w.astype(bf16),
                       preferred_element_type=f32)

    def layer_norm(y, g, b):
        mu = jnp.mean(y, axis=-1, keepdims=True)
        d = y - mu
        var = jnp.mean(d * d, axis=-1, keepdims=True)
        return d * jax.lax.rsqrt(var + 1e-5) * g + b

    # ---- input projection: Linear(1, D) on this batch's (S, 1) slice ----
    x = x_ref[0]                                    # (S, 1)
    h = x * in_w_ref[...] + in_b_ref[...]           # (S, D)

    # ---- transformer encoder layers (post-norm, ReLU FFN, dropout = id) ----
    for l in range(n_layers):
        # fused QKV: one (S,D) x (D,3D) matmul instead of three.
        qkv = mm(h, wqkv_ref[l]) + bqkv_ref[l]      # (S, 3D)
        q = qkv[:, 0:D]
        k = qkv[:, D:2 * D]
        v = qkv[:, 2 * D:3 * D]
        wo = wo_ref[l]                              # (D, D) f32

        attn = jnp.zeros((S, D), f32)
        for hd in range(n_heads):
            lo, hi = hd * dh, (hd + 1) * dh
            qh, kh, vh = q[:, lo:hi], k[:, lo:hi], v[:, lo:hi]
            s = jnp.einsum('qd,kd->qk', qh, kh,
                           preferred_element_type=f32) * scale
            s = s - jnp.max(s, axis=-1, keepdims=True)
            p = jnp.exp(s)
            p = p * pl.reciprocal(jnp.sum(p, axis=-1, keepdims=True),
                                  approx=True)
            oh = jnp.dot(p, vh, preferred_element_type=f32)      # (S, dh)
            # concat-of-heads @ Wo  ==  sum_h  o_h @ Wo[h*dh:(h+1)*dh, :]
            attn = attn + jnp.dot(oh, wo[lo:hi, :],
                                  preferred_element_type=f32)
        attn = attn + bo_ref[l]
        h = layer_norm(h + attn, ln1_g_ref[l], ln1_b_ref[l])     # norm1(x+sa)

        ff = jnp.maximum(mm(h, w1_ref[l]) + b1_ref[l], 0.0)
        ff = mm(ff, w2_ref[l]) + b2_ref[l]
        h = layer_norm(h + ff, ln2_g_ref[l], ln2_b_ref[l])       # norm2(x+ff)

    # ---- LSTM input projection hoisted out of the recurrence ----
    # xw[t] = x_t @ W_ih + (b_ih + b_hh), all timesteps in ONE lane-dense
    # (S, 4F) matmul, written to VMEM scratch and re-read per step.
    xw_scr[...] = mm(h, wih_ref[...]) + b_lstm_ref[...]          # (S, 4F)

    # ---- LSTM recurrence (PyTorch gate order i, f, g, o) ----
    whh = whh_ref[...]                                           # (F, 4F)
    h_t = jnp.zeros((1, F), f32)
    c_t = jnp.zeros((1, F), f32)
    for t in range(S):                      # static, fully unrolled (S small)
        gates = xw_scr[pl.ds(t, 1), :] + jnp.dot(
            h_t, whh, preferred_element_type=f32)                # (1, 4F)
        i_g = jax.nn.sigmoid(gates[:, 0:F])
        f_g = jax.nn.sigmoid(gates[:, F:2 * F])
        g_g = jnp.tanh(gates[:, 2 * F:3 * F])
        o_g = jax.nn.sigmoid(gates[:, 3 * F:4 * F])
        c_t = f_g * c_t + i_g * g_g
        h_t = o_g * jnp.tanh(c_t)

    # ---- fc epilogue: Linear(F, 1) on the last hidden state ----
    y = jnp.sum(h_t * fc_w_ref[...], axis=-1, keepdims=True) + fc_b_ref[...]
    out_ref[0] = y                                               # (1, 1)


def helformer_forward(params, x, n_heads, num_layers):
    """x: (B, S, 1) float32 -> (B, 1) float32.  Dropout = identity (eval)."""
    B, S, _ = x.shape
    D = params['in_w'].shape[1]
    F = params['lstm_whh'].shape[0]
    L = num_layers

    def full(shape):
        return pl.BlockSpec(shape, lambda b: (0,) * len(shape))

    kernel = functools.partial(_helformer_kernel, n_heads=n_heads,
                               n_layers=L, d_model=D, hidden=F)

    out = pl.pallas_call(
        kernel,
        out_shape=jax.ShapeDtypeStruct((B, 1, 1), jnp.float32),
        grid=(B,),
        in_specs=[
            pl.BlockSpec((1, S, 1), lambda b: (b, 0, 0)),   # x (per batch)
            full((1, D)), full((1, D)),                     # input_proj w, b
            full((L, D, 3 * D)), full((L, 1, 3 * D)),       # fused QKV
            full((L, D, D)), full((L, 1, D)),               # out-proj
            full((L, 1, D)), full((L, 1, D)),               # ln1 gamma, beta
            full((L, D, F)), full((L, 1, F)),               # ffn w1, b1
            full((L, F, D)), full((L, 1, D)),               # ffn w2, b2
            full((L, 1, D)), full((L, 1, D)),               # ln2 gamma, beta
            full((D, 4 * F)), full((1, 4 * F)),             # lstm W_ih, bias
            full((F, 4 * F)),                               # lstm W_hh
            full((1, F)), full((1, 1)),                     # fc w, b
        ],
        out_specs=pl.BlockSpec((1, 1, 1), lambda b: (b, 0, 0)),
        scratch_shapes=[pltpu.VMEM((S, 4 * F), jnp.float32)],
        compiler_params=pltpu.CompilerParams(
            dimension_semantics=("parallel",),
            vmem_limit_bytes=32 * 1024 * 1024),
    )(x, params['in_w'], params['in_b'],
      params['wqkv'], params['bqkv'], params['wo'], params['bo'],
      params['ln1_g'], params['ln1_b'],
      params['w1'], params['b1'], params['w2'], params['b2'],
      params['ln2_g'], params['ln2_b'],
      params['lstm_wih'], params['lstm_b'], params['lstm_whh'],
      params['fc_w'], params['fc_b'])
    return out.reshape(B, 1)


# ------------------------------- parameters -------------------------------

def init_params(key, input_dim, hidden_dim, n_heads, num_layers):
    D, F, L = input_dim, hidden_dim, num_layers
    keys = iter(jax.random.split(key, 15))
    bf16 = jnp.bfloat16

    def w(shape, dtype=jnp.float32, scale=0.05):
        return (scale * jax.random.normal(next(keys), shape,
                                          jnp.float32)).astype(dtype)

    return {
        'in_w': w((1, D)), 'in_b': w((1, D)),
        # per-layer weights stacked along a leading L axis; QKV fused.
        'wqkv': w((L, D, 3 * D), bf16), 'bqkv': w((L, 1, 3 * D)),
        'wo': w((L, D, D)), 'bo': w((L, 1, D)),
        'ln1_g': jnp.ones((L, 1, D), jnp.float32),
        'ln1_b': jnp.zeros((L, 1, D), jnp.float32),
        'w1': w((L, D, F), bf16), 'b1': w((L, 1, F)),
        'w2': w((L, F, D), bf16), 'b2': w((L, 1, D)),
        'ln2_g': jnp.ones((L, 1, D), jnp.float32),
        'ln2_b': jnp.zeros((L, 1, D), jnp.float32),
        # LSTM gate order i, f, g, o; bias = b_ih + b_hh fused.
        'lstm_wih': w((D, 4 * F), bf16), 'lstm_b': w((1, 4 * F)),
        'lstm_whh': w((F, 4 * F)),
        'fc_w': w((1, F)), 'fc_b': w((1, 1)),
    }


# ---------------------------- pure-JAX reference ----------------------------

def _ref_ln(y, g, b, eps=1e-5):
    mu = y.mean(-1, keepdims=True)
    var = ((y - mu) ** 2).mean(-1, keepdims=True)
    return (y - mu) / jnp.sqrt(var + eps) * g + b


def reference_forward(params, x, n_heads, num_layers):
    B, S, _ = x.shape
    D = params['in_w'].shape[1]
    F = params['lstm_whh'].shape[0]
    dh = D // n_heads
    f32 = jnp.float32

    h = x.reshape(B * S, 1) * params['in_w'] + params['in_b']
    for l in range(num_layers):
        qkv = h @ params['wqkv'][l].astype(f32) + params['bqkv'][l]
        q, k, v = qkv[:, :D], qkv[:, D:2 * D], qkv[:, 2 * D:]

        def heads(t):
            return t.reshape(B, S, n_heads, dh).transpose(0, 2, 1, 3)

        s = jnp.einsum('bhqd,bhkd->bhqk', heads(q), heads(k)) / (dh ** 0.5)
        p = jax.nn.softmax(s, axis=-1)
        a = jnp.einsum('bhqk,bhkd->bhqd', p, heads(v))
        a = a.transpose(0, 2, 1, 3).reshape(B * S, D) @ params['wo'][l] \
            + params['bo'][l]
        h = _ref_ln(h + a, params['ln1_g'][l], params['ln1_b'][l])
        ff = jnp.maximum(h @ params['w1'][l].astype(f32) + params['b1'][l], 0.0)
        ff = ff @ params['w2'][l].astype(f32) + params['b2'][l]
        h = _ref_ln(h + ff, params['ln2_g'][l], params['ln2_b'][l])

    x_tm = h.reshape(B, S, D).transpose(1, 0, 2)          # (S, B, D)
    wih = params['lstm_wih'].astype(f32)
    whh = params['lstm_whh']
    b = params['lstm_b']

    def step(carry, xt):
        hh, cc = carry
        gates = xt @ wih + hh @ whh + b
        i = jax.nn.sigmoid(gates[:, :F])
        f = jax.nn.sigmoid(gates[:, F:2 * F])
        g = jnp.tanh(gates[:, 2 * F:3 * F])
        o = jax.nn.sigmoid(gates[:, 3 * F:])
        cc = f * cc + i * g
        hh = o * jnp.tanh(cc)
        return (hh, cc), None

    init = (jnp.zeros((B, F), f32), jnp.zeros((B, F), f32))
    (h_last, _), _ = jax.lax.scan(step, init, x_tm)
    return h_last @ params['fc_w'].T + params['fc_b']


# ----------------------------------- main -----------------------------------

if __name__ == "__main__":
    B, S = 2, 8
    input_dim, hidden_dim, n_heads, num_layers = 32, 64, 4, 2
    # dropout is a no-op in the inference forward pass.

    key = jax.random.PRNGKey(0)
    pkey, xkey = jax.random.split(key)
    params = init_params(pkey, input_dim, hidden_dim, n_heads, num_layers)
    x = jax.random.normal(xkey, (B, S, 1), jnp.float32)

    out = helformer_forward(params, x, n_heads, num_layers)
    out = jax.block_until_ready(out)
    assert out.shape == (B, 1), out.shape

    ref = reference_forward(params, x, n_heads, num_layers)
    # bf16 MXU operands with f32 accumulation -> compare against the f32
    # reference at a correspondingly looser tolerance.
    assert jnp.allclose(out, ref, rtol=2e-2, atol=2e-2), (out, ref)

    print("KERNEL_OK")
</pallas_src>

<mosaic_0001>
module attributes {stable_mosaic.version = 11 : i64} {
  func.func @_helformer_kernel(%arg0: i32, %arg1: memref<1x8x1xf32, #tpu.memory_space<vmem>>, %arg2: memref<1x32xf32, #tpu.memory_space<vmem>>, %arg3: memref<1x32xf32, #tpu.memory_space<vmem>>, %arg4: memref<2x32x96xbf16, #tpu.memory_space<vmem>>, %arg5: memref<2x1x96xf32, #tpu.memory_space<vmem>>, %arg6: memref<2x32x32xf32, #tpu.memory_space<vmem>>, %arg7: memref<2x1x32xf32, #tpu.memory_space<vmem>>, %arg8: memref<2x1x32xf32, #tpu.memory_space<vmem>>, %arg9: memref<2x1x32xf32, #tpu.memory_space<vmem>>, %arg10: memref<2x32x64xbf16, #tpu.memory_space<vmem>>, %arg11: memref<2x1x64xf32, #tpu.memory_space<vmem>>, %arg12: memref<2x64x32xbf16, #tpu.memory_space<vmem>>, %arg13: memref<2x1x32xf32, #tpu.memory_space<vmem>>, %arg14: memref<2x1x32xf32, #tpu.memory_space<vmem>>, %arg15: memref<2x1x32xf32, #tpu.memory_space<vmem>>, %arg16: memref<32x256xbf16, #tpu.memory_space<vmem>>, %arg17: memref<1x256xf32, #tpu.memory_space<vmem>>, %arg18: memref<64x256xf32, #tpu.memory_space<vmem>>, %arg19: memref<1x64xf32, #tpu.memory_space<vmem>>, %arg20: memref<1x1xf32, #tpu.memory_space<vmem>>, %arg21: memref<1x1x1xf32, #tpu.memory_space<vmem>>, %arg22: memref<8x256xf32, #tpu.memory_space<vmem>>) attributes {dimension_semantics = [#tpu.dimension_semantics<parallel>], iteration_bounds = array<i64: 2>, scalar_prefetch = 0 : i64, scratch_operands = 1 : i64, tpu.core_type = #tpu.core_type<tc>, window_params = [{transform_indices = @transform_0, window_bounds = array<i64: 1, 8, 1>}, {pipeline_mode = #tpu.pipeline_mode<synchronous>, transform_indices = @transform_1, window_bounds = array<i64: 1, 32>}, {pipeline_mode = #tpu.pipeline_mode<synchronous>, transform_indices = @transform_2, window_bounds = array<i64: 1, 32>}, {pipeline_mode = #tpu.pipeline_mode<synchronous>, transform_indices = @transform_3, window_bounds = array<i64: 2, 32, 96>}, {pipeline_mode = #tpu.pipeline_mode<synchronous>, transform_indices = @transform_4, window_bounds = array<i64: 2, 1, 96>}, {pipeline_mode = #tpu.pipeline_mode<synchronous>, transform_indices = @transform_5, window_bounds = array<i64: 2, 32, 32>}, {pipeline_mode = #tpu.pipeline_mode<synchronous>, transform_indices = @transform_6, window_bounds = array<i64: 2, 1, 32>}, {pipeline_mode = #tpu.pipeline_mode<synchronous>, transform_indices = @transform_7, window_bounds = array<i64: 2, 1, 32>}, {pipeline_mode = #tpu.pipeline_mode<synchronous>, transform_indices = @transform_8, window_bounds = array<i64: 2, 1, 32>}, {pipeline_mode = #tpu.pipeline_mode<synchronous>, transform_indices = @transform_9, window_bounds = array<i64: 2, 32, 64>}, {pipeline_mode = #tpu.pipeline_mode<synchronous>, transform_indices = @transform_10, window_bounds = array<i64: 2, 1, 64>}, {pipeline_mode = #tpu.pipeline_mode<synchronous>, transform_indices = @transform_11, window_bounds = array<i64: 2, 64, 32>}, {pipeline_mode = #tpu.pipeline_mode<synchronous>, transform_indices = @transform_12, window_bounds = array<i64: 2, 1, 32>}, {pipeline_mode = #tpu.pipeline_mode<synchronous>, transform_indices = @transform_13, window_bounds = array<i64: 2, 1, 32>}, {pipeline_mode = #tpu.pipeline_mode<synchronous>, transform_indices = @transform_14, window_bounds = array<i64: 2, 1, 32>}, {pipeline_mode = #tpu.pipeline_mode<synchronous>, transform_indices = @transform_15, window_bounds = array<i64: 32, 256>}, {pipeline_mode = #tpu.pipeline_mode<synchronous>, transform_indices = @transform_16, window_bounds = array<i64: 1, 256>}, {pipeline_mode = #tpu.pipeline_mode<synchronous>, transform_indices = @transform_17, window_bounds = array<i64: 64, 256>}, {pipeline_mode = #tpu.pipeline_mode<synchronous>, transform_indices = @transform_18, window_bounds = array<i64: 1, 64>}, {pipeline_mode = #tpu.pipeline_mode<synchronous>, transform_indices = @transform_19, window_bounds = array<i64: 1, 1>}, {transform_indices = @transform_20, window_bounds = array<i64: 1, 1, 1>}]} {
    %c0 = arith.constant 0 : index
    %c0_0 = arith.constant 0 : index
    %c0_1 = arith.constant 0 : index
    %0 = vector.load %arg1[%c0, %c0_0, %c0_1] : memref<1x8x1xf32, #tpu.memory_space<vmem>>, vector<1x8x1xf32>
    %1 = vector.shape_cast %0 : vector<1x8x1xf32> to vector<8x1xf32>
    %c0_2 = arith.constant 0 : index
    %c0_3 = arith.constant 0 : index
    %2 = vector.load %arg2[%c0_2, %c0_3] : memref<1x32xf32, #tpu.memory_space<vmem>>, vector<1x32xf32>
    %3 = vector.broadcast %1 : vector<8x1xf32> to vector<8x32xf32>
    %4 = vector.broadcast %2 : vector<1x32xf32> to vector<8x32xf32>
    %5 = arith.mulf %3, %4 : vector<8x32xf32>
    %c0_4 = arith.constant 0 : index
    %c0_5 = arith.constant 0 : index
    %6 = vector.load %arg3[%c0_4, %c0_5] : memref<1x32xf32, #tpu.memory_space<vmem>>, vector<1x32xf32>
    %7 = vector.broadcast %6 : vector<1x32xf32> to vector<8x32xf32>
    %8 = arith.addf %5, %7 : vector<8x32xf32>
    %c0_6 = arith.constant 0 : index
    %c0_7 = arith.constant 0 : index
    %c0_8 = arith.constant 0 : index
    %9 = vector.load %arg4[%c0_6, %c0_7, %c0_8] : memref<2x32x96xbf16, #tpu.memory_space<vmem>>, vector<1x32x96xbf16>
    %10 = vector.shape_cast %9 : vector<1x32x96xbf16> to vector<32x96xbf16>
    %11 = arith.truncf %8 : vector<8x32xf32> to vector<8x32xbf16>
    %cst = arith.constant dense<0.000000e+00> : vector<8x96xf32>
    %12 = tpu.matmul %11, %10, %cst {dimension_numbers = #tpu.dot_dimension_numbers<[1], [0], [0], [1], [0, 0, 1, 1], [], []>} : vector<8x32xbf16>, vector<32x96xbf16>, vector<8x96xf32> -> vector<8x96xf32>
    %c0_9 = arith.constant 0 : index
    %c0_10 = arith.constant 0 : index
    %c0_11 = arith.constant 0 : index
    %13 = vector.load %arg5[%c0_9, %c0_10, %c0_11] : memref<2x1x96xf32, #tpu.memory_space<vmem>>, vector<1x1x96xf32>
    %14 = vector.shape_cast %13 : vector<1x1x96xf32> to vector<1x96xf32>
    %15 = vector.broadcast %14 : vector<1x96xf32> to vector<8x96xf32>
    %16 = arith.addf %12, %15 : vector<8x96xf32>
    %17 = vector.extract_strided_slice %16 {offsets = [0, 0], sizes = [8, 32], strides = [1, 1]} : vector<8x96xf32> to vector<8x32xf32>
    %18 = vector.extract_strided_slice %16 {offsets = [0, 32], sizes = [8, 32], strides = [1, 1]} : vector<8x96xf32> to vector<8x32xf32>
    %19 = vector.extract_strided_slice %16 {offsets = [0, 64], sizes = [8, 32], strides = [1, 1]} : vector<8x96xf32> to vector<8x32xf32>
    %c0_12 = arith.constant 0 : index
    %c0_13 = arith.constant 0 : index
    %c0_14 = arith.constant 0 : index
    %20 = vector.load %arg6[%c0_12, %c0_13, %c0_14] : memref<2x32x32xf32, #tpu.memory_space<vmem>>, vector<1x32x32xf32>
    %21 = vector.shape_cast %20 : vector<1x32x32xf32> to vector<32x32xf32>
    %cst_15 = arith.constant 0.000000e+00 : f32
    %22 = vector.broadcast %cst_15 : f32 to vector<8x32xf32>
    %23 = vector.extract_strided_slice %17 {offsets = [0, 0], sizes = [8, 8], strides = [1, 1]} : vector<8x32xf32> to vector<8x8xf32>
    %24 = vector.extract_strided_slice %18 {offsets = [0, 0], sizes = [8, 8], strides = [1, 1]} : vector<8x32xf32> to vector<8x8xf32>
    %25 = vector.extract_strided_slice %19 {offsets = [0, 0], sizes = [8, 8], strides = [1, 1]} : vector<8x32xf32> to vector<8x8xf32>
    "tpu.trace_start"() <{level = 10 : i32, message = "qd,kd->qk"}> : () -> ()
    %cst_16 = arith.constant dense<0.000000e+00> : vector<8x8xf32>
    %26 = tpu.matmul %23, %24, %cst_16 {dimension_numbers = #tpu.dot_dimension_numbers<[1], [1], [0], [0], [0, 0, 1, 0], [], []>} : vector<8x8xf32>, vector<8x8xf32>, vector<8x8xf32> -> vector<8x8xf32>
    "tpu.trace_stop"() : () -> ()
    %cst_17 = arith.constant 0.353553385 : f32
    %27 = vector.broadcast %cst_17 : f32 to vector<8x8xf32>
    %28 = arith.mulf %26, %27 : vector<8x8xf32>
    %cst_18 = arith.constant dense<0xFF800000> : vector<8xf32>
    %29 = vector.multi_reduction <maximumf>, %28, %cst_18 [1] : vector<8x8xf32> to vector<8xf32>
    %30 = vector.shape_cast %29 : vector<8xf32> to vector<8x1xf32>
    %31 = vector.broadcast %30 : vector<8x1xf32> to vector<8x8xf32>
    %32 = arith.subf %28, %31 : vector<8x8xf32>
    %33 = math.exp %32 : vector<8x8xf32>
    %cst_19 = arith.constant dense<0.000000e+00> : vector<8xf32>
    %34 = vector.multi_reduction <add>, %33, %cst_19 [1] : vector<8x8xf32> to vector<8xf32>
    %35 = vector.shape_cast %34 : vector<8xf32> to vector<8x1xf32>
    %36 = tpu.reciprocal %35 {approx = true} : vector<8x1xf32> -> vector<8x1xf32>
    %37 = vector.broadcast %36 : vector<8x1xf32> to vector<8x8xf32>
    %38 = arith.mulf %33, %37 : vector<8x8xf32>
    %cst_20 = arith.constant dense<0.000000e+00> : vector<8x8xf32>
    %39 = tpu.matmul %38, %25, %cst_20 {dimension_numbers = #tpu.dot_dimension_numbers<[1], [0], [0], [1], [0, 0, 1, 1], [], []>} : vector<8x8xf32>, vector<8x8xf32>, vector<8x8xf32> -> vector<8x8xf32>
    %40 = vector.extract_strided_slice %21 {offsets = [0, 0], sizes = [8, 32], strides = [1, 1]} : vector<32x32xf32> to vector<8x32xf32>
    %cst_21 = arith.constant dense<0.000000e+00> : vector<8x32xf32>
    %41 = tpu.matmul %39, %40, %cst_21 {dimension_numbers = #tpu.dot_dimension_numbers<[1], [0], [0], [1], [0, 0, 1, 1], [], []>} : vector<8x8xf32>, vector<8x32xf32>, vector<8x32xf32> -> vector<8x32xf32>
    %42 = arith.addf %22, %41 : vector<8x32xf32>
    %43 = vector.extract_strided_slice %17 {offsets = [0, 8], sizes = [8, 8], strides = [1, 1]} : vector<8x32xf32> to vector<8x8xf32>
    %44 = vector.extract_strided_slice %18 {offsets = [0, 8], sizes = [8, 8], strides = [1, 1]} : vector<8x32xf32> to vector<8x8xf32>
    %45 = vector.extract_strided_slice %19 {offsets = [0, 8], sizes = [8, 8], strides = [1, 1]} : vector<8x32xf32> to vector<8x8xf32>
    "tpu.trace_start"() <{level = 10 : i32, message = "qd,kd->qk"}> : () -> ()
    %cst_22 = arith.constant dense<0.000000e+00> : vector<8x8xf32>
    %46 = tpu.matmul %43, %44, %cst_22 {dimension_numbers = #tpu.dot_dimension_numbers<[1], [1], [0], [0], [0, 0, 1, 0], [], []>} : vector<8x8xf32>, vector<8x8xf32>, vector<8x8xf32> -> vector<8x8xf32>
    "tpu.trace_stop"() : () -> ()
    %cst_23 = arith.constant 0.353553385 : f32
    %47 = vector.broadcast %cst_23 : f32 to vector<8x8xf32>
    %48 = arith.mulf %46, %47 : vector<8x8xf32>
    %cst_24 = arith.constant dense<0xFF800000> : vector<8xf32>
    %49 = vector.multi_reduction <maximumf>, %48, %cst_24 [1] : vector<8x8xf32> to vector<8xf32>
    %50 = vector.shape_cast %49 : vector<8xf32> to vector<8x1xf32>
    %51 = vector.broadcast %50 : vector<8x1xf32> to vector<8x8xf32>
    %52 = arith.subf %48, %51 : vector<8x8xf32>
    %53 = math.exp %52 : vector<8x8xf32>
    %cst_25 = arith.constant dense<0.000000e+00> : vector<8xf32>
    %54 = vector.multi_reduction <add>, %53, %cst_25 [1] : vector<8x8xf32> to vector<8xf32>
    %55 = vector.shape_cast %54 : vector<8xf32> to vector<8x1xf32>
    %56 = tpu.reciprocal %55 {approx = true} : vector<8x1xf32> -> vector<8x1xf32>
    %57 = vector.broadcast %56 : vector<8x1xf32> to vector<8x8xf32>
    %58 = arith.mulf %53, %57 : vector<8x8xf32>
    %cst_26 = arith.constant dense<0.000000e+00> : vector<8x8xf32>
    %59 = tpu.matmul %58, %45, %cst_26 {dimension_numbers = #tpu.dot_dimension_numbers<[1], [0], [0], [1], [0, 0, 1, 1], [], []>} : vector<8x8xf32>, vector<8x8xf32>, vector<8x8xf32> -> vector<8x8xf32>
    %60 = vector.extract_strided_slice %21 {offsets = [8, 0], sizes = [8, 32], strides = [1, 1]} : vector<32x32xf32> to vector<8x32xf32>
    %cst_27 = arith.constant dense<0.000000e+00> : vector<8x32xf32>
    %61 = tpu.matmul %59, %60, %cst_27 {dimension_numbers = #tpu.dot_dimension_numbers<[1], [0], [0], [1], [0, 0, 1, 1], [], []>} : vector<8x8xf32>, vector<8x32xf32>, vector<8x32xf32> -> vector<8x32xf32>
    %62 = arith.addf %42, %61 : vector<8x32xf32>
    %63 = vector.extract_strided_slice %17 {offsets = [0, 16], sizes = [8, 8], strides = [1, 1]} : vector<8x32xf32> to vector<8x8xf32>
    %64 = vector.extract_strided_slice %18 {offsets = [0, 16], sizes = [8, 8], strides = [1, 1]} : vector<8x32xf32> to vector<8x8xf32>
    %65 = vector.extract_strided_slice %19 {offsets = [0, 16], sizes = [8, 8], strides = [1, 1]} : vector<8x32xf32> to vector<8x8xf32>
    "tpu.trace_start"() <{level = 10 : i32, message = "qd,kd->qk"}> : () -> ()
    %cst_28 = arith.constant dense<0.000000e+00> : vector<8x8xf32>
    %66 = tpu.matmul %63, %64, %cst_28 {dimension_numbers = #tpu.dot_dimension_numbers<[1], [1], [0], [0], [0, 0, 1, 0], [], []>} : vector<8x8xf32>, vector<8x8xf32>, vector<8x8xf32> -> vector<8x8xf32>
    "tpu.trace_stop"() : () -> ()
    %cst_29 = arith.constant 0.353553385 : f32
    %67 = vector.broadcast %cst_29 : f32 to vector<8x8xf32>
    %68 = arith.mulf %66, %67 : vector<8x8xf32>
    %cst_30 = arith.constant dense<0xFF800000> : vector<8xf32>
    %69 = vector.multi_reduction <maximumf>, %68, %cst_30 [1] : vector<8x8xf32> to vector<8xf32>
    %70 = vector.shape_cast %69 : vector<8xf32> to vector<8x1xf32>
    %71 = vector.broadcast %70 : vector<8x1xf32> to vector<8x8xf32>
    %72 = arith.subf %68, %71 : vector<8x8xf32>
    %73 = math.exp %72 : vector<8x8xf32>
    %cst_31 = arith.constant dense<0.000000e+00> : vector<8xf32>
    %74 = vector.multi_reduction <add>, %73, %cst_31 [1] : vector<8x8xf32> to vector<8xf32>
    %75 = vector.shape_cast %74 : vector<8xf32> to vector<8x1xf32>
    %76 = tpu.reciprocal %75 {approx = true} : vector<8x1xf32> -> vector<8x1xf32>
    %77 = vector.broadcast %76 : vector<8x1xf32> to vector<8x8xf32>
    %78 = arith.mulf %73, %77 : vector<8x8xf32>
    %cst_32 = arith.constant dense<0.000000e+00> : vector<8x8xf32>
    %79 = tpu.matmul %78, %65, %cst_32 {dimension_numbers = #tpu.dot_dimension_numbers<[1], [0], [0], [1], [0, 0, 1, 1], [], []>} : vector<8x8xf32>, vector<8x8xf32>, vector<8x8xf32> -> vector<8x8xf32>
    %80 = vector.extract_strided_slice %21 {offsets = [16, 0], sizes = [8, 32], strides = [1, 1]} : vector<32x32xf32> to vector<8x32xf32>
    %cst_33 = arith.constant dense<0.000000e+00> : vector<8x32xf32>
    %81 = tpu.matmul %79, %80, %cst_33 {dimension_numbers = #tpu.dot_dimension_numbers<[1], [0], [0], [1], [0, 0, 1, 1], [], []>} : vector<8x8xf32>, vector<8x32xf32>, vector<8x32xf32> -> vector<8x32xf32>
    %82 = arith.addf %62, %81 : vector<8x32xf32>
    %83 = vector.extract_strided_slice %17 {offsets = [0, 24], sizes = [8, 8], strides = [1, 1]} : vector<8x32xf32> to vector<8x8xf32>
    %84 = vector.extract_strided_slice %18 {offsets = [0, 24], sizes = [8, 8], strides = [1, 1]} : vector<8x32xf32> to vector<8x8xf32>
    %85 = vector.extract_strided_slice %19 {offsets = [0, 24], sizes = [8, 8], strides = [1, 1]} : vector<8x32xf32> to vector<8x8xf32>
    "tpu.trace_start"() <{level = 10 : i32, message = "qd,kd->qk"}> : () -> ()
    %cst_34 = arith.constant dense<0.000000e+00> : vector<8x8xf32>
    %86 = tpu.matmul %83, %84, %cst_34 {dimension_numbers = #tpu.dot_dimension_numbers<[1], [1], [0], [0], [0, 0, 1, 0], [], []>} : vector<8x8xf32>, vector<8x8xf32>, vector<8x8xf32> -> vector<8x8xf32>
    "tpu.trace_stop"() : () -> ()
    %cst_35 = arith.constant 0.353553385 : f32
    %87 = vector.broadcast %cst_35 : f32 to vector<8x8xf32>
    %88 = arith.mulf %86, %87 : vector<8x8xf32>
    %cst_36 = arith.constant dense<0xFF800000> : vector<8xf32>
    %89 = vector.multi_reduction <maximumf>, %88, %cst_36 [1] : vector<8x8xf32> to vector<8xf32>
    %90 = vector.shape_cast %89 : vector<8xf32> to vector<8x1xf32>
    %91 = vector.broadcast %90 : vector<8x1xf32> to vector<8x8xf32>
    %92 = arith.subf %88, %91 : vector<8x8xf32>
    %93 = math.exp %92 : vector<8x8xf32>
    %cst_37 = arith.constant dense<0.000000e+00> : vector<8xf32>
    %94 = vector.multi_reduction <add>, %93, %cst_37 [1] : vector<8x8xf32> to vector<8xf32>
    %95 = vector.shape_cast %94 : vector<8xf32> to vector<8x1xf32>
    %96 = tpu.reciprocal %95 {approx = true} : vector<8x1xf32> -> vector<8x1xf32>
    %97 = vector.broadcast %96 : vector<8x1xf32> to vector<8x8xf32>
    %98 = arith.mulf %93, %97 : vector<8x8xf32>
    %cst_38 = arith.constant dense<0.000000e+00> : vector<8x8xf32>
    %99 = tpu.matmul %98, %85, %cst_38 {dimension_numbers = #tpu.dot_dimension_numbers<[1], [0], [0], [1], [0, 0, 1, 1], [], []>} : vector<8x8xf32>, vector<8x8xf32>, vector<8x8xf32> -> vector<8x8xf32>
    %100 = vector.extract_strided_slice %21 {offsets = [24, 0], sizes = [8, 32], strides = [1, 1]} : vector<32x32xf32> to vector<8x32xf32>
    %cst_39 = arith.constant dense<0.000000e+00> : vector<8x32xf32>
    %101 = tpu.matmul %99, %100, %cst_39 {dimension_numbers = #tpu.dot_dimension_numbers<[1], [0], [0], [1], [0, 0, 1, 1], [], []>} : vector<8x8xf32>, vector<8x32xf32>, vector<8x32xf32> -> vector<8x32xf32>
    %102 = arith.addf %82, %101 : vector<8x32xf32>
    %c0_40 = arith.constant 0 : index
    %c0_41 = arith.constant 0 : index
    %c0_42 = arith.constant 0 : index
    %103 = vector.load %arg7[%c0_40, %c0_41, %c0_42] : memref<2x1x32xf32, #tpu.memory_space<vmem>>, vector<1x1x32xf32>
    %104 = vector.shape_cast %103 : vector<1x1x32xf32> to vector<1x32xf32>
    %105 = vector.broadcast %104 : vector<1x32xf32> to vector<8x32xf32>
    %106 = arith.addf %102, %105 : vector<8x32xf32>
    %107 = arith.addf %8, %106 : vector<8x32xf32>
    %c0_43 = arith.constant 0 : index
    %c0_44 = arith.constant 0 : index
    %c0_45 = arith.constant 0 : index
    %108 = vector.load %arg8[%c0_43, %c0_44, %c0_45] : memref<2x1x32xf32, #tpu.memory_space<vmem>>, vector<1x1x32xf32>
    %109 = vector.shape_cast %108 : vector<1x1x32xf32> to vector<1x32xf32>
    %c0_46 = arith.constant 0 : index
    %c0_47 = arith.constant 0 : index
    %c0_48 = arith.constant 0 : index
    %110 = vector.load %arg9[%c0_46, %c0_47, %c0_48] : memref<2x1x32xf32, #tpu.memory_space<vmem>>, vector<1x1x32xf32>
    %111 = vector.shape_cast %110 : vector<1x1x32xf32> to vector<1x32xf32>
    %cst_49 = arith.constant dense<0.000000e+00> : vector<8xf32>
    %112 = vector.multi_reduction <add>, %107, %cst_49 [1] : vector<8x32xf32> to vector<8xf32>
    %113 = vector.shape_cast %112 : vector<8xf32> to vector<8x1xf32>
    %cst_50 = arith.constant 3.200000e+01 : f32
    %114 = vector.broadcast %cst_50 : f32 to vector<8x1xf32>
    %115 = arith.divf %113, %114 : vector<8x1xf32>
    %116 = vector.broadcast %115 : vector<8x1xf32> to vector<8x32xf32>
    %117 = arith.subf %107, %116 : vector<8x32xf32>
    %118 = arith.mulf %117, %117 : vector<8x32xf32>
    %cst_51 = arith.constant dense<0.000000e+00> : vector<8xf32>
    %119 = vector.multi_reduction <add>, %118, %cst_51 [1] : vector<8x32xf32> to vector<8xf32>
    %120 = vector.shape_cast %119 : vector<8xf32> to vector<8x1xf32>
    %cst_52 = arith.constant 3.200000e+01 : f32
    %121 = vector.broadcast %cst_52 : f32 to vector<8x1xf32>
    %122 = arith.divf %120, %121 : vector<8x1xf32>
    %cst_53 = arith.constant 9.99999974E-6 : f32
    %123 = vector.broadcast %cst_53 : f32 to vector<8x1xf32>
    %124 = arith.addf %122, %123 : vector<8x1xf32>
    %125 = math.rsqrt %124 : vector<8x1xf32>
    %126 = vector.broadcast %125 : vector<8x1xf32> to vector<8x32xf32>
    %127 = arith.mulf %117, %126 : vector<8x32xf32>
    %128 = vector.broadcast %109 : vector<1x32xf32> to vector<8x32xf32>
    %129 = arith.mulf %127, %128 : vector<8x32xf32>
    %130 = vector.broadcast %111 : vector<1x32xf32> to vector<8x32xf32>
    %131 = arith.addf %129, %130 : vector<8x32xf32>
    %c0_54 = arith.constant 0 : index
    %c0_55 = arith.constant 0 : index
    %c0_56 = arith.constant 0 : index
    %132 = vector.load %arg10[%c0_54, %c0_55, %c0_56] : memref<2x32x64xbf16, #tpu.memory_space<vmem>>, vector<1x32x64xbf16>
    %133 = vector.shape_cast %132 : vector<1x32x64xbf16> to vector<32x64xbf16>
    %134 = arith.truncf %131 : vector<8x32xf32> to vector<8x32xbf16>
    %cst_57 = arith.constant dense<0.000000e+00> : vector<8x64xf32>
    %135 = tpu.matmul %134, %133, %cst_57 {dimension_numbers = #tpu.dot_dimension_numbers<[1], [0], [0], [1], [0, 0, 1, 1], [], []>} : vector<8x32xbf16>, vector<32x64xbf16>, vector<8x64xf32> -> vector<8x64xf32>
    %c0_58 = arith.constant 0 : index
    %c0_59 = arith.constant 0 : index
    %c0_60 = arith.constant 0 : index
    %136 = vector.load %arg11[%c0_58, %c0_59, %c0_60] : memref<2x1x64xf32, #tpu.memory_space<vmem>>, vector<1x1x64xf32>
    %137 = vector.shape_cast %136 : vector<1x1x64xf32> to vector<1x64xf32>
    %138 = vector.broadcast %137 : vector<1x64xf32> to vector<8x64xf32>
    %139 = arith.addf %135, %138 : vector<8x64xf32>
    %cst_61 = arith.constant 0.000000e+00 : f32
    %140 = vector.broadcast %cst_61 : f32 to vector<8x64xf32>
    %141 = arith.maximumf %139, %140 : vector<8x64xf32>
    %c0_62 = arith.constant 0 : index
    %c0_63 = arith.constant 0 : index
    %c0_64 = arith.constant 0 : index
    %142 = vector.load %arg12[%c0_62, %c0_63, %c0_64] : memref<2x64x32xbf16, #tpu.memory_space<vmem>>, vector<1x64x32xbf16>
    %143 = vector.shape_cast %142 : vector<1x64x32xbf16> to vector<64x32xbf16>
    %144 = arith.truncf %141 : vector<8x64xf32> to vector<8x64xbf16>
    %cst_65 = arith.constant dense<0.000000e+00> : vector<8x32xf32>
    %145 = tpu.matmul %144, %143, %cst_65 {dimension_numbers = #tpu.dot_dimension_numbers<[1], [0], [0], [1], [0, 0, 1, 1], [], []>} : vector<8x64xbf16>, vector<64x32xbf16>, vector<8x32xf32> -> vector<8x32xf32>
    %c0_66 = arith.constant 0 : index
    %c0_67 = arith.constant 0 : index
    %c0_68 = arith.constant 0 : index
    %146 = vector.load %arg13[%c0_66, %c0_67, %c0_68] : memref<2x1x32xf32, #tpu.memory_space<vmem>>, vector<1x1x32xf32>
    %147 = vector.shape_cast %146 : vector<1x1x32xf32> to vector<1x32xf32>
    %148 = vector.broadcast %147 : vector<1x32xf32> to vector<8x32xf32>
    %149 = arith.addf %145, %148 : vector<8x32xf32>
    %150 = arith.addf %131, %149 : vector<8x32xf32>
    %c0_69 = arith.constant 0 : index
    %c0_70 = arith.constant 0 : index
    %c0_71 = arith.constant 0 : index
    %151 = vector.load %arg14[%c0_69, %c0_70, %c0_71] : memref<2x1x32xf32, #tpu.memory_space<vmem>>, vector<1x1x32xf32>
    %152 = vector.shape_cast %151 : vector<1x1x32xf32> to vector<1x32xf32>
    %c0_72 = arith.constant 0 : index
    %c0_73 = arith.constant 0 : index
    %c0_74 = arith.constant 0 : index
    %153 = vector.load %arg15[%c0_72, %c0_73, %c0_74] : memref<2x1x32xf32, #tpu.memory_space<vmem>>, vector<1x1x32xf32>
    %154 = vector.shape_cast %153 : vector<1x1x32xf32> to vector<1x32xf32>
    %cst_75 = arith.constant dense<0.000000e+00> : vector<8xf32>
    %155 = vector.multi_reduction <add>, %150, %cst_75 [1] : vector<8x32xf32> to vector<8xf32>
    %156 = vector.shape_cast %155 : vector<8xf32> to vector<8x1xf32>
    %cst_76 = arith.constant 3.200000e+01 : f32
    %157 = vector.broadcast %cst_76 : f32 to vector<8x1xf32>
    %158 = arith.divf %156, %157 : vector<8x1xf32>
    %159 = vector.broadcast %158 : vector<8x1xf32> to vector<8x32xf32>
    %160 = arith.subf %150, %159 : vector<8x32xf32>
    %161 = arith.mulf %160, %160 : vector<8x32xf32>
    %cst_77 = arith.constant dense<0.000000e+00> : vector<8xf32>
    %162 = vector.multi_reduction <add>, %161, %cst_77 [1] : vector<8x32xf32> to vector<8xf32>
    %163 = vector.shape_cast %162 : vector<8xf32> to vector<8x1xf32>
    %cst_78 = arith.constant 3.200000e+01 : f32
    %164 = vector.broadcast %cst_78 : f32 to vector<8x1xf32>
    %165 = arith.divf %163, %164 : vector<8x1xf32>
    %cst_79 = arith.constant 9.99999974E-6 : f32
    %166 = vector.broadcast %cst_79 : f32 to vector<8x1xf32>
    %167 = arith.addf %165, %166 : vector<8x1xf32>
    %168 = math.rsqrt %167 : vector<8x1xf32>
    %169 = vector.broadcast %168 : vector<8x1xf32> to vector<8x32xf32>
    %170 = arith.mulf %160, %169 : vector<8x32xf32>
    %171 = vector.broadcast %152 : vector<1x32xf32> to vector<8x32xf32>
    %172 = arith.mulf %170, %171 : vector<8x32xf32>
    %173 = vector.broadcast %154 : vector<1x32xf32> to vector<8x32xf32>
    %174 = arith.addf %172, %173 : vector<8x32xf32>
    %c1 = arith.constant 1 : index
    %c0_80 = arith.constant 0 : index
    %c0_81 = arith.constant 0 : index
    %175 = vector.load %arg4[%c1, %c0_80, %c0_81] : memref<2x32x96xbf16, #tpu.memory_space<vmem>>, vector<1x32x96xbf16>
    %176 = vector.shape_cast %175 : vector<1x32x96xbf16> to vector<32x96xbf16>
    %177 = arith.truncf %174 : vector<8x32xf32> to vector<8x32xbf16>
    %cst_82 = arith.constant dense<0.000000e+00> : vector<8x96xf32>
    %178 = tpu.matmul %177, %176, %cst_82 {dimension_numbers = #tpu.dot_dimension_numbers<[1], [0], [0], [1], [0, 0, 1, 1], [], []>} : vector<8x32xbf16>, vector<32x96xbf16>, vector<8x96xf32> -> vector<8x96xf32>
    %c1_83 = arith.constant 1 : index
    %c0_84 = arith.constant 0 : index
    %c0_85 = arith.constant 0 : index
    %179 = vector.load %arg5[%c1_83, %c0_84, %c0_85] : memref<2x1x96xf32, #tpu.memory_space<vmem>>, vector<1x1x96xf32>
    %180 = vector.shape_cast %179 : vector<1x1x96xf32> to vector<1x96xf32>
    %181 = vector.broadcast %180 : vector<1x96xf32> to vector<8x96xf32>
    %182 = arith.addf %178, %181 : vector<8x96xf32>
    %183 = vector.extract_strided_slice %182 {offsets = [0, 0], sizes = [8, 32], strides = [1, 1]} : vector<8x96xf32> to vector<8x32xf32>
    %184 = vector.extract_strided_slice %182 {offsets = [0, 32], sizes = [8, 32], strides = [1, 1]} : vector<8x96xf32> to vector<8x32xf32>
    %185 = vector.extract_strided_slice %182 {offsets = [0, 64], sizes = [8, 32], strides = [1, 1]} : vector<8x96xf32> to vector<8x32xf32>
    %c1_86 = arith.constant 1 : index
    %c0_87 = arith.constant 0 : index
    %c0_88 = arith.constant 0 : index
    %186 = vector.load %arg6[%c1_86, %c0_87, %c0_88] : memref<2x32x32xf32, #tpu.memory_space<vmem>>, vector<1x32x32xf32>
    %187 = vector.shape_cast %186 : vector<1x32x32xf32> to vector<32x32xf32>
    %cst_89 = arith.constant 0.000000e+00 : f32
    %188 = vector.broadcast %cst_89 : f32 to vector<8x32xf32>
    %189 = vector.extract_strided_slice %183 {offsets = [0, 0], sizes = [8, 8], strides = [1, 1]} : vector<8x32xf32> to vector<8x8xf32>
    %190 = vector.extract_strided_slice %184 {offsets = [0, 0], sizes = [8, 8], strides = [1, 1]} : vector<8x32xf32> to vector<8x8xf32>
    %191 = vector.extract_strided_slice %185 {offsets = [0, 0], sizes = [8, 8], strides = [1, 1]} : vector<8x32xf32> to vector<8x8xf32>
    "tpu.trace_start"() <{level = 10 : i32, message = "qd,kd->qk"}> : () -> ()
    %cst_90 = arith.constant dense<0.000000e+00> : vector<8x8xf32>
    %192 = tpu.matmul %189, %190, %cst_90 {dimension_numbers = #tpu.dot_dimension_numbers<[1], [1], [0], [0], [0, 0, 1, 0], [], []>} : vector<8x8xf32>, vector<8x8xf32>, vector<8x8xf32> -> vector<8x8xf32>
    "tpu.trace_stop"() : () -> ()
    %cst_91 = arith.constant 0.353553385 : f32
    %193 = vector.broadcast %cst_91 : f32 to vector<8x8xf32>
    %194 = arith.mulf %192, %193 : vector<8x8xf32>
    %cst_92 = arith.constant dense<0xFF800000> : vector<8xf32>
    %195 = vector.multi_reduction <maximumf>, %194, %cst_92 [1] : vector<8x8xf32> to vector<8xf32>
    %196 = vector.shape_cast %195 : vector<8xf32> to vector<8x1xf32>
    %197 = vector.broadcast %196 : vector<8x1xf32> to vector<8x8xf32>
    %198 = arith.subf %194, %197 : vector<8x8xf32>
    %199 = math.exp %198 : vector<8x8xf32>
    %cst_93 = arith.constant dense<0.000000e+00> : vector<8xf32>
    %200 = vector.multi_reduction <add>, %199, %cst_93 [1] : vector<8x8xf32> to vector<8xf32>
    %201 = vector.shape_cast %200 : vector<8xf32> to vector<8x1xf32>
    %202 = tpu.reciprocal %201 {approx = true} : vector<8x1xf32> -> vector<8x1xf32>
    %203 = vector.broadcast %202 : vector<8x1xf32> to vector<8x8xf32>
    %204 = arith.mulf %199, %203 : vector<8x8xf32>
    %cst_94 = arith.constant dense<0.000000e+00> : vector<8x8xf32>
    %205 = tpu.matmul %204, %191, %cst_94 {dimension_numbers = #tpu.dot_dimension_numbers<[1], [0], [0], [1], [0, 0, 1, 1], [], []>} : vector<8x8xf32>, vector<8x8xf32>, vector<8x8xf32> -> vector<8x8xf32>
    %206 = vector.extract_strided_slice %187 {offsets = [0, 0], sizes = [8, 32], strides = [1, 1]} : vector<32x32xf32> to vector<8x32xf32>
    %cst_95 = arith.constant dense<0.000000e+00> : vector<8x32xf32>
    %207 = tpu.matmul %205, %206, %cst_95 {dimension_numbers = #tpu.dot_dimension_numbers<[1], [0], [0], [1], [0, 0, 1, 1], [], []>} : vector<8x8xf32>, vector<8x32xf32>, vector<8x32xf32> -> vector<8x32xf32>
    %208 = arith.addf %188, %207 : vector<8x32xf32>
    %209 = vector.extract_strided_slice %183 {offsets = [0, 8], sizes = [8, 8], strides = [1, 1]} : vector<8x32xf32> to vector<8x8xf32>
    %210 = vector.extract_strided_slice %184 {offsets = [0, 8], sizes = [8, 8], strides = [1, 1]} : vector<8x32xf32> to vector<8x8xf32>
    %211 = vector.extract_strided_slice %185 {offsets = [0, 8], sizes = [8, 8], strides = [1, 1]} : vector<8x32xf32> to vector<8x8xf32>
    "tpu.trace_start"() <{level = 10 : i32, message = "qd,kd->qk"}> : () -> ()
    %cst_96 = arith.constant dense<0.000000e+00> : vector<8x8xf32>
    %212 = tpu.matmul %209, %210, %cst_96 {dimension_numbers = #tpu.dot_dimension_numbers<[1], [1], [0], [0], [0, 0, 1, 0], [], []>} : vector<8x8xf32>, vector<8x8xf32>, vector<8x8xf32> -> vector<8x8xf32>
    "tpu.trace_stop"() : () -> ()
    %cst_97 = arith.constant 0.353553385 : f32
    %213 = vector.broadcast %cst_97 : f32 to vector<8x8xf32>
    %214 = arith.mulf %212, %213 : vector<8x8xf32>
    %cst_98 = arith.constant dense<0xFF800000> : vector<8xf32>
    %215 = vector.multi_reduction <maximumf>, %214, %cst_98 [1] : vector<8x8xf32> to vector<8xf32>
    %216 = vector.shape_cast %215 : vector<8xf32> to vector<8x1xf32>
    %217 = vector.broadcast %216 : vector<8x1xf32> to vector<8x8xf32>
    %218 = arith.subf %214, %217 : vector<8x8xf32>
    %219 = math.exp %218 : vector<8x8xf32>
    %cst_99 = arith.constant dense<0.000000e+00> : vector<8xf32>
    %220 = vector.multi_reduction <add>, %219, %cst_99 [1] : vector<8x8xf32> to vector<8xf32>
    %221 = vector.shape_cast %220 : vector<8xf32> to vector<8x1xf32>
    %222 = tpu.reciprocal %221 {approx = true} : vector<8x1xf32> -> vector<8x1xf32>
    %223 = vector.broadcast %222 : vector<8x1xf32> to vector<8x8xf32>
    %224 = arith.mulf %219, %223 : vector<8x8xf32>
    %cst_100 = arith.constant dense<0.000000e+00> : vector<8x8xf32>
    %225 = tpu.matmul %224, %211, %cst_100 {dimension_numbers = #tpu.dot_dimension_numbers<[1], [0], [0], [1], [0, 0, 1, 1], [], []>} : vector<8x8xf32>, vector<8x8xf32>, vector<8x8xf32> -> vector<8x8xf32>
    %226 = vector.extract_strided_slice %187 {offsets = [8, 0], sizes = [8, 32], strides = [1, 1]} : vector<32x32xf32> to vector<8x32xf32>
    %cst_101 = arith.constant dense<0.000000e+00> : vector<8x32xf32>
    %227 = tpu.matmul %225, %226, %cst_101 {dimension_numbers = #tpu.dot_dimension_numbers<[1], [0], [0], [1], [0, 0, 1, 1], [], []>} : vector<8x8xf32>, vector<8x32xf32>, vector<8x32xf32> -> vector<8x32xf32>
    %228 = arith.addf %208, %227 : vector<8x32xf32>
    %229 = vector.extract_strided_slice %183 {offsets = [0, 16], sizes = [8, 8], strides = [1, 1]} : vector<8x32xf32> to vector<8x8xf32>
    %230 = vector.extract_strided_slice %184 {offsets = [0, 16], sizes = [8, 8], strides = [1, 1]} : vector<8x32xf32> to vector<8x8xf32>
    %231 = vector.extract_strided_slice %185 {offsets = [0, 16], sizes = [8, 8], strides = [1, 1]} : vector<8x32xf32> to vector<8x8xf32>
    "tpu.trace_start"() <{level = 10 : i32, message = "qd,kd->qk"}> : () -> ()
    %cst_102 = arith.constant dense<0.000000e+00> : vector<8x8xf32>
    %232 = tpu.matmul %229, %230, %cst_102 {dimension_numbers = #tpu.dot_dimension_numbers<[1], [1], [0], [0], [0, 0, 1, 0], [], []>} : vector<8x8xf32>, vector<8x8xf32>, vector<8x8xf32> -> vector<8x8xf32>
    "tpu.trace_stop"() : () -> ()
    %cst_103 = arith.constant 0.353553385 : f32
    %233 = vector.broadcast %cst_103 : f32 to vector<8x8xf32>
    %234 = arith.mulf %232, %233 : vector<8x8xf32>
    %cst_104 = arith.constant dense<0xFF800000> : vector<8xf32>
    %235 = vector.multi_reduction <maximumf>, %234, %cst_104 [1] : vector<8x8xf32> to vector<8xf32>
    %236 = vector.shape_cast %235 : vector<8xf32> to vector<8x1xf32>
    %237 = vector.broadcast %236 : vector<8x1xf32> to vector<8x8xf32>
    %238 = arith.subf %234, %237 : vector<8x8xf32>
    %239 = math.exp %238 : vector<8x8xf32>
    %cst_105 = arith.constant dense<0.000000e+00> : vector<8xf32>
    %240 = vector.multi_reduction <add>, %239, %cst_105 [1] : vector<8x8xf32> to vector<8xf32>
    %241 = vector.shape_cast %240 : vector<8xf32> to vector<8x1xf32>
    %242 = tpu.reciprocal %241 {approx = true} : vector<8x1xf32> -> vector<8x1xf32>
    %243 = vector.broadcast %242 : vector<8x1xf32> to vector<8x8xf32>
    %244 = arith.mulf %239, %243 : vector<8x8xf32>
    %cst_106 = arith.constant dense<0.000000e+00> : vector<8x8xf32>
    %245 = tpu.matmul %244, %231, %cst_106 {dimension_numbers = #tpu.dot_dimension_numbers<[1], [0], [0], [1], [0, 0, 1, 1], [], []>} : vector<8x8xf32>, vector<8x8xf32>, vector<8x8xf32> -> vector<8x8xf32>
    %246 = vector.extract_strided_slice %187 {offsets = [16, 0], sizes = [8, 32], strides = [1, 1]} : vector<32x32xf32> to vector<8x32xf32>
    %cst_107 = arith.constant dense<0.000000e+00> : vector<8x32xf32>
    %247 = tpu.matmul %245, %246, %cst_107 {dimension_numbers = #tpu.dot_dimension_numbers<[1], [0], [0], [1], [0, 0, 1, 1], [], []>} : vector<8x8xf32>, vector<8x32xf32>, vector<8x32xf32> -> vector<8x32xf32>
    %248 = arith.addf %228, %247 : vector<8x32xf32>
    %249 = vector.extract_strided_slice %183 {offsets = [0, 24], sizes = [8, 8], strides = [1, 1]} : vector<8x32xf32> to vector<8x8xf32>
    %250 = vector.extract_strided_slice %184 {offsets = [0, 24], sizes = [8, 8], strides = [1, 1]} : vector<8x32xf32> to vector<8x8xf32>
    %251 = vector.extract_strided_slice %185 {offsets = [0, 24], sizes = [8, 8], strides = [1, 1]} : vector<8x32xf32> to vector<8x8xf32>
    "tpu.trace_start"() <{level = 10 : i32, message = "qd,kd->qk"}> : () -> ()
    %cst_108 = arith.constant dense<0.000000e+00> : vector<8x8xf32>
    %252 = tpu.matmul %249, %250, %cst_108 {dimension_numbers = #tpu.dot_dimension_numbers<[1], [1], [0], [0], [0, 0, 1, 0], [], []>} : vector<8x8xf32>, vector<8x8xf32>, vector<8x8xf32> -> vector<8x8xf32>
    "tpu.trace_stop"() : () -> ()
    %cst_109 = arith.constant 0.353553385 : f32
    %253 = vector.broadcast %cst_109 : f32 to vector<8x8xf32>
    %254 = arith.mulf %252, %253 : vector<8x8xf32>
    %cst_110 = arith.constant dense<0xFF800000> : vector<8xf32>
    %255 = vector.multi_reduction <maximumf>, %254, %cst_110 [1] : vector<8x8xf32> to vector<8xf32>
    %256 = vector.shape_cast %255 : vector<8xf32> to vector<8x1xf32>
    %257 = vector.broadcast %256 : vector<8x1xf32> to vector<8x8xf32>
    %258 = arith.subf %254, %257 : vector<8x8xf32>
    %259 = math.exp %258 : vector<8x8xf32>
    %cst_111 = arith.constant dense<0.000000e+00> : vector<8xf32>
    %260 = vector.multi_reduction <add>, %259, %cst_111 [1] : vector<8x8xf32> to vector<8xf32>
    %261 = vector.shape_cast %260 : vector<8xf32> to vector<8x1xf32>
    %262 = tpu.reciprocal %261 {approx = true} : vector<8x1xf32> -> vector<8x1xf32>
    %263 = vector.broadcast %262 : vector<8x1xf32> to vector<8x8xf32>
    %264 = arith.mulf %259, %263 : vector<8x8xf32>
    %cst_112 = arith.constant dense<0.000000e+00> : vector<8x8xf32>
    %265 = tpu.matmul %264, %251, %cst_112 {dimension_numbers = #tpu.dot_dimension_numbers<[1], [0], [0], [1], [0, 0, 1, 1], [], []>} : vector<8x8xf32>, vector<8x8xf32>, vector<8x8xf32> -> vector<8x8xf32>
    %266 = vector.extract_strided_slice %187 {offsets = [24, 0], sizes = [8, 32], strides = [1, 1]} : vector<32x32xf32> to vector<8x32xf32>
    %cst_113 = arith.constant dense<0.000000e+00> : vector<8x32xf32>
    %267 = tpu.matmul %265, %266, %cst_113 {dimension_numbers = #tpu.dot_dimension_numbers<[1], [0], [0], [1], [0, 0, 1, 1], [], []>} : vector<8x8xf32>, vector<8x32xf32>, vector<8x32xf32> -> vector<8x32xf32>
    %268 = arith.addf %248, %267 : vector<8x32xf32>
    %c1_114 = arith.constant 1 : index
    %c0_115 = arith.constant 0 : index
    %c0_116 = arith.constant 0 : index
    %269 = vector.load %arg7[%c1_114, %c0_115, %c0_116] : memref<2x1x32xf32, #tpu.memory_space<vmem>>, vector<1x1x32xf32>
    %270 = vector.shape_cast %269 : vector<1x1x32xf32> to vector<1x32xf32>
    %271 = vector.broadcast %270 : vector<1x32xf32> to vector<8x32xf32>
    %272 = arith.addf %268, %271 : vector<8x32xf32>
    %273 = arith.addf %174, %272 : vector<8x32xf32>
    %c1_117 = arith.constant 1 : index
    %c0_118 = arith.constant 0 : index
    %c0_119 = arith.constant 0 : index
    %274 = vector.load %arg8[%c1_117, %c0_118, %c0_119] : memref<2x1x32xf32, #tpu.memory_space<vmem>>, vector<1x1x32xf32>
    %275 = vector.shape_cast %274 : vector<1x1x32xf32> to vector<1x32xf32>
    %c1_120 = arith.constant 1 : index
    %c0_121 = arith.constant 0 : index
    %c0_122 = arith.constant 0 : index
    %276 = vector.load %arg9[%c1_120, %c0_121, %c0_122] : memref<2x1x32xf32, #tpu.memory_space<vmem>>, vector<1x1x32xf32>
    %277 = vector.shape_cast %276 : vector<1x1x32xf32> to vector<1x32xf32>
    %cst_123 = arith.constant dense<0.000000e+00> : vector<8xf32>
    %278 = vector.multi_reduction <add>, %273, %cst_123 [1] : vector<8x32xf32> to vector<8xf32>
    %279 = vector.shape_cast %278 : vector<8xf32> to vector<8x1xf32>
    %cst_124 = arith.constant 3.200000e+01 : f32
    %280 = vector.broadcast %cst_124 : f32 to vector<8x1xf32>
    %281 = arith.divf %279, %280 : vector<8x1xf32>
    %282 = vector.broadcast %281 : vector<8x1xf32> to vector<8x32xf32>
    %283 = arith.subf %273, %282 : vector<8x32xf32>
    %284 = arith.mulf %283, %283 : vector<8x32xf32>
    %cst_125 = arith.constant dense<0.000000e+00> : vector<8xf32>
    %285 = vector.multi_reduction <add>, %284, %cst_125 [1] : vector<8x32xf32> to vector<8xf32>
    %286 = vector.shape_cast %285 : vector<8xf32> to vector<8x1xf32>
    %cst_126 = arith.constant 3.200000e+01 : f32
    %287 = vector.broadcast %cst_126 : f32 to vector<8x1xf32>
    %288 = arith.divf %286, %287 : vector<8x1xf32>
    %cst_127 = arith.constant 9.99999974E-6 : f32
    %289 = vector.broadcast %cst_127 : f32 to vector<8x1xf32>
    %290 = arith.addf %288, %289 : vector<8x1xf32>
    %291 = math.rsqrt %290 : vector<8x1xf32>
    %292 = vector.broadcast %291 : vector<8x1xf32> to vector<8x32xf32>
    %293 = arith.mulf %283, %292 : vector<8x32xf32>
    %294 = vector.broadcast %275 : vector<1x32xf32> to vector<8x32xf32>
    %295 = arith.mulf %293, %294 : vector<8x32xf32>
    %296 = vector.broadcast %277 : vector<1x32xf32> to vector<8x32xf32>
    %297 = arith.addf %295, %296 : vector<8x32xf32>
    %c1_128 = arith.constant 1 : index
    %c0_129 = arith.constant 0 : index
    %c0_130 = arith.constant 0 : index
    %298 = vector.load %arg10[%c1_128, %c0_129, %c0_130] : memref<2x32x64xbf16, #tpu.memory_space<vmem>>, vector<1x32x64xbf16>
    %299 = vector.shape_cast %298 : vector<1x32x64xbf16> to vector<32x64xbf16>
    %300 = arith.truncf %297 : vector<8x32xf32> to vector<8x32xbf16>
    %cst_131 = arith.constant dense<0.000000e+00> : vector<8x64xf32>
    %301 = tpu.matmul %300, %299, %cst_131 {dimension_numbers = #tpu.dot_dimension_numbers<[1], [0], [0], [1], [0, 0, 1, 1], [], []>} : vector<8x32xbf16>, vector<32x64xbf16>, vector<8x64xf32> -> vector<8x64xf32>
    %c1_132 = arith.constant 1 : index
    %c0_133 = arith.constant 0 : index
    %c0_134 = arith.constant 0 : index
    %302 = vector.load %arg11[%c1_132, %c0_133, %c0_134] : memref<2x1x64xf32, #tpu.memory_space<vmem>>, vector<1x1x64xf32>
    %303 = vector.shape_cast %302 : vector<1x1x64xf32> to vector<1x64xf32>
    %304 = vector.broadcast %303 : vector<1x64xf32> to vector<8x64xf32>
    %305 = arith.addf %301, %304 : vector<8x64xf32>
    %cst_135 = arith.constant 0.000000e+00 : f32
    %306 = vector.broadcast %cst_135 : f32 to vector<8x64xf32>
    %307 = arith.maximumf %305, %306 : vector<8x64xf32>
    %c1_136 = arith.constant 1 : index
    %c0_137 = arith.constant 0 : index
    %c0_138 = arith.constant 0 : index
    %308 = vector.load %arg12[%c1_136, %c0_137, %c0_138] : memref<2x64x32xbf16, #tpu.memory_space<vmem>>, vector<1x64x32xbf16>
    %309 = vector.shape_cast %308 : vector<1x64x32xbf16> to vector<64x32xbf16>
    %310 = arith.truncf %307 : vector<8x64xf32> to vector<8x64xbf16>
    %cst_139 = arith.constant dense<0.000000e+00> : vector<8x32xf32>
    %311 = tpu.matmul %310, %309, %cst_139 {dimension_numbers = #tpu.dot_dimension_numbers<[1], [0], [0], [1], [0, 0, 1, 1], [], []>} : vector<8x64xbf16>, vector<64x32xbf16>, vector<8x32xf32> -> vector<8x32xf32>
    %c1_140 = arith.constant 1 : index
    %c0_141 = arith.constant 0 : index
    %c0_142 = arith.constant 0 : index
    %312 = vector.load %arg13[%c1_140, %c0_141, %c0_142] : memref<2x1x32xf32, #tpu.memory_space<vmem>>, vector<1x1x32xf32>
    %313 = vector.shape_cast %312 : vector<1x1x32xf32> to vector<1x32xf32>
    %314 = vector.broadcast %313 : vector<1x32xf32> to vector<8x32xf32>
    %315 = arith.addf %311, %314 : vector<8x32xf32>
    %316 = arith.addf %297, %315 : vector<8x32xf32>
    %c1_143 = arith.constant 1 : index
    %c0_144 = arith.constant 0 : index
    %c0_145 = arith.constant 0 : index
    %317 = vector.load %arg14[%c1_143, %c0_144, %c0_145] : memref<2x1x32xf32, #tpu.memory_space<vmem>>, vector<1x1x32xf32>
    %318 = vector.shape_cast %317 : vector<1x1x32xf32> to vector<1x32xf32>
    %c1_146 = arith.constant 1 : index
    %c0_147 = arith.constant 0 : index
    %c0_148 = arith.constant 0 : index
    %319 = vector.load %arg15[%c1_146, %c0_147, %c0_148] : memref<2x1x32xf32, #tpu.memory_space<vmem>>, vector<1x1x32xf32>
    %320 = vector.shape_cast %319 : vector<1x1x32xf32> to vector<1x32xf32>
    %cst_149 = arith.constant dense<0.000000e+00> : vector<8xf32>
    %321 = vector.multi_reduction <add>, %316, %cst_149 [1] : vector<8x32xf32> to vector<8xf32>
    %322 = vector.shape_cast %321 : vector<8xf32> to vector<8x1xf32>
    %cst_150 = arith.constant 3.200000e+01 : f32
    %323 = vector.broadcast %cst_150 : f32 to vector<8x1xf32>
    %324 = arith.divf %322, %323 : vector<8x1xf32>
    %325 = vector.broadcast %324 : vector<8x1xf32> to vector<8x32xf32>
    %326 = arith.subf %316, %325 : vector<8x32xf32>
    %327 = arith.mulf %326, %326 : vector<8x32xf32>
    %cst_151 = arith.constant dense<0.000000e+00> : vector<8xf32>
    %328 = vector.multi_reduction <add>, %327, %cst_151 [1] : vector<8x32xf32> to vector<8xf32>
    %329 = vector.shape_cast %328 : vector<8xf32> to vector<8x1xf32>
    %cst_152 = arith.constant 3.200000e+01 : f32
    %330 = vector.broadcast %cst_152 : f32 to vector<8x1xf32>
    %331 = arith.divf %329, %330 : vector<8x1xf32>
    %cst_153 = arith.constant 9.99999974E-6 : f32
    %332 = vector.broadcast %cst_153 : f32 to vector<8x1xf32>
    %333 = arith.addf %331, %332 : vector<8x1xf32>
    %334 = math.rsqrt %333 : vector<8x1xf32>
    %335 = vector.broadcast %334 : vector<8x1xf32> to vector<8x32xf32>
    %336 = arith.mulf %326, %335 : vector<8x32xf32>
    %337 = vector.broadcast %318 : vector<1x32xf32> to vector<8x32xf32>
    %338 = arith.mulf %336, %337 : vector<8x32xf32>
    %339 = vector.broadcast %320 : vector<1x32xf32> to vector<8x32xf32>
    %340 = arith.addf %338, %339 : vector<8x32xf32>
    %c0_154 = arith.constant 0 : index
    %c0_155 = arith.constant 0 : index
    %341 = vector.load %arg16[%c0_154, %c0_155] : memref<32x256xbf16, #tpu.memory_space<vmem>>, vector<32x256xbf16>
    %342 = arith.truncf %340 : vector<8x32xf32> to vector<8x32xbf16>
    %cst_156 = arith.constant dense<0.000000e+00> : vector<8x256xf32>
    %343 = tpu.matmul %342, %341, %cst_156 {dimension_numbers = #tpu.dot_dimension_numbers<[1], [0], [0], [1], [0, 0, 1, 1], [], []>} : vector<8x32xbf16>, vector<32x256xbf16>, vector<8x256xf32> -> vector<8x256xf32>
    %c0_157 = arith.constant 0 : index
    %c0_158 = arith.constant 0 : index
    %344 = vector.load %arg17[%c0_157, %c0_158] : memref<1x256xf32, #tpu.memory_space<vmem>>, vector<1x256xf32>
    %345 = vector.broadcast %344 : vector<1x256xf32> to vector<8x256xf32>
    %346 = arith.addf %343, %345 : vector<8x256xf32>
    %c0_159 = arith.constant 0 : index
    %c0_160 = arith.constant 0 : index
    %347 = vector.load %arg22[%c0_159, %c0_160] : memref<8x256xf32, #tpu.memory_space<vmem>>, vector<8x256xf32>
    tpu.vector_store %arg22[%c0_159, %c0_160], %346 {strides = array<i32>} : memref<8x256xf32, #tpu.memory_space<vmem>>, vector<8x256xf32>,
    %c0_161 = arith.constant 0 : index
    %c0_162 = arith.constant 0 : index
    %348 = vector.load %arg18[%c0_161, %c0_162] : memref<64x256xf32, #tpu.memory_space<vmem>>, vector<64x256xf32>
    %cst_163 = arith.constant 0.000000e+00 : f32
    %349 = vector.broadcast %cst_163 : f32 to vector<1x64xf32>
    %cst_164 = arith.constant 0.000000e+00 : f32
    %350 = vector.broadcast %cst_164 : f32 to vector<1x64xf32>
    %c0_165 = arith.constant 0 : index
    %c0_166 = arith.constant 0 : index
    %351 = vector.load %arg22[%c0_165, %c0_166] : memref<8x256xf32, #tpu.memory_space<vmem>>, vector<1x256xf32>
    %cst_167 = arith.constant dense<0.000000e+00> : vector<1x256xf32>
    %352 = tpu.matmul %349, %348, %cst_167 {dimension_numbers = #tpu.dot_dimension_numbers<[1], [0], [0], [1], [0, 0, 1, 1], [], []>} : vector<1x64xf32>, vector<64x256xf32>, vector<1x256xf32> -> vector<1x256xf32>
    %353 = arith.addf %351, %352 : vector<1x256xf32>
    %354 = vector.extract_strided_slice %353 {offsets = [0, 0], sizes = [1, 64], strides = [1, 1]} : vector<1x256xf32> to vector<1x64xf32>
    %355 = arith.negf %354 : vector<1x64xf32>
    %356 = math.exp %355 : vector<1x64xf32>
    %cst_168 = arith.constant 1.000000e+00 : f32
    %357 = vector.broadcast %cst_168 : f32 to vector<1x64xf32>
    %358 = arith.addf %357, %356 : vector<1x64xf32>
    %359 = arith.divf %357, %358 : vector<1x64xf32>
    %360 = vector.extract_strided_slice %353 {offsets = [0, 64], sizes = [1, 64], strides = [1, 1]} : vector<1x256xf32> to vector<1x64xf32>
    %361 = arith.negf %360 : vector<1x64xf32>
    %362 = math.exp %361 : vector<1x64xf32>
    %cst_169 = arith.constant 1.000000e+00 : f32
    %363 = vector.broadcast %cst_169 : f32 to vector<1x64xf32>
    %364 = arith.addf %363, %362 : vector<1x64xf32>
    %365 = arith.divf %363, %364 : vector<1x64xf32>
    %366 = vector.extract_strided_slice %353 {offsets = [0, 128], sizes = [1, 64], strides = [1, 1]} : vector<1x256xf32> to vector<1x64xf32>
    %367 = math.tanh %366 : vector<1x64xf32>
    %368 = vector.extract_strided_slice %353 {offsets = [0, 192], sizes = [1, 64], strides = [1, 1]} : vector<1x256xf32> to vector<1x64xf32>
    %369 = arith.negf %368 : vector<1x64xf32>
    %370 = math.exp %369 : vector<1x64xf32>
    %cst_170 = arith.constant 1.000000e+00 : f32
    %371 = vector.broadcast %cst_170 : f32 to vector<1x64xf32>
    %372 = arith.addf %371, %370 : vector<1x64xf32>
    %373 = arith.divf %371, %372 : vector<1x64xf32>
    %374 = arith.mulf %365, %350 : vector<1x64xf32>
    %375 = arith.mulf %359, %367 : vector<1x64xf32>
    %376 = arith.addf %374, %375 : vector<1x64xf32>
    %377 = math.tanh %376 : vector<1x64xf32>
    %378 = arith.mulf %373, %377 : vector<1x64xf32>
    %c1_171 = arith.constant 1 : index
    %c0_172 = arith.constant 0 : index
    %379 = vector.load %arg22[%c1_171, %c0_172] : memref<8x256xf32, #tpu.memory_space<vmem>>, vector<1x256xf32>
    %cst_173 = arith.constant dense<0.000000e+00> : vector<1x256xf32>
    %380 = tpu.matmul %378, %348, %cst_173 {dimension_numbers = #tpu.dot_dimension_numbers<[1], [0], [0], [1], [0, 0, 1, 1], [], []>} : vector<1x64xf32>, vector<64x256xf32>, vector<1x256xf32> -> vector<1x256xf32>
    %381 = arith.addf %379, %380 : vector<1x256xf32>
    %382 = vector.extract_strided_slice %381 {offsets = [0, 0], sizes = [1, 64], strides = [1, 1]} : vector<1x256xf32> to vector<1x64xf32>
    %383 = arith.negf %382 : vector<1x64xf32>
    %384 = math.exp %383 : vector<1x64xf32>
    %cst_174 = arith.constant 1.000000e+00 : f32
    %385 = vector.broadcast %cst_174 : f32 to vector<1x64xf32>
    %386 = arith.addf %385, %384 : vector<1x64xf32>
    %387 = arith.divf %385, %386 : vector<1x64xf32>
    %388 = vector.extract_strided_slice %381 {offsets = [0, 64], sizes = [1, 64], strides = [1, 1]} : vector<1x256xf32> to vector<1x64xf32>
    %389 = arith.negf %388 : vector<1x64xf32>
    %390 = math.exp %389 : vector<1x64xf32>
    %cst_175 = arith.constant 1.000000e+00 : f32
    %391 = vector.broadcast %cst_175 : f32 to vector<1x64xf32>
    %392 = arith.addf %391, %390 : vector<1x64xf32>
    %393 = arith.divf %391, %392 : vector<1x64xf32>
    %394 = vector.extract_strided_slice %381 {offsets = [0, 128], sizes = [1, 64], strides = [1, 1]} : vector<1x256xf32> to vector<1x64xf32>
    %395 = math.tanh %394 : vector<1x64xf32>
    %396 = vector.extract_strided_slice %381 {offsets = [0, 192], sizes = [1, 64], strides = [1, 1]} : vector<1x256xf32> to vector<1x64xf32>
    %397 = arith.negf %396 : vector<1x64xf32>
    %398 = math.exp %397 : vector<1x64xf32>
    %cst_176 = arith.constant 1.000000e+00 : f32
    %399 = vector.broadcast %cst_176 : f32 to vector<1x64xf32>
    %400 = arith.addf %399, %398 : vector<1x64xf32>
    %401 = arith.divf %399, %400 : vector<1x64xf32>
    %402 = arith.mulf %393, %376 : vector<1x64xf32>
    %403 = arith.mulf %387, %395 : vector<1x64xf32>
    %404 = arith.addf %402, %403 : vector<1x64xf32>
    %405 = math.tanh %404 : vector<1x64xf32>
    %406 = arith.mulf %401, %405 : vector<1x64xf32>
    %c2 = arith.constant 2 : index
    %c0_177 = arith.constant 0 : index
    %407 = vector.load %arg22[%c2, %c0_177] : memref<8x256xf32, #tpu.memory_space<vmem>>, vector<1x256xf32>
    %cst_178 = arith.constant dense<0.000000e+00> : vector<1x256xf32>
    %408 = tpu.matmul %406, %348, %cst_178 {dimension_numbers = #tpu.dot_dimension_numbers<[1], [0], [0], [1], [0, 0, 1, 1], [], []>} : vector<1x64xf32>, vector<64x256xf32>, vector<1x256xf32> -> vector<1x256xf32>
    %409 = arith.addf %407, %408 : vector<1x256xf32>
    %410 = vector.extract_strided_slice %409 {offsets = [0, 0], sizes = [1, 64], strides = [1, 1]} : vector<1x256xf32> to vector<1x64xf32>
    %411 = arith.negf %410 : vector<1x64xf32>
    %412 = math.exp %411 : vector<1x64xf32>
    %cst_179 = arith.constant 1.000000e+00 : f32
    %413 = vector.broadcast %cst_179 : f32 to vector<1x64xf32>
    %414 = arith.addf %413, %412 : vector<1x64xf32>
    %415 = arith.divf %413, %414 : vector<1x64xf32>
    %416 = vector.extract_strided_slice %409 {offsets = [0, 64], sizes = [1, 64], strides = [1, 1]} : vector<1x256xf32> to vector<1x64xf32>
    %417 = arith.negf %416 : vector<1x64xf32>
    %418 = math.exp %417 : vector<1x64xf32>
    %cst_180 = arith.constant 1.000000e+00 : f32
    %419 = vector.broadcast %cst_180 : f32 to vector<1x64xf32>
    %420 = arith.addf %419, %418 : vector<1x64xf32>
    %421 = arith.divf %419, %420 : vector<1x64xf32>
    %422 = vector.extract_strided_slice %409 {offsets = [0, 128], sizes = [1, 64], strides = [1, 1]} : vector<1x256xf32> to vector<1x64xf32>
    %423 = math.tanh %422 : vector<1x64xf32>
    %424 = vector.extract_strided_slice %409 {offsets = [0, 192], sizes = [1, 64], strides = [1, 1]} : vector<1x256xf32> to vector<1x64xf32>
    %425 = arith.negf %424 : vector<1x64xf32>
    %426 = math.exp %425 : vector<1x64xf32>
    %cst_181 = arith.constant 1.000000e+00 : f32
    %427 = vector.broadcast %cst_181 : f32 to vector<1x64xf32>
    %428 = arith.addf %427, %426 : vector<1x64xf32>
    %429 = arith.divf %427, %428 : vector<1x64xf32>
    %430 = arith.mulf %421, %404 : vector<1x64xf32>
    %431 = arith.mulf %415, %423 : vector<1x64xf32>
    %432 = arith.addf %430, %431 : vector<1x64xf32>
    %433 = math.tanh %432 : vector<1x64xf32>
    %434 = arith.mulf %429, %433 : vector<1x64xf32>
    %c3 = arith.constant 3 : index
    %c0_182 = arith.constant 0 : index
    %435 = vector.load %arg22[%c3, %c0_182] : memref<8x256xf32, #tpu.memory_space<vmem>>, vector<1x256xf32>
    %cst_183 = arith.constant dense<0.000000e+00> : vector<1x256xf32>
    %436 = tpu.matmul %434, %348, %cst_183 {dimension_numbers = #tpu.dot_dimension_numbers<[1], [0], [0], [1], [0, 0, 1, 1], [], []>} : vector<1x64xf32>, vector<64x256xf32>, vector<1x256xf32> -> vector<1x256xf32>
    %437 = arith.addf %435, %436 : vector<1x256xf32>
    %438 = vector.extract_strided_slice %437 {offsets = [0, 0], sizes = [1, 64], strides = [1, 1]} : vector<1x256xf32> to vector<1x64xf32>
    %439 = arith.negf %438 : vector<1x64xf32>
    %440 = math.exp %439 : vector<1x64xf32>
    %cst_184 = arith.constant 1.000000e+00 : f32
    %441 = vector.broadcast %cst_184 : f32 to vector<1x64xf32>
    %442 = arith.addf %441, %440 : vector<1x64xf32>
    %443 = arith.divf %441, %442 : vector<1x64xf32>
    %444 = vector.extract_strided_slice %437 {offsets = [0, 64], sizes = [1, 64], strides = [1, 1]} : vector<1x256xf32> to vector<1x64xf32>
    %445 = arith.negf %444 : vector<1x64xf32>
    %446 = math.exp %445 : vector<1x64xf32>
    %cst_185 = arith.constant 1.000000e+00 : f32
    %447 = vector.broadcast %cst_185 : f32 to vector<1x64xf32>
    %448 = arith.addf %447, %446 : vector<1x64xf32>
    %449 = arith.divf %447, %448 : vector<1x64xf32>
    %450 = vector.extract_strided_slice %437 {offsets = [0, 128], sizes = [1, 64], strides = [1, 1]} : vector<1x256xf32> to vector<1x64xf32>
    %451 = math.tanh %450 : vector<1x64xf32>
    %452 = vector.extract_strided_slice %437 {offsets = [0, 192], sizes = [1, 64], strides = [1, 1]} : vector<1x256xf32> to vector<1x64xf32>
    %453 = arith.negf %452 : vector<1x64xf32>
    %454 = math.exp %453 : vector<1x64xf32>
    %cst_186 = arith.constant 1.000000e+00 : f32
    %455 = vector.broadcast %cst_186 : f32 to vector<1x64xf32>
    %456 = arith.addf %455, %454 : vector<1x64xf32>
    %457 = arith.divf %455, %456 : vector<1x64xf32>
    %458 = arith.mulf %449, %432 : vector<1x64xf32>
    %459 = arith.mulf %443, %451 : vector<1x64xf32>
    %460 = arith.addf %458, %459 : vector<1x64xf32>
    %461 = math.tanh %460 : vector<1x64xf32>
    %462 = arith.mulf %457, %461 : vector<1x64xf32>
    %c4 = arith.constant 4 : index
    %c0_187 = arith.constant 0 : index
    %463 = vector.load %arg22[%c4, %c0_187] : memref<8x256xf32, #tpu.memory_space<vmem>>, vector<1x256xf32>
    %cst_188 = arith.constant dense<0.000000e+00> : vector<1x256xf32>
    %464 = tpu.matmul %462, %348, %cst_188 {dimension_numbers = #tpu.dot_dimension_numbers<[1], [0], [0], [1], [0, 0, 1, 1], [], []>} : vector<1x64xf32>, vector<64x256xf32>, vector<1x256xf32> -> vector<1x256xf32>
    %465 = arith.addf %463, %464 : vector<1x256xf32>
    %466 = vector.extract_strided_slice %465 {offsets = [0, 0], sizes = [1, 64], strides = [1, 1]} : vector<1x256xf32> to vector<1x64xf32>
    %467 = arith.negf %466 : vector<1x64xf32>
    %468 = math.exp %467 : vector<1x64xf32>
    %cst_189 = arith.constant 1.000000e+00 : f32
    %469 = vector.broadcast %cst_189 : f32 to vector<1x64xf32>
    %470 = arith.addf %469, %468 : vector<1x64xf32>
    %471 = arith.divf %469, %470 : vector<1x64xf32>
    %472 = vector.extract_strided_slice %465 {offsets = [0, 64], sizes = [1, 64], strides = [1, 1]} : vector<1x256xf32> to vector<1x64xf32>
    %473 = arith.negf %472 : vector<1x64xf32>
    %474 = math.exp %473 : vector<1x64xf32>
    %cst_190 = arith.constant 1.000000e+00 : f32
    %475 = vector.broadcast %cst_190 : f32 to vector<1x64xf32>
    %476 = arith.addf %475, %474 : vector<1x64xf32>
    %477 = arith.divf %475, %476 : vector<1x64xf32>
    %478 = vector.extract_strided_slice %465 {offsets = [0, 128], sizes = [1, 64], strides = [1, 1]} : vector<1x256xf32> to vector<1x64xf32>
    %479 = math.tanh %478 : vector<1x64xf32>
    %480 = vector.extract_strided_slice %465 {offsets = [0, 192], sizes = [1, 64], strides = [1, 1]} : vector<1x256xf32> to vector<1x64xf32>
    %481 = arith.negf %480 : vector<1x64xf32>
    %482 = math.exp %481 : vector<1x64xf32>
    %cst_191 = arith.constant 1.000000e+00 : f32
    %483 = vector.broadcast %cst_191 : f32 to vector<1x64xf32>
    %484 = arith.addf %483, %482 : vector<1x64xf32>
    %485 = arith.divf %483, %484 : vector<1x64xf32>
    %486 = arith.mulf %477, %460 : vector<1x64xf32>
    %487 = arith.mulf %471, %479 : vector<1x64xf32>
    %488 = arith.addf %486, %487 : vector<1x64xf32>
    %489 = math.tanh %488 : vector<1x64xf32>
    %490 = arith.mulf %485, %489 : vector<1x64xf32>
    %c5 = arith.constant 5 : index
    %c0_192 = arith.constant 0 : index
    %491 = vector.load %arg22[%c5, %c0_192] : memref<8x256xf32, #tpu.memory_space<vmem>>, vector<1x256xf32>
    %cst_193 = arith.constant dense<0.000000e+00> : vector<1x256xf32>
    %492 = tpu.matmul %490, %348, %cst_193 {dimension_numbers = #tpu.dot_dimension_numbers<[1], [0], [0], [1], [0, 0, 1, 1], [], []>} : vector<1x64xf32>, vector<64x256xf32>, vector<1x256xf32> -> vector<1x256xf32>
    %493 = arith.addf %491, %492 : vector<1x256xf32>
    %494 = vector.extract_strided_slice %493 {offsets = [0, 0], sizes = [1, 64], strides = [1, 1]} : vector<1x256xf32> to vector<1x64xf32>
    %495 = arith.negf %494 : vector<1x64xf32>
    %496 = math.exp %495 : vector<1x64xf32>
    %cst_194 = arith.constant 1.000000e+00 : f32
    %497 = vector.broadcast %cst_194 : f32 to vector<1x64xf32>
    %498 = arith.addf %497, %496 : vector<1x64xf32>
    %499 = arith.divf %497, %498 : vector<1x64xf32>
    %500 = vector.extract_strided_slice %493 {offsets = [0, 64], sizes = [1, 64], strides = [1, 1]} : vector<1x256xf32> to vector<1x64xf32>
    %501 = arith.negf %500 : vector<1x64xf32>
    %502 = math.exp %501 : vector<1x64xf32>
    %cst_195 = arith.constant 1.000000e+00 : f32
    %503 = vector.broadcast %cst_195 : f32 to vector<1x64xf32>
    %504 = arith.addf %503, %502 : vector<1x64xf32>
    %505 = arith.divf %503, %504 : vector<1x64xf32>
    %506 = vector.extract_strided_slice %493 {offsets = [0, 128], sizes = [1, 64], strides = [1, 1]} : vector<1x256xf32> to vector<1x64xf32>
    %507 = math.tanh %506 : vector<1x64xf32>
    %508 = vector.extract_strided_slice %493 {offsets = [0, 192], sizes = [1, 64], strides = [1, 1]} : vector<1x256xf32> to vector<1x64xf32>
    %509 = arith.negf %508 : vector<1x64xf32>
    %510 = math.exp %509 : vector<1x64xf32>
    %cst_196 = arith.constant 1.000000e+00 : f32
    %511 = vector.broadcast %cst_196 : f32 to vector<1x64xf32>
    %512 = arith.addf %511, %510 : vector<1x64xf32>
    %513 = arith.divf %511, %512 : vector<1x64xf32>
    %514 = arith.mulf %505, %488 : vector<1x64xf32>
    %515 = arith.mulf %499, %507 : vector<1x64xf32>
    %516 = arith.addf %514, %515 : vector<1x64xf32>
    %517 = math.tanh %516 : vector<1x64xf32>
    %518 = arith.mulf %513, %517 : vector<1x64xf32>
    %c6 = arith.constant 6 : index
    %c0_197 = arith.constant 0 : index
    %519 = vector.load %arg22[%c6, %c0_197] : memref<8x256xf32, #tpu.memory_space<vmem>>, vector<1x256xf32>
    %cst_198 = arith.constant dense<0.000000e+00> : vector<1x256xf32>
    %520 = tpu.matmul %518, %348, %cst_198 {dimension_numbers = #tpu.dot_dimension_numbers<[1], [0], [0], [1], [0, 0, 1, 1], [], []>} : vector<1x64xf32>, vector<64x256xf32>, vector<1x256xf32> -> vector<1x256xf32>
    %521 = arith.addf %519, %520 : vector<1x256xf32>
    %522 = vector.extract_strided_slice %521 {offsets = [0, 0], sizes = [1, 64], strides = [1, 1]} : vector<1x256xf32> to vector<1x64xf32>
    %523 = arith.negf %522 : vector<1x64xf32>
    %524 = math.exp %523 : vector<1x64xf32>
    %cst_199 = arith.constant 1.000000e+00 : f32
    %525 = vector.broadcast %cst_199 : f32 to vector<1x64xf32>
    %526 = arith.addf %525, %524 : vector<1x64xf32>
    %527 = arith.divf %525, %526 : vector<1x64xf32>
    %528 = vector.extract_strided_slice %521 {offsets = [0, 64], sizes = [1, 64], strides = [1, 1]} : vector<1x256xf32> to vector<1x64xf32>
    %529 = arith.negf %528 : vector<1x64xf32>
    %530 = math.exp %529 : vector<1x64xf32>
    %cst_200 = arith.constant 1.000000e+00 : f32
    %531 = vector.broadcast %cst_200 : f32 to vector<1x64xf32>
    %532 = arith.addf %531, %530 : vector<1x64xf32>
    %533 = arith.divf %531, %532 : vector<1x64xf32>
    %534 = vector.extract_strided_slice %521 {offsets = [0, 128], sizes = [1, 64], strides = [1, 1]} : vector<1x256xf32> to vector<1x64xf32>
    %535 = math.tanh %534 : vector<1x64xf32>
    %536 = vector.extract_strided_slice %521 {offsets = [0, 192], sizes = [1, 64], strides = [1, 1]} : vector<1x256xf32> to vector<1x64xf32>
    %537 = arith.negf %536 : vector<1x64xf32>
    %538 = math.exp %537 : vector<1x64xf32>
    %cst_201 = arith.constant 1.000000e+00 : f32
    %539 = vector.broadcast %cst_201 : f32 to vector<1x64xf32>
    %540 = arith.addf %539, %538 : vector<1x64xf32>
    %541 = arith.divf %539, %540 : vector<1x64xf32>
    %542 = arith.mulf %533, %516 : vector<1x64xf32>
    %543 = arith.mulf %527, %535 : vector<1x64xf32>
    %544 = arith.addf %542, %543 : vector<1x64xf32>
    %545 = math.tanh %544 : vector<1x64xf32>
    %546 = arith.mulf %541, %545 : vector<1x64xf32>
    %c7 = arith.constant 7 : index
    %c0_202 = arith.constant 0 : index
    %547 = vector.load %arg22[%c7, %c0_202] : memref<8x256xf32, #tpu.memory_space<vmem>>, vector<1x256xf32>
    %cst_203 = arith.constant dense<0.000000e+00> : vector<1x256xf32>
    %548 = tpu.matmul %546, %348, %cst_203 {dimension_numbers = #tpu.dot_dimension_numbers<[1], [0], [0], [1], [0, 0, 1, 1], [], []>} : vector<1x64xf32>, vector<64x256xf32>, vector<1x256xf32> -> vector<1x256xf32>
    %549 = arith.addf %547, %548 : vector<1x256xf32>
    %550 = vector.extract_strided_slice %549 {offsets = [0, 0], sizes = [1, 64], strides = [1, 1]} : vector<1x256xf32> to vector<1x64xf32>
    %551 = arith.negf %550 : vector<1x64xf32>
    %552 = math.exp %551 : vector<1x64xf32>
    %cst_204 = arith.constant 1.000000e+00 : f32
    %553 = vector.broadcast %cst_204 : f32 to vector<1x64xf32>
    %554 = arith.addf %553, %552 : vector<1x64xf32>
    %555 = arith.divf %553, %554 : vector<1x64xf32>
    %556 = vector.extract_strided_slice %549 {offsets = [0, 64], sizes = [1, 64], strides = [1, 1]} : vector<1x256xf32> to vector<1x64xf32>
    %557 = arith.negf %556 : vector<1x64xf32>
    %558 = math.exp %557 : vector<1x64xf32>
    %cst_205 = arith.constant 1.000000e+00 : f32
    %559 = vector.broadcast %cst_205 : f32 to vector<1x64xf32>
    %560 = arith.addf %559, %558 : vector<1x64xf32>
    %561 = arith.divf %559, %560 : vector<1x64xf32>
    %562 = vector.extract_strided_slice %549 {offsets = [0, 128], sizes = [1, 64], strides = [1, 1]} : vector<1x256xf32> to vector<1x64xf32>
    %563 = math.tanh %562 : vector<1x64xf32>
    %564 = vector.extract_strided_slice %549 {offsets = [0, 192], sizes = [1, 64], strides = [1, 1]} : vector<1x256xf32> to vector<1x64xf32>
    %565 = arith.negf %564 : vector<1x64xf32>
    %566 = math.exp %565 : vector<1x64xf32>
    %cst_206 = arith.constant 1.000000e+00 : f32
    %567 = vector.broadcast %cst_206 : f32 to vector<1x64xf32>
    %568 = arith.addf %567, %566 : vector<1x64xf32>
    %569 = arith.divf %567, %568 : vector<1x64xf32>
    %570 = arith.mulf %561, %544 : vector<1x64xf32>
    %571 = arith.mulf %555, %563 : vector<1x64xf32>
    %572 = arith.addf %570, %571 : vector<1x64xf32>
    %573 = math.tanh %572 : vector<1x64xf32>
    %574 = arith.mulf %569, %573 : vector<1x64xf32>
    %c0_207 = arith.constant 0 : index
    %c0_208 = arith.constant 0 : index
    %575 = vector.load %arg19[%c0_207, %c0_208] : memref<1x64xf32, #tpu.memory_space<vmem>>, vector<1x64xf32>
    %576 = arith.mulf %574, %575 : vector<1x64xf32>
    %cst_209 = arith.constant dense<0.000000e+00> : vector<1xf32>
    %577 = vector.multi_reduction <add>, %576, %cst_209 [1] : vector<1x64xf32> to vector<1xf32>
    %578 = vector.shape_cast %577 : vector<1xf32> to vector<1x1xf32>
    %c0_210 = arith.constant 0 : index
    %c0_211 = arith.constant 0 : index
    %579 = vector.load %arg20[%c0_210, %c0_211] : memref<1x1xf32, #tpu.memory_space<vmem>>, vector<1x1xf32>
    %580 = arith.addf %578, %579 : vector<1x1xf32>
    %c0_212 = arith.constant 0 : index
    %c0_213 = arith.constant 0 : index
    %c0_214 = arith.constant 0 : index
    %581 = vector.load %arg21[%c0_212, %c0_213, %c0_214] : memref<1x1x1xf32, #tpu.memory_space<vmem>>, vector<1x1x1xf32>
    %582 = vector.shape_cast %581 : vector<1x1x1xf32> to vector<1x1xf32>
    %583 = vector.shape_cast %580 : vector<1x1xf32> to vector<1x1x1xf32>
    tpu.vector_store %arg21[%c0_212, %c0_213, %c0_214], %583 {strides = array<i32>} : memref<1x1x1xf32, #tpu.memory_space<vmem>>, vector<1x1x1xf32>,
    return
  }
  func.func @transform_0(%arg0: i32) -> (i32, i32, i32) {
    %c0_i32 = arith.constant 0 : i32
    %c0_i32_0 = arith.constant 0 : i32
    %c0_i32_1 = arith.constant 0 : i32
    return %arg0, %c0_i32, %c0_i32_0 : i32, i32, i32
  }
  func.func @transform_1(%arg0: i32) -> (i32, i32) {
    %c0_i32 = arith.constant 0 : i32
    %c0_i32_0 = arith.constant 0 : i32
    %c0_i32_1 = arith.constant 0 : i32
    return %c0_i32, %c0_i32_0 : i32, i32
  }
  func.func @transform_2(%arg0: i32) -> (i32, i32) {
    %c0_i32 = arith.constant 0 : i32
    %c0_i32_0 = arith.constant 0 : i32
    %c0_i32_1 = arith.constant 0 : i32
    return %c0_i32, %c0_i32_0 : i32, i32
  }
  func.func @transform_3(%arg0: i32) -> (i32, i32, i32) {
    %c0_i32 = arith.constant 0 : i32
    %c0_i32_0 = arith.constant 0 : i32
    %c0_i32_1 = arith.constant 0 : i32
    %c0_i32_2 = arith.constant 0 : i32
    return %c0_i32, %c0_i32_0, %c0_i32_1 : i32, i32, i32
  }
  func.func @transform_4(%arg0: i32) -> (i32, i32, i32) {
    %c0_i32 = arith.constant 0 : i32
    %c0_i32_0 = arith.constant 0 : i32
    %c0_i32_1 = arith.constant 0 : i32
    %c0_i32_2 = arith.constant 0 : i32
    return %c0_i32, %c0_i32_0, %c0_i32_1 : i32, i32, i32
  }
  func.func @transform_5(%arg0: i32) -> (i32, i32, i32) {
    %c0_i32 = arith.constant 0 : i32
    %c0_i32_0 = arith.constant 0 : i32
    %c0_i32_1 = arith.constant 0 : i32
    %c0_i32_2 = arith.constant 0 : i32
    return %c0_i32, %c0_i32_0, %c0_i32_1 : i32, i32, i32
  }
  func.func @transform_6(%arg0: i32) -> (i32, i32, i32) {
    %c0_i32 = arith.constant 0 : i32
    %c0_i32_0 = arith.constant 0 : i32
    %c0_i32_1 = arith.constant 0 : i32
    %c0_i32_2 = arith.constant 0 : i32
    return %c0_i32, %c0_i32_0, %c0_i32_1 : i32, i32, i32
  }
  func.func @transform_7(%arg0: i32) -> (i32, i32, i32) {
    %c0_i32 = arith.constant 0 : i32
    %c0_i32_0 = arith.constant 0 : i32
    %c0_i32_1 = arith.constant 0 : i32
    %c0_i32_2 = arith.constant 0 : i32
    return %c0_i32, %c0_i32_0, %c0_i32_1 : i32, i32, i32
  }
  func.func @transform_8(%arg0: i32) -> (i32, i32, i32) {
    %c0_i32 = arith.constant 0 : i32
    %c0_i32_0 = arith.constant 0 : i32
    %c0_i32_1 = arith.constant 0 : i32
    %c0_i32_2 = arith.constant 0 : i32
    return %c0_i32, %c0_i32_0, %c0_i32_1 : i32, i32, i32
  }
  func.func @transform_9(%arg0: i32) -> (i32, i32, i32) {
    %c0_i32 = arith.constant 0 : i32
    %c0_i32_0 = arith.constant 0 : i32
    %c0_i32_1 = arith.constant 0 : i32
    %c0_i32_2 = arith.constant 0 : i32
    return %c0_i32, %c0_i32_0, %c0_i32_1 : i32, i32, i32
  }
  func.func @transform_10(%arg0: i32) -> (i32, i32, i32) {
    %c0_i32 = arith.constant 0 : i32
    %c0_i32_0 = arith.constant 0 : i32
    %c0_i32_1 = arith.constant 0 : i32
    %c0_i32_2 = arith.constant 0 : i32
    return %c0_i32, %c0_i32_0, %c0_i32_1 : i32, i32, i32
  }
  func.func @transform_11(%arg0: i32) -> (i32, i32, i32) {
    %c0_i32 = arith.constant 0 : i32
    %c0_i32_0 = arith.constant 0 : i32
    %c0_i32_1 = arith.constant 0 : i32
    %c0_i32_2 = arith.constant 0 : i32
    return %c0_i32, %c0_i32_0, %c0_i32_1 : i32, i32, i32
  }
  func.func @transform_12(%arg0: i32) -> (i32, i32, i32) {
    %c0_i32 = arith.constant 0 : i32
    %c0_i32_0 = arith.constant 0 : i32
    %c0_i32_1 = arith.constant 0 : i32
    %c0_i32_2 = arith.constant 0 : i32
    return %c0_i32, %c0_i32_0, %c0_i32_1 : i32, i32, i32
  }
  func.func @transform_13(%arg0: i32) -> (i32, i32, i32) {
    %c0_i32 = arith.constant 0 : i32
    %c0_i32_0 = arith.constant 0 : i32
    %c0_i32_1 = arith.constant 0 : i32
    %c0_i32_2 = arith.constant 0 : i32
    return %c0_i32, %c0_i32_0, %c0_i32_1 : i32, i32, i32
  }
  func.func @transform_14(%arg0: i32) -> (i32, i32, i32) {
    %c0_i32 = arith.constant 0 : i32
    %c0_i32_0 = arith.constant 0 : i32
    %c0_i32_1 = arith.constant 0 : i32
    %c0_i32_2 = arith.constant 0 : i32
    return %c0_i32, %c0_i32_0, %c0_i32_1 : i32, i32, i32
  }
  func.func @transform_15(%arg0: i32) -> (i32, i32) {
    %c0_i32 = arith.constant 0 : i32
    %c0_i32_0 = arith.constant 0 : i32
    %c0_i32_1 = arith.constant 0 : i32
    return %c0_i32, %c0_i32_0 : i32, i32
  }
  func.func @transform_16(%arg0: i32) -> (i32, i32) {
    %c0_i32 = arith.constant 0 : i32
    %c0_i32_0 = arith.constant 0 : i32
    %c0_i32_1 = arith.constant 0 : i32
    return %c0_i32, %c0_i32_0 : i32, i32
  }
  func.func @transform_17(%arg0: i32) -> (i32, i32) {
    %c0_i32 = arith.constant 0 : i32
    %c0_i32_0 = arith.constant 0 : i32
    %c0_i32_1 = arith.constant 0 : i32
    return %c0_i32, %c0_i32_0 : i32, i32
  }
  func.func @transform_18(%arg0: i32) -> (i32, i32) {
    %c0_i32 = arith.constant 0 : i32
    %c0_i32_0 = arith.constant 0 : i32
    %c0_i32_1 = arith.constant 0 : i32
    return %c0_i32, %c0_i32_0 : i32, i32
  }
  func.func @transform_19(%arg0: i32) -> (i32, i32) {
    %c0_i32 = arith.constant 0 : i32
    %c0_i32_0 = arith.constant 0 : i32
    %c0_i32_1 = arith.constant 0 : i32
    return %c0_i32, %c0_i32_0 : i32, i32
  }
  func.func @transform_20(%arg0: i32) -> (i32, i32, i32) {
    %c0_i32 = arith.constant 0 : i32
    %c0_i32_0 = arith.constant 0 : i32
    %c0_i32_1 = arith.constant 0 : i32
    return %arg0, %c0_i32, %c0_i32_0 : i32, i32, i32
  }
}

</mosaic_0001>

<llo_original>
// kernel: tpu_custom_call.1
$region0: #{tpu_custom_call.1}
  #allocation0 [shape = 'u32[]', space=smem, size = 0x4, offset = 0x4, fixed_abs, tag = 'smem constant byte address 0x4 - core index']
  #allocation1 [shape = 'u32[72,128]{1,0:T(1,128)}', space=vmem, size = 0x9000, scoped, tag = 'internal scratch']
  #allocation2 [shape = 'f32[8,256]{1,0:T(8,128)}', space=vmem, size = 0x2000, scoped, tag = 'scratch operand']
  #allocation3 [shape = 'f32[1,1]{1,0:T(1,128)S(1)}', space=vmem, size = 0x200, scoped, tag = 'scoped memory for tpu_custom_call.1']
  %s0 = inlined_call_operand.vmem [shape: f32[2,8,1], index: 0, kind: input, shape index: {}]
  %s1 = inlined_call_operand.hbm [shape: f32[1,32], index: 1, kind: input, shape index: {}]
  %s2 = inlined_call_operand.vmem [shape: f32[1,32], index: 2, kind: input, shape index: {}]
  %s3 = inlined_call_operand.vmem [shape: bf16[2,32,96], index: 3, kind: input, shape index: {}]
  %s4 = inlined_call_operand.vmem [shape: f32[2,1,96], index: 4, kind: input, shape index: {}]
  %s5 = inlined_call_operand.vmem [shape: f32[2,32,32], index: 5, kind: input, shape index: {}]
  %s6 = inlined_call_operand.vmem [shape: f32[2,1,32], index: 6, kind: input, shape index: {}]
  %s7 = inlined_call_operand.vmem [shape: f32[2,1,32], index: 7, kind: input, shape index: {}]
  %s8 = inlined_call_operand.vmem [shape: f32[2,1,32], index: 8, kind: input, shape index: {}]
  %s9 = inlined_call_operand.hbm [shape: bf16[2,32,64], index: 9, kind: input, shape index: {}]
  %s10 = inlined_call_operand.vmem [shape: f32[2,1,64], index: 10, kind: input, shape index: {}]
  %s11 = inlined_call_operand.vmem [shape: bf16[2,64,32], index: 11, kind: input, shape index: {}]
  %s12 = inlined_call_operand.vmem [shape: f32[2,1,32], index: 12, kind: input, shape index: {}]
  %s13 = inlined_call_operand.vmem [shape: f32[2,1,32], index: 13, kind: input, shape index: {}]
  %s14 = inlined_call_operand.vmem [shape: f32[2,1,32], index: 14, kind: input, shape index: {}]
  %s15 = inlined_call_operand.hbm [shape: bf16[32,256], index: 15, kind: input, shape index: {}]
  %s16 = inlined_call_operand.vmem [shape: f32[1,256], index: 16, kind: input, shape index: {}]
  %s17 = inlined_call_operand.hbm [shape: f32[64,256], index: 17, kind: input, shape index: {}]
  %s18 = inlined_call_operand.vmem [shape: f32[1,64], index: 18, kind: input, shape index: {}]
  %s19 = inlined_call_operand.<no memory space> [shape: f32[1,1], index: 19, kind: input, shape index: {}]
  %s20 = inlined_call_operand.vmem [shape: f32[2,1,1], index: 20, kind: output, shape index: {}]
  %s21 = sld [smem:[#allocation0]]
  $region129: #{tpu_custom_call.1} parent=0
    _
  %s23 = ssub.s32 1, %s21
  %s24 = scalar_select 0, %s23, %s21
  %v25 = vstv %s19
  %26 = vst [vmem:[#allocation3] sm:$0x1] %v25
  $region1: #{tpu_custom_call.1} parent=0
    #allocation4 [shape = 'u8[512]{0}', space=vmem, size = 0x400, scoped, tag = 'input window, operand 1, single buffered']
    #allocation5 [shape = 's32[2]{0}', space=sflag, size = 0x8, scoped, tag = 'scoped memory for tpu_custom_call.1']
    #allocation6 [shape = 'u8[16384]{0}', space=vmem, size = 0x4000, scoped, tag = 'input window, operand 9, single buffered']
    #allocation7 [shape = 's32[1]{0}', space=sflag, size = 0x4, scoped, tag = 'scoped memory for tpu_custom_call.1']
    #allocation8 [shape = 'u8[16384]{0}', space=vmem, size = 0x4000, scoped, tag = 'input window, operand 15, single buffered']
    #allocation9 [shape = 'u8[65536]{0}', space=vmem, size = 0x10000, scoped, tag = 'input window, operand 17, single buffered']
    #allocation10 [shape = 's32[1]{0}', space=sflag, size = 0x4, scoped, tag = 'scoped memory for tpu_custom_call.1']
    %27 = vsyncpa [#allocation5], 0
    %28 = vsyncpa [#allocation7], 0
    %29 = vsyncpa [#allocation10], 0
    loop: start=0, step=1, limit=4
    $region2: #{tpu_custom_call.1} parent=1 // loop_pre_header
      _
    $region3: #{tpu_custom_call.1} parent=1 // loop_header
      %s31 = sphi 0, %s35
      %p32 = scmp.ge.s32.totalorder %s31, 4
      %s41 = sphi 0, %s43
      %s44 = sphi 0, %s41
      %s45 = sphi 0, %s44
      %s61 = sphi 0, %s45
      %s65 = sphi 0, %s65
      %s67 = sphi 0, %s65
      %s68 = sphi 0, %s67
      %s82 = sphi 0, %s68
      %s86 = sphi 0, %s86
      %s88 = sphi 0, %s86
      %s89 = sphi 0, %s88
      %s103 = sphi 0, %s89
      %s107 = sphi 0, %s107
      %s109 = sphi 0, %s107
      %s110 = sphi 0, %s109
      %s124 = sphi 0, %s110
      %s128 = sphi 0, %s128
      %s130 = sphi 0, %s128
      %s131 = sphi 0, %s130
      %s145 = sphi 0, %s131
      %s149 = sphi 0, %s149
      %s151 = sphi 0, %s149
      %s152 = sphi 0, %s151
      %s166 = sphi 0, %s152
      %s170 = sphi 0, %s170
      %s172 = sphi 0, %s170
      %s173 = sphi 0, %s172
      %s187 = sphi 0, %s173
      %s191 = sphi 0, %s191
      %s193 = sphi 0, %s191
      %s194 = sphi 0, %s193
      %s208 = sphi 0, %s194
      %s212 = sphi 0, %s212
      %s214 = sphi 0, %s212
      %s215 = sphi 0, %s214
      %s229 = sphi 0, %s215
      %s233 = sphi 0, %s233
      %s235 = sphi 0, %s233
      %s236 = sphi 0, %s235
      %s250 = sphi 0, %s236
      %s254 = sphi 0, %s254
      %s256 = sphi 0, %s254
      %s257 = sphi 0, %s256
      %s271 = sphi 0, %s257
      %s275 = sphi 0, %s275
      %s277 = sphi 0, %s275
      %s278 = sphi 0, %s277
      %s292 = sphi 0, %s278
      %s296 = sphi 0, %s296
      %s298 = sphi 0, %s296
      %s299 = sphi 0, %s298
      %s313 = sphi 0, %s299
      %s317 = sphi 0, %s317
      %s319 = sphi 0, %s317
      %s320 = sphi 0, %s319
      %s334 = sphi 0, %s320
      %s338 = sphi 0, %s338
      %s340 = sphi 0, %s338
      %s341 = sphi 0, %s340
      %s355 = sphi 0, %s341
      %s359 = sphi 0, %s359
      %s361 = sphi 0, %s359
      %s362 = sphi 0, %s361
      %s376 = sphi 0, %s362
      %s380 = sphi 0, %s380
      %s382 = sphi 0, %s380
      %s383 = sphi 0, %s382
      %s397 = sphi 0, %s383
      %s401 = sphi 0, %s401
      %s403 = sphi 0, %s401
      %s404 = sphi 0, %s403
      %s418 = sphi 0, %s404
      %s422 = sphi 0, %s422
      %s424 = sphi 0, %s422
      %s425 = sphi 0, %s424
      %s439 = sphi 0, %s425
      %s443 = sphi 0, %s443
      %s445 = sphi 0, %s443
      %s446 = sphi 0, %s445
      %s460 = sphi 0, %s446
      %s466 = sphi 0, %s468
      %s469 = sphi 0, %s466
      %s470 = sphi 0, %s469
      %s486 = sphi 0, %s470
    $region4: #{tpu_custom_call.1} parent=1 // loop_header_branch
      %34 = sbr.rel (%p32) target = $region8
    $region5: #{tpu_custom_call.1} parent=1 // loop_body
      %s36 = ssub.s32 %s31, 1
      %s37 = ssub.s32 %s31, 2
      %s38 = sadd.s32 %s31, 1
      %s39 = ssub.s32 %s31, %s38
      %p40 = scmp.eq.s32.totalorder %s39, 0
      %s42 = sadd.s32 %s41, 1
      %s43 = scalar_select %p40, %s41, %s42
      %p46 = pneg %p40
      %p47 = scmp.eq.s32.totalorder %s31, 1
      %p48 = por %p46, %p47
      %p49 = scmp.ne.s32.totalorder %s41, %s44
      %p50 = scmp.eq.s32.totalorder %s31, 0
      %p51 = por %p49, %p50
      %p52 = scmp.ne.s32.totalorder %s41, %s44
      %p53 = scmp.eq.s32.totalorder %s36, 1
      %p54 = por %p52, %p53
      %p55 = scmp.ne.s32.totalorder %s44, %s45
      %p56 = scmp.eq.s32.totalorder %s36, 0
      %p57 = por %p55, %p56
      %p58 = scmp.ne.s32.totalorder %s44, %s45
      %p59 = scmp.eq.s32.totalorder %s37, 1
      %p60 = por %p58, %p59
      %p62 = scmp.ne.s32.totalorder %s45, %s61
      %p63 = scmp.eq.s32.totalorder %s37, 0
      %p64 = por %p62, %p63
      %s66 = sadd.s32 %s65, 1
      %p69 = scmp.eq.s32.totalorder %s31, 1
      %p70 = scmp.ne.s32.totalorder %s65, %s67
      %p71 = scmp.eq.s32.totalorder %s31, 0
      %p72 = por %p70, %p71
      %p73 = scmp.ne.s32.totalorder %s65, %s67
      %p74 = scmp.eq.s32.totalorder %s36, 1
      %p75 = por %p73, %p74
      %p76 = scmp.ne.s32.totalorder %s67, %s68
      %p77 = scmp.eq.s32.totalorder %s36, 0
      %p78 = por %p76, %p77
      %p79 = scmp.ne.s32.totalorder %s67, %s68
      %p80 = scmp.eq.s32.totalorder %s37, 1
      %p81 = por %p79, %p80
      %p83 = scmp.ne.s32.totalorder %s68, %s82
      %p84 = scmp.eq.s32.totalorder %s37, 0
      %p85 = por %p83, %p84
      %s87 = sadd.s32 %s86, 1
      %p90 = scmp.eq.s32.totalorder %s31, 1
      %p91 = scmp.ne.s32.totalorder %s86, %s88
      %p92 = scmp.eq.s32.totalorder %s31, 0
      %p93 = por %p91, %p92
      %p94 = scmp.ne.s32.totalorder %s86, %s88
      %p95 = scmp.eq.s32.totalorder %s36, 1
      %p96 = por %p94, %p95
      %p97 = scmp.ne.s32.totalorder %s88, %s89
      %p98 = scmp.eq.s32.totalorder %s36, 0
      %p99 = por %p97, %p98
      %p100 = scmp.ne.s32.totalorder %s88, %s89
      %p101 = scmp.eq.s32.totalorder %s37, 1
      %p102 = por %p100, %p101
      %p104 = scmp.ne.s32.totalorder %s89, %s103
      %p105 = scmp.eq.s32.totalorder %s37, 0
      %p106 = por %p104, %p105
      %s108 = sadd.s32 %s107, 1
      %p111 = scmp.eq.s32.totalorder %s31, 1
      %p112 = scmp.ne.s32.totalorder %s107, %s109
      %p113 = scmp.eq.s32.totalorder %s31, 0
      %p114 = por %p112, %p113
      %p115 = scmp.ne.s32.totalorder %s107, %s109
      %p116 = scmp.eq.s32.totalorder %s36, 1
      %p117 = por %p115, %p116
      %p118 = scmp.ne.s32.totalorder %s109, %s110
      %p119 = scmp.eq.s32.totalorder %s36, 0
      %p120 = por %p118, %p119
      %p121 = scmp.ne.s32.totalorder %s109, %s110
      %p122 = scmp.eq.s32.totalorder %s37, 1
      %p123 = por %p121, %p122
      %p125 = scmp.ne.s32.totalorder %s110, %s124
      %p126 = scmp.eq.s32.totalorder %s37, 0
      %p127 = por %p125, %p126
      %s129 = sadd.s32 %s128, 1
      %p132 = scmp.eq.s32.totalorder %s31, 1
      %p133 = scmp.ne.s32.totalorder %s128, %s130
      %p134 = scmp.eq.s32.totalorder %s31, 0
      %p135 = por %p133, %p134
      %p136 = scmp.ne.s32.totalorder %s128, %s130
      %p137 = scmp.eq.s32.totalorder %s36, 1
      %p138 = por %p136, %p137
      %p139 = scmp.ne.s32.totalorder %s130, %s131
      %p140 = scmp.eq.s32.totalorder %s36, 0
      %p141 = por %p139, %p140
      %p142 = scmp.ne.s32.totalorder %s130, %s131
      %p143 = scmp.eq.s32.totalorder %s37, 1
      %p144 = por %p142, %p143
      %p146 = scmp.ne.s32.totalorder %s131, %s145
      %p147 = scmp.eq.s32.totalorder %s37, 0
      %p148 = por %p146, %p147
      %s150 = sadd.s32 %s149, 1
      %p153 = scmp.eq.s32.totalorder %s31, 1
      %p154 = scmp.ne.s32.totalorder %s149, %s151
      %p155 = scmp.eq.s32.totalorder %s31, 0
      %p156 = por %p154, %p155
      %p157 = scmp.ne.s32.totalorder %s149, %s151
      %p158 = scmp.eq.s32.totalorder %s36, 1
      %p159 = por %p157, %p158
      %p160 = scmp.ne.s32.totalorder %s151, %s152
      %p161 = scmp.eq.s32.totalorder %s36, 0
      %p162 = por %p160, %p161
      %p163 = scmp.ne.s32.totalorder %s151, %s152
      %p164 = scmp.eq.s32.totalorder %s37, 1
      %p165 = por %p163, %p164
      %p167 = scmp.ne.s32.totalorder %s152, %s166
      %p168 = scmp.eq.s32.totalorder %s37, 0
      %p169 = por %p167, %p168
      %s171 = sadd.s32 %s170, 1
      %p174 = scmp.eq.s32.totalorder %s31, 1
      %p175 = scmp.ne.s32.totalorder %s170, %s172
      %p176 = scmp.eq.s32.totalorder %s31, 0
      %p177 = por %p175, %p176
      %p178 = scmp.ne.s32.totalorder %s170, %s172
      %p179 = scmp.eq.s32.totalorder %s36, 1
      %p180 = por %p178, %p179
      %p181 = scmp.ne.s32.totalorder %s172, %s173
      %p182 = scmp.eq.s32.totalorder %s36, 0
      %p183 = por %p181, %p182
      %p184 = scmp.ne.s32.totalorder %s172, %s173
      %p185 = scmp.eq.s32.totalorder %s37, 1
      %p186 = por %p184, %p185
      %p188 = scmp.ne.s32.totalorder %s173, %s187
      %p189 = scmp.eq.s32.totalorder %s37, 0
      %p190 = por %p188, %p189
      %s192 = sadd.s32 %s191, 1
      %p195 = scmp.eq.s32.totalorder %s31, 1
      %p196 = scmp.ne.s32.totalorder %s191, %s193
      %p197 = scmp.eq.s32.totalorder %s31, 0
      %p198 = por %p196, %p197
      %p199 = scmp.ne.s32.totalorder %s191, %s193
      %p200 = scmp.eq.s32.totalorder %s36, 1
      %p201 = por %p199, %p200
      %p202 = scmp.ne.s32.totalorder %s193, %s194
      %p203 = scmp.eq.s32.totalorder %s36, 0
      %p204 = por %p202, %p203
      %p205 = scmp.ne.s32.totalorder %s193, %s194
      %p206 = scmp.eq.s32.totalorder %s37, 1
      %p207 = por %p205, %p206
      %p209 = scmp.ne.s32.totalorder %s194, %s208
      %p210 = scmp.eq.s32.totalorder %s37, 0
      %p211 = por %p209, %p210
      %s213 = sadd.s32 %s212, 1
      %p216 = scmp.eq.s32.totalorder %s31, 1
      %p217 = scmp.ne.s32.totalorder %s212, %s214
      %p218 = scmp.eq.s32.totalorder %s31, 0
      %p219 = por %p217, %p218
      %p220 = scmp.ne.s32.totalorder %s212, %s214
      %p221 = scmp.eq.s32.totalorder %s36, 1
      %p222 = por %p220, %p221
      %p223 = scmp.ne.s32.totalorder %s214, %s215
      %p224 = scmp.eq.s32.totalorder %s36, 0
      %p225 = por %p223, %p224
      %p226 = scmp.ne.s32.totalorder %s214, %s215
      %p227 = scmp.eq.s32.totalorder %s37, 1
      %p228 = por %p226, %p227
      %p230 = scmp.ne.s32.totalorder %s215, %s229
      %p231 = scmp.eq.s32.totalorder %s37, 0
      %p232 = por %p230, %p231
      %s234 = sadd.s32 %s233, 1
      %p237 = scmp.eq.s32.totalorder %s31, 1
      %p238 = scmp.ne.s32.totalorder %s233, %s235
      %p239 = scmp.eq.s32.totalorder %s31, 0
      %p240 = por %p238, %p239
      %p241 = scmp.ne.s32.totalorder %s233, %s235
      %p242 = scmp.eq.s32.totalorder %s36, 1
      %p243 = por %p241, %p242
      %p244 = scmp.ne.s32.totalorder %s235, %s236
      %p245 = scmp.eq.s32.totalorder %s36, 0
      %p246 = por %p244, %p245
      %p247 = scmp.ne.s32.totalorder %s235, %s236
      %p248 = scmp.eq.s32.totalorder %s37, 1
      %p249 = por %p247, %p248
      %p251 = scmp.ne.s32.totalorder %s236, %s250
      %p252 = scmp.eq.s32.totalorder %s37, 0
      %p253 = por %p251, %p252
      %s255 = sadd.s32 %s254, 1
      %p258 = scmp.eq.s32.totalorder %s31, 1
      %p259 = scmp.ne.s32.totalorder %s254, %s256
      %p260 = scmp.eq.s32.totalorder %s31, 0
      %p261 = por %p259, %p260
      %p262 = scmp.ne.s32.totalorder %s254, %s256
      %p263 = scmp.eq.s32.totalorder %s36, 1
      %p264 = por %p262, %p263
      %p265 = scmp.ne.s32.totalorder %s256, %s257
      %p266 = scmp.eq.s32.totalorder %s36, 0
      %p267 = por %p265, %p266
      %p268 = scmp.ne.s32.totalorder %s256, %s257
      %p269 = scmp.eq.s32.totalorder %s37, 1
      %p270 = por %p268, %p269
      %p272 = scmp.ne.s32.totalorder %s257, %s271
      %p273 = scmp.eq.s32.totalorder %s37, 0
      %p274 = por %p272, %p273
      %s276 = sadd.s32 %s275, 1
      %p279 = scmp.eq.s32.totalorder %s31, 1
      %p280 = scmp.ne.s32.totalorder %s275, %s277
      %p281 = scmp.eq.s32.totalorder %s31, 0
      %p282 = por %p280, %p281
      %p283 = scmp.ne.s32.totalorder %s275, %s277
      %p284 = scmp.eq.s32.totalorder %s36, 1
      %p285 = por %p283, %p284
      %p286 = scmp.ne.s32.totalorder %s277, %s278
      %p287 = scmp.eq.s32.totalorder %s36, 0
      %p288 = por %p286, %p287
      %p289 = scmp.ne.s32.totalorder %s277, %s278
      %p290 = scmp.eq.s32.totalorder %s37, 1
      %p291 = por %p289, %p290
      %p293 = scmp.ne.s32.totalorder %s278, %s292
      %p294 = scmp.eq.s32.totalorder %s37, 0
      %p295 = por %p293, %p294
      %s297 = sadd.s32 %s296, 1
      %p300 = scmp.eq.s32.totalorder %s31, 1
      %p301 = scmp.ne.s32.totalorder %s296, %s298
      %p302 = scmp.eq.s32.totalorder %s31, 0
      %p303 = por %p301, %p302
      %p304 = scmp.ne.s32.totalorder %s296, %s298
      %p305 = scmp.eq.s32.totalorder %s36, 1
      %p306 = por %p304, %p305
      %p307 = scmp.ne.s32.totalorder %s298, %s299
      %p308 = scmp.eq.s32.totalorder %s36, 0
      %p309 = por %p307, %p308
      %p310 = scmp.ne.s32.totalorder %s298, %s299
      %p311 = scmp.eq.s32.totalorder %s37, 1
      %p312 = por %p310, %p311
      %p314 = scmp.ne.s32.totalorder %s299, %s313
      %p315 = scmp.eq.s32.totalorder %s37, 0
      %p316 = por %p314, %p315
      %s318 = sadd.s32 %s317, 1
      %p321 = scmp.eq.s32.totalorder %s31, 1
      %p322 = scmp.ne.s32.totalorder %s317, %s319
      %p323 = scmp.eq.s32.totalorder %s31, 0
      %p324 = por %p322, %p323
      %p325 = scmp.ne.s32.totalorder %s317, %s319
      %p326 = scmp.eq.s32.totalorder %s36, 1
      %p327 = por %p325, %p326
      %p328 = scmp.ne.s32.totalorder %s319, %s320
      %p329 = scmp.eq.s32.totalorder %s36, 0
      %p330 = por %p328, %p329
      %p331 = scmp.ne.s32.totalorder %s319, %s320
      %p332 = scmp.eq.s32.totalorder %s37, 1
      %p333 = por %p331, %p332
      %p335 = scmp.ne.s32.totalorder %s320, %s334
      %p336 = scmp.eq.s32.totalorder %s37, 0
      %p337 = por %p335, %p336
      %s339 = sadd.s32 %s338, 1
      %p342 = scmp.eq.s32.totalorder %s31, 1
      %p343 = scmp.ne.s32.totalorder %s338, %s340
      %p344 = scmp.eq.s32.totalorder %s31, 0
      %p345 = por %p343, %p344
      %p346 = scmp.ne.s32.totalorder %s338, %s340
      %p347 = scmp.eq.s32.totalorder %s36, 1
      %p348 = por %p346, %p347
      %p349 = scmp.ne.s32.totalorder %s340, %s341
      %p350 = scmp.eq.s32.totalorder %s36, 0
      %p351 = por %p349, %p350
      %p352 = scmp.ne.s32.totalorder %s340, %s341
      %p353 = scmp.eq.s32.totalorder %s37, 1
      %p354 = por %p352, %p353
      %p356 = scmp.ne.s32.totalorder %s341, %s355
      %p357 = scmp.eq.s32.totalorder %s37, 0
      %p358 = por %p356, %p357
      %s360 = sadd.s32 %s359, 1
      %p363 = scmp.eq.s32.totalorder %s31, 1
      %p364 = scmp.ne.s32.totalorder %s359, %s361
      %p365 = scmp.eq.s32.totalorder %s31, 0
      %p366 = por %p364, %p365
      %p367 = scmp.ne.s32.totalorder %s359, %s361
      %p368 = scmp.eq.s32.totalorder %s36, 1
      %p369 = por %p367, %p368
      %p370 = scmp.ne.s32.totalorder %s361, %s362
      %p371 = scmp.eq.s32.totalorder %s36, 0
      %p372 = por %p370, %p371
      %p373 = scmp.ne.s32.totalorder %s361, %s362
      %p374 = scmp.eq.s32.totalorder %s37, 1
      %p375 = por %p373, %p374
      %p377 = scmp.ne.s32.totalorder %s362, %s376
      %p378 = scmp.eq.s32.totalorder %s37, 0
      %p379 = por %p377, %p378
      %s381 = sadd.s32 %s380, 1
      %p384 = scmp.eq.s32.totalorder %s31, 1
      %p385 = scmp.ne.s32.totalorder %s380, %s382
      %p386 = scmp.eq.s32.totalorder %s31, 0
      %p387 = por %p385, %p386
      %p388 = scmp.ne.s32.totalorder %s380, %s382
      %p389 = scmp.eq.s32.totalorder %s36, 1
      %p390 = por %p388, %p389
      %p391 = scmp.ne.s32.totalorder %s382, %s383
      %p392 = scmp.eq.s32.totalorder %s36, 0
      %p393 = por %p391, %p392
      %p394 = scmp.ne.s32.totalorder %s382, %s383
      %p395 = scmp.eq.s32.totalorder %s37, 1
      %p396 = por %p394, %p395
      %p398 = scmp.ne.s32.totalorder %s383, %s397
      %p399 = scmp.eq.s32.totalorder %s37, 0
      %p400 = por %p398, %p399
      %s402 = sadd.s32 %s401, 1
      %p405 = scmp.eq.s32.totalorder %s31, 1
      %p406 = scmp.ne.s32.totalorder %s401, %s403
      %p407 = scmp.eq.s32.totalorder %s31, 0
      %p408 = por %p406, %p407
      %p409 = scmp.ne.s32.totalorder %s401, %s403
      %p410 = scmp.eq.s32.totalorder %s36, 1
      %p411 = por %p409, %p410
      %p412 = scmp.ne.s32.totalorder %s403, %s404
      %p413 = scmp.eq.s32.totalorder %s36, 0
      %p414 = por %p412, %p413
      %p415 = scmp.ne.s32.totalorder %s403, %s404
      %p416 = scmp.eq.s32.totalorder %s37, 1
      %p417 = por %p415, %p416
      %p419 = scmp.ne.s32.totalorder %s404, %s418
      %p420 = scmp.eq.s32.totalorder %s37, 0
      %p421 = por %p419, %p420
      %s423 = sadd.s32 %s422, 1
      %p426 = scmp.eq.s32.totalorder %s31, 1
      %p427 = scmp.ne.s32.totalorder %s422, %s424
      %p428 = scmp.eq.s32.totalorder %s31, 0
      %p429 = por %p427, %p428
      %p430 = scmp.ne.s32.totalorder %s422, %s424
      %p431 = scmp.eq.s32.totalorder %s36, 1
      %p432 = por %p430, %p431
      %p433 = scmp.ne.s32.totalorder %s424, %s425
      %p434 = scmp.eq.s32.totalorder %s36, 0
      %p435 = por %p433, %p434
      %p436 = scmp.ne.s32.totalorder %s424, %s425
      %p437 = scmp.eq.s32.totalorder %s37, 1
      %p438 = por %p436, %p437
      %p440 = scmp.ne.s32.totalorder %s425, %s439
      %p441 = scmp.eq.s32.totalorder %s37, 0
      %p442 = por %p440, %p441
      %s444 = sadd.s32 %s443, 1
      %p447 = scmp.eq.s32.totalorder %s31, 1
      %p448 = scmp.ne.s32.totalorder %s443, %s445
      %p449 = scmp.eq.s32.totalorder %s31, 0
      %p450 = por %p448, %p449
      %p451 = scmp.ne.s32.totalorder %s443, %s445
      %p452 = scmp.eq.s32.totalorder %s36, 1
      %p453 = por %p451, %p452
      %p454 = scmp.ne.s32.totalorder %s445, %s446
      %p455 = scmp.eq.s32.totalorder %s36, 0
      %p456 = por %p454, %p455
      %p457 = scmp.ne.s32.totalorder %s445, %s446
      %p458 = scmp.eq.s32.totalorder %s37, 1
      %p459 = por %p457, %p458
      %p461 = scmp.ne.s32.totalorder %s446, %s460
      %p462 = scmp.eq.s32.totalorder %s37, 0
      %p463 = por %p461, %p462
      %s464 = ssub.s32 %s31, %s38
      %p465 = scmp.eq.s32.totalorder %s464, 0
      %s467 = sadd.s32 %s466, 1
      %s468 = scalar_select %p465, %s466, %s467
      %p471 = pneg %p465
      %p472 = scmp.eq.s32.totalorder %s31, 1
      %p473 = por %p471, %p472
      %p474 = scmp.ne.s32.totalorder %s466, %s469
      %p475 = scmp.eq.s32.totalorder %s31, 0
      %p476 = por %p474, %p475
      %p477 = scmp.ne.s32.totalorder %s466, %s469
      %p478 = scmp.eq.s32.totalorder %s36, 1
      %p479 = por %p477, %p478
      %p480 = scmp.ne.s32.totalorder %s469, %s470
      %p481 = scmp.eq.s32.totalorder %s36, 0
      %p482 = por %p480, %p481
      %p483 = scmp.ne.s32.totalorder %s469, %s470
      %p484 = scmp.eq.s32.totalorder %s37, 1
      %p485 = por %p483, %p484
      %p487 = scmp.ne.s32.totalorder %s470, %s486
      %p488 = scmp.eq.s32.totalorder %s37, 0
      %p489 = por %p487, %p488
      %p490 = scmp.le.s32.totalorder 1, %s31
      %p491 = scmp.lt.s32.totalorder %s31, 3
      %p492 = pnand %p490, %p491
      %p493 = pneg %p492
      // Predicated region
      $region9: #{tpu_custom_call.1} parent=5 // pred_check
        _
      $region10: #{tpu_custom_call.1} parent=5 // pred_check_branch
        %495 = sbr.rel (%p492) target = $region12
      $region11: #{tpu_custom_call.1} parent=5 // pred_region
        %s496 = ssub.s32 %s31, 1
        // Predicated region
        $region13: #{tpu_custom_call.1} parent=11 // pred_check
          %p497 = pneg %p78
        $region14: #{tpu_custom_call.1} parent=11 // pred_check_branch
          %499 = sbr.rel (%p497) target = $region16
        $region15: #{tpu_custom_call.1} parent=11 // pred_region
          %501 = vsyncadd [#allocation5], 0
          %s503 = sshll.u32 %s1, 4
          %s504 = int_to_ptr.hbm [resolvable:$true] %s503
          %s505 = sshll.u32 [#allocation4], 4
          %s506 = int_to_ptr.vmem [resolvable:$true] %s505
          %508 = dma.hbm_to_vmem [thread:$0]  %s504, 16, %s506, [#allocation5]
        $region16: #{tpu_custom_call.1} parent=11 // pred_fallthru
          _
        // Predicated region
        $region17: #{tpu_custom_call.1} parent=11 // pred_check
          %p509 = pneg %p99
        $region18: #{tpu_custom_call.1} parent=11 // pred_check_branch
          %511 = sbr.rel (%p509) target = $region20
        $region19: #{tpu_custom_call.1} parent=11 // pred_region
          _
        $region20: #{tpu_custom_call.1} parent=11 // pred_fallthru
          _
        // Predicated region
        $region21: #{tpu_custom_call.1} parent=11 // pred_check
          %p512 = pneg %p120
        $region22: #{tpu_custom_call.1} parent=11 // pred_check_branch
          %514 = sbr.rel (%p512) target = $region24
        $region23: #{tpu_custom_call.1} parent=11 // pred_region
          _
        $region24: #{tpu_custom_call.1} parent=11 // pred_fallthru
          _
        // Predicated region
        $region25: #{tpu_custom_call.1} parent=11 // pred_check
          %p515 = pneg %p141
        $region26: #{tpu_custom_call.1} parent=11 // pred_check_branch
          %517 = sbr.rel (%p515) target = $region28
        $region27: #{tpu_custom_call.1} parent=11 // pred_region
          _
        $region28: #{tpu_custom_call.1} parent=11 // pred_fallthru
          _
        // Predicated region
        $region29: #{tpu_custom_call.1} parent=11 // pred_check
          %p518 = pneg %p162
        $region30: #{tpu_custom_call.1} parent=11 // pred_check_branch
          %520 = sbr.rel (%p518) target = $region32
        $region31: #{tpu_custom_call.1} parent=11 // pred_region
          _
        $region32: #{tpu_custom_call.1} parent=11 // pred_fallthru
          _
        // Predicated region
        $region33: #{tpu_custom_call.1} parent=11 // pred_check
          %p521 = pneg %p183
        $region34: #{tpu_custom_call.1} parent=11 // pred_check_branch
          %523 = sbr.rel (%p521) target = $region36
        $region35: #{tpu_custom_call.1} parent=11 // pred_region
          _
        $region36: #{tpu_custom_call.1} parent=11 // pred_fallthru
          _
        // Predicated region
        $region37: #{tpu_custom_call.1} parent=11 // pred_check
          %p524 = pneg %p204
        $region38: #{tpu_custom_call.1} parent=11 // pred_check_branch
          %526 = sbr.rel (%p524) target = $region40
        $region39: #{tpu_custom_call.1} parent=11 // pred_region
          _
        $region40: #{tpu_custom_call.1} parent=11 // pred_fallthru
          _
        // Predicated region
        $region41: #{tpu_custom_call.1} parent=11 // pred_check
          %p527 = pneg %p225
        $region42: #{tpu_custom_call.1} parent=11 // pred_check_branch
          %529 = sbr.rel (%p527) target = $region44
        $region43: #{tpu_custom_call.1} parent=11 // pred_region
          _
        $region44: #{tpu_custom_call.1} parent=11 // pred_fallthru
          _
        // Predicated region
        $region45: #{tpu_custom_call.1} parent=11 // pred_check
          %p530 = pneg %p246
        $region46: #{tpu_custom_call.1} parent=11 // pred_check_branch
          %532 = sbr.rel (%p530) target = $region48
        $region47: #{tpu_custom_call.1} parent=11 // pred_region
          %534 = vsyncadd [#allocation7], 0
          %s535 = sshll.u32 %s9, 4
          %s536 = int_to_ptr.hbm [resolvable:$true] %s535
          %s537 = sshll.u32 [#allocation6], 4
          %s538 = int_to_ptr.vmem [resolvable:$true] %s537
          %543 = dma.hbm_to_vmem [thread:$0]  %s536, 512, %s538, [#allocation7], 64, 64, 4
        $region48: #{tpu_custom_call.1} parent=11 // pred_fallthru
          _
        // Predicated region
        $region49: #{tpu_custom_call.1} parent=11 // pred_check
          %p544 = pneg %p267
        $region50: #{tpu_custom_call.1} parent=11 // pred_check_branch
          %546 = sbr.rel (%p544) target = $region52
        $region51: #{tpu_custom_call.1} parent=11 // pred_region
          _
        $region52: #{tpu_custom_call.1} parent=11 // pred_fallthru
          _
        // Predicated region
        $region53: #{tpu_custom_call.1} parent=11 // pred_check
          %p547 = pneg %p288
        $region54: #{tpu_custom_call.1} parent=11 // pred_check_branch
          %549 = sbr.rel (%p547) target = $region56
        $region55: #{tpu_custom_call.1} parent=11 // pred_region
          _
        $region56: #{tpu_custom_call.1} parent=11 // pred_fallthru
          _
        // Predicated region
        $region57: #{tpu_custom_call.1} parent=11 // pred_check
          %p550 = pneg %p309
        $region58: #{tpu_custom_call.1} parent=11 // pred_check_branch
          %552 = sbr.rel (%p550) target = $region60
        $region59: #{tpu_custom_call.1} parent=11 // pred_region
          _
        $region60: #{tpu_custom_call.1} parent=11 // pred_fallthru
          _
        // Predicated region
        $region61: #{tpu_custom_call.1} parent=11 // pred_check
          %p553 = pneg %p330
        $region62: #{tpu_custom_call.1} parent=11 // pred_check_branch
          %555 = sbr.rel (%p553) target = $region64
        $region63: #{tpu_custom_call.1} parent=11 // pred_region
          _
        $region64: #{tpu_custom_call.1} parent=11 // pred_fallthru
          _
        // Predicated region
        $region65: #{tpu_custom_call.1} parent=11 // pred_check
          %p556 = pneg %p351
        $region66: #{tpu_custom_call.1} parent=11 // pred_check_branch
          %558 = sbr.rel (%p556) target = $region68
        $region67: #{tpu_custom_call.1} parent=11 // pred_region
          _
        $region68: #{tpu_custom_call.1} parent=11 // pred_fallthru
          _
        // Predicated region
        $region69: #{tpu_custom_call.1} parent=11 // pred_check
          %p559 = pneg %p372
        $region70: #{tpu_custom_call.1} parent=11 // pred_check_branch
          %561 = sbr.rel (%p559) target = $region72
        $region71: #{tpu_custom_call.1} parent=11 // pred_region
          %563 = vsyncadd [#allocation7], 0
          %s564 = sshll.u32 %s15, 4
          %s565 = int_to_ptr.hbm [resolvable:$true] %s564
          %s566 = sshll.u32 [#allocation8], 4
          %s567 = int_to_ptr.vmem [resolvable:$true] %s566
          %572 = dma.hbm_to_vmem [thread:$0]  %s565, 512, %s567, [#allocation7], 128, 128, 8
        $region72: #{tpu_custom_call.1} parent=11 // pred_fallthru
          _
        // Predicated region
        $region73: #{tpu_custom_call.1} parent=11 // pred_check
          %p573 = pneg %p393
        $region74: #{tpu_custom_call.1} parent=11 // pred_check_branch
          %575 = sbr.rel (%p573) target = $region76
        $region75: #{tpu_custom_call.1} parent=11 // pred_region
          _
        $region76: #{tpu_custom_call.1} parent=11 // pred_fallthru
          _
        // Predicated region
        $region77: #{tpu_custom_call.1} parent=11 // pred_check
          %p576 = pneg %p414
        $region78: #{tpu_custom_call.1} parent=11 // pred_check_branch
          %578 = sbr.rel (%p576) target = $region80
        $region79: #{tpu_custom_call.1} parent=11 // pred_region
          %580 = vsyncadd [#allocation10], 0
          %s581 = sshll.u32 %s17, 4
          %s582 = int_to_ptr.hbm [resolvable:$true] %s581
          %s583 = sshll.u32 [#allocation9], 4
          %s584 = int_to_ptr.vmem [resolvable:$true] %s583
          %589 = dma.hbm_to_vmem [thread:$0]  %s582, 2048, %s584, [#allocation10], 256, 256, 16
        $region80: #{tpu_custom_call.1} parent=11 // pred_fallthru
          _
        // Predicated region
        $region81: #{tpu_custom_call.1} parent=11 // pred_check
          %p590 = pneg %p435
        $region82: #{tpu_custom_call.1} parent=11 // pred_check_branch
          %592 = sbr.rel (%p590) target = $region84
        $region83: #{tpu_custom_call.1} parent=11 // pred_region
          _
        $region84: #{tpu_custom_call.1} parent=11 // pred_fallthru
          _
        // Predicated region
        $region85: #{tpu_custom_call.1} parent=11 // pred_check
          %p593 = pneg %p456
        $region86: #{tpu_custom_call.1} parent=11 // pred_check_branch
          %595 = sbr.rel (%p593) target = $region88
        $region87: #{tpu_custom_call.1} parent=11 // pred_region
          _
        $region88: #{tpu_custom_call.1} parent=11 // pred_fallthru
          _
      $region12: #{tpu_custom_call.1} parent=5 // pred_fallthru
        _
      %p596 = scmp.lt.s32.totalorder %s31, 2
      // Predicated region
      $region89: #{tpu_custom_call.1} parent=5 // pred_check
        %p597 = pneg %p596
      $region90: #{tpu_custom_call.1} parent=5 // pred_check_branch
        %599 = sbr.rel (%p597) target = $region92
      $region91: #{tpu_custom_call.1} parent=5 // pred_region
        // Predicated region
        $region93: #{tpu_custom_call.1} parent=91 // pred_check
          %p600 = pneg %p51
        $region94: #{tpu_custom_call.1} parent=91 // pred_check_branch
          %602 = sbr.rel (%p600) target = $region96
        $region95: #{tpu_custom_call.1} parent=91 // pred_region
          %p603 = scmp.lt.s32.totalorder %s31, 1
          %s604 = scalar_select %p603, %s31, 1
          %s605 = smul.addr %s604, 8
          %s606 = scalar_lea.vmem %s0, %s605
        $region96: #{tpu_custom_call.1} parent=91 // pred_fallthru
          _
      $region92: #{tpu_custom_call.1} parent=5 // pred_fallthru
        _
      %p607 = scmp.le.s32.totalorder 1, %s31
      %p608 = scmp.lt.s32.totalorder %s31, 3
      %p609 = pnand %p607, %p608
      %p610 = pneg %p609
      // Predicated region
      $region97: #{tpu_custom_call.1} parent=5 // pred_check
        _
      $region98: #{tpu_custom_call.1} parent=5 // pred_check_branch
        %612 = sbr.rel (%p609) target = $region100
      $region99: #{tpu_custom_call.1} parent=5 // pred_region
        %s613 = ssub.s32 %s31, 1
        // Predicated region
        $region101: #{tpu_custom_call.1} parent=99 // pred_check
          %p614 = pneg %p78
        $region102: #{tpu_custom_call.1} parent=99 // pred_check_branch
          %616 = sbr.rel (%p614) target = $region104
        $region103: #{tpu_custom_call.1} parent=99 // pred_region
          %618 = dma.done [#allocation5], 16
        $region104: #{tpu_custom_call.1} parent=99 // pred_fallthru
          _
        // Predicated region
        $region105: #{tpu_custom_call.1} parent=99 // pred_check
          %p619 = pneg %p246
        $region106: #{tpu_custom_call.1} parent=99 // pred_check_branch
          %621 = sbr.rel (%p619) target = $region108
        $region107: #{tpu_custom_call.1} parent=99 // pred_region
          %623 = dma.done [#allocation7], 512
        $region108: #{tpu_custom_call.1} parent=99 // pred_fallthru
          _
        // Predicated region
        $region109: #{tpu_custom_call.1} parent=99 // pred_check
          %p624 = pneg %p372
        $region110: #{tpu_custom_call.1} parent=99 // pred_check_branch
          %626 = sbr.rel (%p624) target = $region112
        $region111: #{tpu_custom_call.1} parent=99 // pred_region
          %628 = dma.done [#allocation7], 512
        $region112: #{tpu_custom_call.1} parent=99 // pred_fallthru
          _
        // Predicated region
        $region113: #{tpu_custom_call.1} parent=99 // pred_check
          %p629 = pneg %p414
        $region114: #{tpu_custom_call.1} parent=99 // pred_check_branch
          %631 = sbr.rel (%p629) target = $region116
        $region115: #{tpu_custom_call.1} parent=99 // pred_region
          %633 = dma.done [#allocation10], 2048
        $region116: #{tpu_custom_call.1} parent=99 // pred_fallthru
          _
        %p634 = scmp.lt.s32.totalorder %s36, 1
        %s635 = scalar_select %p634, %s36, 1
        %s636 = smul.addr %s635, 8
        %s637 = scalar_lea.vmem %s0, %s636
        %p638 = pneg %p57
        %p639 = pneg %p54
        %p640 = pneg %p78
        %p641 = pneg %p75
        %p642 = pneg %p99
        %p643 = pneg %p96
        %p644 = pneg %p120
        %p645 = pneg %p117
        %p646 = pneg %p141
        %p647 = pneg %p138
        %p648 = pneg %p162
        %p649 = pneg %p159
        %p650 = pneg %p183
        %p651 = pneg %p180
        %p652 = pneg %p204
        %p653 = pneg %p201
        %p654 = pneg %p225
        %p655 = pneg %p222
        %p656 = pneg %p246
        %p657 = pneg %p243
        %p658 = pneg %p267
        %p659 = pneg %p264
        %p660 = pneg %p288
        %p661 = pneg %p285
        %p662 = pneg %p309
        %p663 = pneg %p306
        %p664 = pneg %p330
        %p665 = pneg %p327
        %p666 = pneg %p351
        %p667 = pneg %p348
        %p668 = pneg %p372
        %p669 = pneg %p369
        %p670 = pneg %p393
        %p671 = pneg %p390
        %p672 = pneg %p414
        %p673 = pneg %p411
        %p674 = pneg %p435
        %p675 = pneg %p432
        %p676 = pneg %p456
        %p677 = pneg %p453
        %p678 = pneg %p482
        %p679 = pneg %p479
        %p680 = scmp.lt.s32.totalorder %s36, 1
        %s681 = scalar_select %p680, %s36, 1
        %s682 = scalar_lea.vmem %s20, %s681
        %p683 = scmp.lt.s32.totalorder %s36, 1
        %s684 = scalar_select %p683, %s36, 1
        %s685 = smul.addr %s684, 8
        %s686 = scalar_lea.vmem %s0, %s685
        %p687 = scmp.lt.s32.totalorder %s36, 1
        %s688 = scalar_select %p687, %s36, 1
        %s689 = scalar_lea.vmem %s20, %s688
        %v691 = vld [vmem:[%s686] sm:$0xff]
        %v692 = vld [vmem:[#allocation4] sm:$0x1]
        %694 = vset.pattern.permute.xlu0 0
        %695 = vperm.xlu0 %694, %v691
        %v696 = vpop.permute.xlu0 %695
        %v699 = vperm.slane %v692, 0
        %v701 = vmul.f32 %v696, %v699
        %v702 = vld [vmem:[%s2] sm:$0x1]
        %v704 = vperm.slane %v702, 0
        %v706 = vadd.f32 %v701, %v704
        %v707 = vld [vmem:[%s3] sm:$0xf]
        %v708 = vld [vmem:[%s3 + $0x4] sm:$0xf]
        %v709 = vld [vmem:[%s3 + $0x8] sm:$0xf]
        %v710 = vld [vmem:[%s3 + $0xc] sm:$0xf]
        %v711 = vpack.c.bf16 %v706, %v706
        %v712 = vld [vmem:[%s4] sm:$0x1]
        %v714 = vperm.slane %v712, 0
        %v720 = vunpack.c.l.b16 %v707
        %v721 = vunpack.c.l.b16 %v708
        %v722 = vunpack.c.l.b16 %v709
        %v723 = vunpack.c.l.b16 %v710
        %v724 = vpack.c.b16 %v721, %v720
        %v725 = vpack.c.b16 %v723, %v722
        %vm728 = vcmask 261120
        %v730 = vsel %vm728, %v711, 0
        %732 = vmatpush.bf16.msra.mxu0 0
        %733 = vmatpush.bf16.msra.mxu0 0
        %734 = vmatpush.bf16.msra.mxu0 0
        %735 = vmatpush.bf16.msra.mxu0 0
        %736 = vmatpush.bf16.msra.mxu0 0
        %737 = vmatpush.bf16.msra.mxu0 0
        %738 = vmatpush.bf16.msra.mxu0 %v725
        %739 = vmatpush.bf16.msra.mxu0 %v724
        %740 = vmatmul.bf16.gmra.mxu0 %v730
        %v741 = vpop.f32.mrf.mxu0
        %v742 = vadd.f32 %v714, %v741
        %v743 = vpop.f32.mrf.mxu0
        %744 = vdwg.mxu0
        %v745 = vld [vmem:[%s5] sm:$0xff]
        %v746 = vld [vmem:[%s5 + $0x8] sm:$0xff]
        %v747 = vld [vmem:[%s5 + $0x10] sm:$0xff]
        %v748 = vld [vmem:[%s5 + $0x18] sm:$0xff]
        %750 = vrot.lane.b32.xlu0 %v742, 96
        %v751 = vpop.permute.xlu0 %750
        %vm752 = vcmask 64512
        %v753 = vsel %vm752, %v742, 0
        %v755 = vsel %vm752, %v751, 0
        %757 = vmatpush.xpose.msra.mxu0 0.0
        %758 = vmatpush.xpose.msra.mxu0 0.0
        %759 = vmatpush.xpose.msra.mxu0 0.0
        %760 = vmatpush.xpose.msra.mxu0 0.0
        %761 = vmatpush.xpose.msra.mxu0 0.0
        %762 = vmatpush.xpose.msra.mxu0 0.0
        %763 = vmatpush.xpose.msra.mxu0 0.0
        %764 = vmatpush.xpose.msra.mxu0 0.0
        %765 = vmatpush.xpose.msra.mxu0 0.0
        %766 = vmatpush.xpose.msra.mxu0 0.0
        %767 = vmatpush.xpose.msra.mxu0 0.0
        %768 = vmatpush.xpose.msra.mxu0 0.0
        %769 = vmatpush.xpose.msra.mxu0 0.0
        %770 = vmatpush.xpose.msra.mxu0 0.0
        %771 = vmatpush.xpose.msra.mxu0 0.0
        %772 = vmatpush.xpose.msra.mxu0 %v755
        %773 = vmatmul.f32.gmra.mxu0 %v753
        %v774 = vpop.f32.mrf.mxu0
        %v775 = vadd.f32 0.0, %v774
        %776 = vdwg.mxu0
        %v777 = vmul.f32 %v775, 0.35355338
        %v778 = vsel %vm752, %v777, -inf
        %779 = vmax.xlane.f32.xlu0 %v778
        %v780 = vpop.xlane.xlu0 %779
        %v781 = vsub.f32 %v777, %v780
        %v782 = vmul.f32 %v781, 1.442695
        %v783 = vpow.pop %v782
        %v784 = vsel %vm752, %v783, 0.0
        %785 = vadd.xlane.f32.xlu0 %v784
        %v786 = vpop.xlane.xlu0 %785
        %v787 = vrcp.pop %v786
        %v788 = vmul.f32 %v783, %v787
        %789 = vrot.lane.b32.xlu0 %v742, 64
        %v790 = vpop.permute.xlu0 %789
        %v793 = vsel %vm752, %v788, 0
        %795 = vmatpush.msra.mxu0 0.0
        %796 = vmatpush.msra.mxu0 0.0
        %797 = vmatpush.msra.mxu0 0.0
        %798 = vmatpush.msra.mxu0 0.0
        %799 = vmatpush.msra.mxu0 0.0
        %800 = vmatpush.msra.mxu0 0.0
        %801 = vmatpush.msra.mxu0 0.0
        %802 = vmatpush.msra.mxu0 0.0
        %803 = vmatpush.msra.mxu0 0.0
        %804 = vmatpush.msra.mxu0 0.0
        %805 = vmatpush.msra.mxu0 0.0
        %806 = vmatpush.msra.mxu0 0.0
        %807 = vmatpush.msra.mxu0 0.0
        %808 = vmatpush.msra.mxu0 0.0
        %809 = vmatpush.msra.mxu0 0.0
        %810 = vmatpush.msra.mxu0 %v790
        %811 = vmatmul.f32.gmra.mxu0 %v793
        %v812 = vpop.f32.mrf.mxu0
        %v813 = vadd.f32 0.0, %v812
        %814 = vdwg.mxu0
        %815 = vrot.lane.b32.xlu0 %v742, 120
        %v816 = vpop.permute.xlu0 %815
        %817 = vrot.lane.b32.xlu0 %v742, 88
        %v818 = vpop.permute.xlu0 %817
        %v819 = vsel %vm752, %v816, 0
        %v821 = vsel %vm752, %v818, 0
        %823 = vmatpush.xpose.msra.mxu0 0.0
        %824 = vmatpush.xpose.msra.mxu0 0.0
        %825 = vmatpush.xpose.msra.mxu0 0.0
        %826 = vmatpush.xpose.msra.mxu0 0.0
        %827 = vmatpush.xpose.msra.mxu0 0.0
        %828 = vmatpush.xpose.msra.mxu0 0.0
        %829 = vmatpush.xpose.msra.mxu0 0.0
        %830 = vmatpush.xpose.msra.mxu0 0.0
        %831 = vmatpush.xpose.msra.mxu0 0.0
        %832 = vmatpush.xpose.msra.mxu0 0.0
        %833 = vmatpush.xpose.msra.mxu0 0.0
        %834 = vmatpush.xpose.msra.mxu0 0.0
        %835 = vmatpush.xpose.msra.mxu0 0.0
        %836 = vmatpush.xpose.msra.mxu0 0.0
        %837 = vmatpush.xpose.msra.mxu0 0.0
        %838 = vmatpush.xpose.msra.mxu0 %v821
        %839 = vmatmul.f32.gmra.mxu0 %v819
        %v840 = vpop.f32.mrf.mxu0
        %v841 = vadd.f32 0.0, %v840
        %842 = vdwg.mxu0
        %v843 = vmul.f32 %v841, 0.35355338
        %v844 = vsel %vm752, %v843, -inf
        %845 = vmax.xlane.f32.xlu0 %v844
        %v846 = vpop.xlane.xlu0 %845
        %v847 = vsub.f32 %v843, %v846
        %v848 = vmul.f32 %v847, 1.442695
        %v849 = vpow.pop %v848
        %v850 = vsel %vm752, %v849, 0.0
        %851 = vadd.xlane.f32.xlu0 %v850
        %v852 = vpop.xlane.xlu0 %851
        %v853 = vrcp.pop %v852
        %v854 = vmul.f32 %v849, %v853
        %855 = vrot.lane.b32.xlu0 %v742, 56
        %v856 = vpop.permute.xlu0 %855
        %v859 = vsel %vm752, %v854, 0
        %861 = vmatpush.msra.mxu0 0.0
        %862 = vmatpush.msra.mxu0 0.0
        %863 = vmatpush.msra.mxu0 0.0
        %864 = vmatpush.msra.mxu0 0.0
        %865 = vmatpush.msra.mxu0 0.0
        %866 = vmatpush.msra.mxu0 0.0
        %867 = vmatpush.msra.mxu0 0.0
        %868 = vmatpush.msra.mxu0 0.0
        %869 = vmatpush.msra.mxu0 0.0
        %870 = vmatpush.msra.mxu0 0.0
        %871 = vmatpush.msra.mxu0 0.0
        %872 = vmatpush.msra.mxu0 0.0
        %873 = vmatpush.msra.mxu0 0.0
        %874 = vmatpush.msra.mxu0 0.0
        %875 = vmatpush.msra.mxu0 0.0
        %876 = vmatpush.msra.mxu0 %v856
        %877 = vmatmul.f32.gmra.mxu0 %v859
        %v878 = vpop.f32.mrf.mxu0
        %v879 = vadd.f32 0.0, %v878
        %880 = vdwg.mxu0
        %v882 = vsel %vm752, %v879, 0
        %884 = vmatpush.msra.mxu0 0.0
        %885 = vmatpush.msra.mxu0 0.0
        %886 = vmatpush.msra.mxu0 0.0
        %887 = vmatpush.msra.mxu0 0.0
        %888 = vmatpush.msra.mxu0 0.0
        %889 = vmatpush.msra.mxu0 0.0
        %890 = vmatpush.msra.mxu0 0.0
        %891 = vmatpush.msra.mxu0 0.0
        %892 = vmatpush.msra.mxu0 0.0
        %893 = vmatpush.msra.mxu0 0.0
        %894 = vmatpush.msra.mxu0 0.0
        %895 = vmatpush.msra.mxu0 0.0
        %896 = vmatpush.msra.mxu0 0.0
        %897 = vmatpush.msra.mxu0 0.0
        %898 = vmatpush.msra.mxu0 0.0
        %899 = vmatpush.msra.mxu0 %v746
        %900 = vmatmul.f32.gmra.mxu0 %v882
        %v901 = vpop.f32.mrf.mxu0
        %v902 = vadd.f32 0.0, %v901
        %903 = vdwg.mxu0
        %v905 = vsel %vm752, %v813, 0
        %907 = vmatpush.msra.mxu0 0.0
        %908 = vmatpush.msra.mxu0 0.0
        %909 = vmatpush.msra.mxu0 0.0
        %910 = vmatpush.msra.mxu0 0.0
        %911 = vmatpush.msra.mxu0 0.0
        %912 = vmatpush.msra.mxu0 0.0
        %913 = vmatpush.msra.mxu0 0.0
        %914 = vmatpush.msra.mxu0 0.0
        %915 = vmatpush.msra.mxu0 0.0
        %916 = vmatpush.msra.mxu0 0.0
        %917 = vmatpush.msra.mxu0 0.0
        %918 = vmatpush.msra.mxu0 0.0
        %919 = vmatpush.msra.mxu0 0.0
        %920 = vmatpush.msra.mxu0 0.0
        %921 = vmatpush.msra.mxu0 0.0
        %922 = vmatpush.msra.mxu0 %v745
        %923 = vmatmul.f32.gmra.mxu0 %v905
        %v924 = vpop.f32.mrf.mxu0
        %v925 = vadd.f32 %v902, %v924
        %926 = vdwg.mxu0
        %927 = vrot.lane.b32.xlu0 %v742, 112
        %v928 = vpop.permute.xlu0 %927
        %929 = vrot.lane.b32.xlu0 %v742, 80
        %v930 = vpop.permute.xlu0 %929
        %v931 = vsel %vm752, %v928, 0
        %v933 = vsel %vm752, %v930, 0
        %935 = vmatpush.xpose.msra.mxu0 0.0
        %936 = vmatpush.xpose.msra.mxu0 0.0
        %937 = vmatpush.xpose.msra.mxu0 0.0
        %938 = vmatpush.xpose.msra.mxu0 0.0
        %939 = vmatpush.xpose.msra.mxu0 0.0
        %940 = vmatpush.xpose.msra.mxu0 0.0
        %941 = vmatpush.xpose.msra.mxu0 0.0
        %942 = vmatpush.xpose.msra.mxu0 0.0
        %943 = vmatpush.xpose.msra.mxu0 0.0
        %944 = vmatpush.xpose.msra.mxu0 0.0
        %945 = vmatpush.xpose.msra.mxu0 0.0
        %946 = vmatpush.xpose.msra.mxu0 0.0
        %947 = vmatpush.xpose.msra.mxu0 0.0
        %948 = vmatpush.xpose.msra.mxu0 0.0
        %949 = vmatpush.xpose.msra.mxu0 0.0
        %950 = vmatpush.xpose.msra.mxu0 %v933
        %951 = vmatmul.f32.gmra.mxu0 %v931
        %v952 = vpop.f32.mrf.mxu0
        %v953 = vadd.f32 0.0, %v952
        %954 = vdwg.mxu0
        %v955 = vmul.f32 %v953, 0.35355338
        %v956 = vsel %vm752, %v955, -inf
        %957 = vmax.xlane.f32.xlu0 %v956
        %v958 = vpop.xlane.xlu0 %957
        %v959 = vsub.f32 %v955, %v958
        %v960 = vmul.f32 %v959, 1.442695
        %v961 = vpow.pop %v960
        %v962 = vsel %vm752, %v961, 0.0
        %963 = vadd.xlane.f32.xlu0 %v962
        %v964 = vpop.xlane.xlu0 %963
        %v965 = vrcp.pop %v964
        %v966 = vmul.f32 %v961, %v965
        %967 = vrot.lane.b32.xlu0 %v742, 48
        %v968 = vpop.permute.xlu0 %967
        %v971 = vsel %vm752, %v966, 0
        %973 = vmatpush.msra.mxu0 0.0
        %974 = vmatpush.msra.mxu0 0.0
        %975 = vmatpush.msra.mxu0 0.0
        %976 = vmatpush.msra.mxu0 0.0
        %977 = vmatpush.msra.mxu0 0.0
        %978 = vmatpush.msra.mxu0 0.0
        %979 = vmatpush.msra.mxu0 0.0
        %980 = vmatpush.msra.mxu0 0.0
        %981 = vmatpush.msra.mxu0 0.0
        %982 = vmatpush.msra.mxu0 0.0
        %983 = vmatpush.msra.mxu0 0.0
        %984 = vmatpush.msra.mxu0 0.0
        %985 = vmatpush.msra.mxu0 0.0
        %986 = vmatpush.msra.mxu0 0.0
        %987 = vmatpush.msra.mxu0 0.0
        %988 = vmatpush.msra.mxu0 %v968
        %989 = vmatmul.f32.gmra.mxu0 %v971
        %v990 = vpop.f32.mrf.mxu0
        %v991 = vadd.f32 0.0, %v990
        %992 = vdwg.mxu0
        %v994 = vsel %vm752, %v991, 0
        %996 = vmatpush.msra.mxu0 0.0
        %997 = vmatpush.msra.mxu0 0.0
        %998 = vmatpush.msra.mxu0 0.0
        %999 = vmatpush.msra.mxu0 0.0
        %1000 = vmatpush.msra.mxu0 0.0
        %1001 = vmatpush.msra.mxu0 0.0
        %1002 = vmatpush.msra.mxu0 0.0
        %1003 = vmatpush.msra.mxu0 0.0
        %1004 = vmatpush.msra.mxu0 0.0
        %1005 = vmatpush.msra.mxu0 0.0
        %1006 = vmatpush.msra.mxu0 0.0
        %1007 = vmatpush.msra.mxu0 0.0
        %1008 = vmatpush.msra.mxu0 0.0
        %1009 = vmatpush.msra.mxu0 0.0
        %1010 = vmatpush.msra.mxu0 0.0
        %1011 = vmatpush.msra.mxu0 %v747
        %1012 = vmatmul.f32.gmra.mxu0 %v994
        %v1013 = vpop.f32.mrf.mxu0
        %v1014 = vadd.f32 0.0, %v1013
        %1015 = vdwg.mxu0
        %v1016 = vadd.f32 %v925, %v1014
        %1017 = vrot.lane.b32.xlu0 %v742, 104
        %v1018 = vpop.permute.xlu0 %1017
        %1019 = vrot.lane.b32.xlu0 %v742, 72
        %v1020 = vpop.permute.xlu0 %1019
        %v1021 = vsel %vm752, %v1018, 0
        %v1023 = vsel %vm752, %v1020, 0
        %1025 = vmatpush.xpose.msra.mxu0 0.0
        %1026 = vmatpush.xpose.msra.mxu0 0.0
        %1027 = vmatpush.xpose.msra.mxu0 0.0
        %1028 = vmatpush.xpose.msra.mxu0 0.0
        %1029 = vmatpush.xpose.msra.mxu0 0.0
        %1030 = vmatpush.xpose.msra.mxu0 0.0
        %1031 = vmatpush.xpose.msra.mxu0 0.0
        %1032 = vmatpush.xpose.msra.mxu0 0.0
        %1033 = vmatpush.xpose.msra.mxu0 0.0
        %1034 = vmatpush.xpose.msra.mxu0 0.0
        %1035 = vmatpush.xpose.msra.mxu0 0.0
        %1036 = vmatpush.xpose.msra.mxu0 0.0
        %1037 = vmatpush.xpose.msra.mxu0 0.0
        %1038 = vmatpush.xpose.msra.mxu0 0.0
        %1039 = vmatpush.xpose.msra.mxu0 0.0
        %1040 = vmatpush.xpose.msra.mxu0 %v1023
        %1041 = vmatmul.f32.gmra.mxu0 %v1021
        %v1042 = vpop.f32.mrf.mxu0
        %v1043 = vadd.f32 0.0, %v1042
        %1044 = vdwg.mxu0
        %v1045 = vmul.f32 %v1043, 0.35355338
        %v1046 = vsel %vm752, %v1045, -inf
        %1047 = vmax.xlane.f32.xlu0 %v1046
        %v1048 = vpop.xlane.xlu0 %1047
        %v1049 = vsub.f32 %v1045, %v1048
        %v1050 = vmul.f32 %v1049, 1.442695
        %v1051 = vpow.pop %v1050
        %v1052 = vsel %vm752, %v1051, 0.0
        %1053 = vadd.xlane.f32.xlu0 %v1052
        %v1054 = vpop.xlane.xlu0 %1053
        %v1055 = vrcp.pop %v1054
        %v1056 = vmul.f32 %v1051, %v1055
        %1057 = vrot.lane.b32.xlu0 %v742, 40
        %v1058 = vpop.permute.xlu0 %1057
        %v1061 = vsel %vm752, %v1056, 0
        %1063 = vmatpush.msra.mxu0 0.0
        %1064 = vmatpush.msra.mxu0 0.0
        %1065 = vmatpush.msra.mxu0 0.0
        %1066 = vmatpush.msra.mxu0 0.0
        %1067 = vmatpush.msra.mxu0 0.0
        %1068 = vmatpush.msra.mxu0 0.0
        %1069 = vmatpush.msra.mxu0 0.0
        %1070 = vmatpush.msra.mxu0 0.0
        %1071 = vmatpush.msra.mxu0 0.0
        %1072 = vmatpush.msra.mxu0 0.0
        %1073 = vmatpush.msra.mxu0 0.0
        %1074 = vmatpush.msra.mxu0 0.0
        %1075 = vmatpush.msra.mxu0 0.0
        %1076 = vmatpush.msra.mxu0 0.0
        %1077 = vmatpush.msra.mxu0 0.0
        %1078 = vmatpush.msra.mxu0 %v1058
        %1079 = vmatmul.f32.gmra.mxu0 %v1061
        %v1080 = vpop.f32.mrf.mxu0
        %v1081 = vadd.f32 0.0, %v1080
        %1082 = vdwg.mxu0
        %v1084 = vsel %vm752, %v1081, 0
        %1086 = vmatpush.msra.mxu0 0.0
        %1087 = vmatpush.msra.mxu0 0.0
        %1088 = vmatpush.msra.mxu0 0.0
        %1089 = vmatpush.msra.mxu0 0.0
        %1090 = vmatpush.msra.mxu0 0.0
        %1091 = vmatpush.msra.mxu0 0.0
        %1092 = vmatpush.msra.mxu0 0.0
        %1093 = vmatpush.msra.mxu0 0.0
        %1094 = vmatpush.msra.mxu0 0.0
        %1095 = vmatpush.msra.mxu0 0.0
        %1096 = vmatpush.msra.mxu0 0.0
        %1097 = vmatpush.msra.mxu0 0.0
        %1098 = vmatpush.msra.mxu0 0.0
        %1099 = vmatpush.msra.mxu0 0.0
        %1100 = vmatpush.msra.mxu0 0.0
        %1101 = vmatpush.msra.mxu0 %v748
        %1102 = vmatmul.f32.gmra.mxu0 %v1084
        %v1103 = vpop.f32.mrf.mxu0
        %v1104 = vadd.f32 0.0, %v1103
        %1105 = vdwg.mxu0
        %v1106 = vadd.f32 %v1016, %v1104
        %v1107 = vld [vmem:[%s6] sm:$0x1]
        %v1109 = vperm.slane %v1107, 0
        %v1111 = vadd.f32 %v1106, %v1109
        %v1112 = vadd.f32 %v706, %v1111
        %v1113 = vld [vmem:[%s7] sm:$0x1]
        %v1114 = vld [vmem:[%s8] sm:$0x1]
        %v1115 = vsel %vm728, %v1112, 0.0
        %1116 = vadd.xlane.f32.xlu0 %v1115
        %v1117 = vpop.xlane.xlu0 %1116
        %v1118 = vrcp.pop 32.0
        %v1119 = vmul.f32 32.0, %v1118
        %v1120 = vsub.f32 1.0, %v1119
        %v1121 = vmul.f32 %v1118, %v1120
        %v1122 = vadd.f32 %v1118, %v1121
        %vm1123 = vweird.f32 %v1118
        %v1124 = vsel %vm1123, %v1118, %v1122
        %v1125 = vmul.f32 %v1117, %v1124
        %v1126 = vsub.f32 %v1112, %v1125
        %v1127 = vmul.f32 %v1126, %v1126
        %v1128 = vsel %vm728, %v1127, 0.0
        %1129 = vadd.xlane.f32.xlu0 %v1128
        %v1130 = vpop.xlane.xlu0 %1129
        %v1131 = vmul.f32 %v1130, %v1124
        %v1132 = vadd.f32 %v1131, 1e-05
        %v1133 = vrsqrt.pop %v1132
        %v1134 = vmul.f32 %v1133, %v1132
        %v1135 = vmul.f32 %v1134, %v1133
        %v1136 = vmul.f32 0.5, %v1135
        %v1137 = vsub.f32 1.5, %v1136
        %v1138 = vmul.f32 %v1133, %v1137
        %vm1139 = vweird.f32 %v1132
        %vm1140 = vweird.f32 %v1133
        %vm1141 = vmor %vm1139, %vm1140
        %v1142 = vsel %vm1141, %v1133, %v1138
        %v1143 = vmul.f32 %v1126, %v1142
        %v1145 = vperm.slane %v1113, 0
        %v1147 = vmul.f32 %v1143, %v1145
        %v1149 = vperm.slane %v1114, 0
        %v1151 = vadd.f32 %v1147, %v1149
        %v1152 = vld [vmem:[#allocation6] sm:$0xf]
        %v1153 = vld [vmem:[#allocation6 + $0x4] sm:$0xf]
        %v1154 = vld [vmem:[#allocation6 + $0x8] sm:$0xf]
        %v1155 = vld [vmem:[#allocation6 + $0xc] sm:$0xf]
        %v1156 = vpack.c.bf16 %v1151, %v1151
        %v1157 = vld [vmem:[%s10] sm:$0x1]
        %v1159 = vperm.slane %v1157, 0
        %v1165 = vunpack.c.l.b16 %v1152
        %v1166 = vunpack.c.l.b16 %v1153
        %v1167 = vunpack.c.l.b16 %v1154
        %v1168 = vunpack.c.l.b16 %v1155
        %v1169 = vpack.c.b16 %v1166, %v1165
        %v1170 = vpack.c.b16 %v1168, %v1167
        %v1174 = vsel %vm728, %v1156, 0
        %1176 = vmatpush.bf16.msra.mxu0 0
        %1177 = vmatpush.bf16.msra.mxu0 0
        %1178 = vmatpush.bf16.msra.mxu0 0
        %1179 = vmatpush.bf16.msra.mxu0 0
        %1180 = vmatpush.bf16.msra.mxu0 0
        %1181 = vmatpush.bf16.msra.mxu0 0
        %1182 = vmatpush.bf16.msra.mxu0 %v1170
        %1183 = vmatpush.bf16.msra.mxu0 %v1169
        %1184 = vmatmul.bf16.gmra.mxu0 %v1174
        %v1185 = vpop.f32.mrf.mxu0
        %v1186 = vadd.f32 %v1159, %v1185
        %v1187 = vpop.f32.mrf.mxu0
        %1188 = vdwg.mxu0
        %v1189 = vmax.f32 %v1186, 0.0
        %v1190 = vld [vmem:[%s11] sm:$0xf]
        %v1191 = vld [vmem:[%s11 + $0x4] sm:$0xf]
        %v1192 = vld [vmem:[%s11 + $0x8] sm:$0xf]
        %v1193 = vld [vmem:[%s11 + $0xc] sm:$0xf]
        %v1194 = vld [vmem:[%s11 + $0x10] sm:$0xf]
        %v1195 = vld [vmem:[%s11 + $0x14] sm:$0xf]
        %v1196 = vld [vmem:[%s11 + $0x18] sm:$0xf]
        %v1197 = vld [vmem:[%s11 + $0x1c] sm:$0xf]
        %v1198 = vpack.c.bf16 %v1189, %v1189
        %v1199 = vld [vmem:[%s12] sm:$0x1]
        %v1201 = vperm.slane %v1199, 0
        %v1211 = vunpack.c.l.b16 %v1190
        %v1212 = vunpack.c.l.b16 %v1191
        %v1213 = vunpack.c.l.b16 %v1192
        %v1214 = vunpack.c.l.b16 %v1193
        %v1215 = vunpack.c.l.b16 %v1194
        %v1216 = vunpack.c.l.b16 %v1195
        %v1217 = vunpack.c.l.b16 %v1196
        %v1218 = vunpack.c.l.b16 %v1197
        %v1219 = vpack.c.b16 %v1212, %v1211
        %v1220 = vpack.c.b16 %v1214, %v1213
        %v1221 = vpack.c.b16 %v1216, %v1215
        %v1222 = vpack.c.b16 %v1218, %v1217
        %vm1227 = vcmask 523264
        %v1229 = vsel %vm1227, %v1198, 0
        %1231 = vmatpush.bf16.msra.mxu0 0
        %1232 = vmatpush.bf16.msra.mxu0 0
        %1233 = vmatpush.bf16.msra.mxu0 0
        %1234 = vmatpush.bf16.msra.mxu0 0
        %1235 = vmatpush.bf16.msra.mxu0 %v1222
        %1236 = vmatpush.bf16.msra.mxu0 %v1221
        %1237 = vmatpush.bf16.msra.mxu0 %v1220
        %1238 = vmatpush.bf16.msra.mxu0 %v1219
        %1239 = vmatmul.bf16.gmra.mxu0 %v1229
        %v1240 = vpop.f32.mrf.mxu0
        %v1241 = vadd.f32 %v1201, %v1240
        %v1242 = vpop.f32.mrf.mxu0
        %1243 = vdwg.mxu0
        %v1244 = vadd.f32 %v1151, %v1241
        %v1245 = vld [vmem:[%s13] sm:$0x1]
        %v1246 = vld [vmem:[%s14] sm:$0x1]
        %v1247 = vsel %vm728, %v1244, 0.0
        %1248 = vadd.xlane.f32.xlu0 %v1247
        %v1249 = vpop.xlane.xlu0 %1248
        %v1250 = vmul.f32 %v1249, %v1124
        %v1251 = vsub.f32 %v1244, %v1250
        %v1252 = vmul.f32 %v1251, %v1251
        %v1253 = vsel %vm728, %v1252, 0.0
        %1254 = vadd.xlane.f32.xlu0 %v1253
        %v1255 = vpop.xlane.xlu0 %1254
        %v1256 = vmul.f32 %v1255, %v1124
        %v1257 = vadd.f32 %v1256, 1e-05
        %v1258 = vrsqrt.pop %v1257
        %v1259 = vmul.f32 %v1258, %v1257
        %v1260 = vmul.f32 %v1259, %v1258
        %v1261 = vmul.f32 0.5, %v1260
        %v1262 = vsub.f32 1.5, %v1261
        %v1263 = vmul.f32 %v1258, %v1262
        %vm1264 = vweird.f32 %v1257
        %vm1265 = vweird.f32 %v1258
        %vm1266 = vmor %vm1264, %vm1265
        %v1267 = vsel %vm1266, %v1258, %v1263
        %v1268 = vmul.f32 %v1251, %v1267
        %v1270 = vperm.slane %v1245, 0
        %v1272 = vmul.f32 %v1268, %v1270
        %v1274 = vperm.slane %v1246, 0
        %v1276 = vadd.f32 %v1272, %v1274
        %s1277 = scalar_lea.vmem %s3, 16
        %v1278 = vld [vmem:[%s1277] sm:$0xf]
        %v1279 = vld [vmem:[%s1277 + $0x4] sm:$0xf]
        %v1280 = vld [vmem:[%s1277 + $0x8] sm:$0xf]
        %v1281 = vld [vmem:[%s1277 + $0xc] sm:$0xf]
        %v1282 = vpack.c.bf16 %v1276, %v1276
        %s1283 = scalar_lea.vmem %s4, 1
        %v1284 = vld [vmem:[%s1283] sm:$0x1]
        %v1286 = vperm.slane %v1284, 0
        %v1292 = vunpack.c.l.b16 %v1278
        %v1293 = vunpack.c.l.b16 %v1279
        %v1294 = vunpack.c.l.b16 %v1280
        %v1295 = vunpack.c.l.b16 %v1281
        %v1296 = vpack.c.b16 %v1293, %v1292
        %v1297 = vpack.c.b16 %v1295, %v1294
        %v1301 = vsel %vm728, %v1282, 0
        %1303 = vmatpush.bf16.msra.mxu0 0
        %1304 = vmatpush.bf16.msra.mxu0 0
        %1305 = vmatpush.bf16.msra.mxu0 0
        %1306 = vmatpush.bf16.msra.mxu0 0
        %1307 = vmatpush.bf16.msra.mxu0 0
        %1308 = vmatpush.bf16.msra.mxu0 0
        %1309 = vmatpush.bf16.msra.mxu0 %v1297
        %1310 = vmatpush.bf16.msra.mxu0 %v1296
        %1311 = vmatmul.bf16.gmra.mxu0 %v1301
        %v1312 = vpop.f32.mrf.mxu0
        %v1313 = vadd.f32 %v1286, %v1312
        %v1314 = vpop.f32.mrf.mxu0
        %1315 = vdwg.mxu0
        %s1316 = scalar_lea.vmem %s5, 32
        %v1317 = vld [vmem:[%s1316] sm:$0xff]
        %v1318 = vld [vmem:[%s1316 + $0x8] sm:$0xff]
        %v1319 = vld [vmem:[%s1316 + $0x10] sm:$0xff]
        %v1320 = vld [vmem:[%s1316 + $0x18] sm:$0xff]
        %1322 = vrot.lane.b32.xlu0 %v1313, 96
        %v1323 = vpop.permute.xlu0 %1322
        %v1324 = vsel %vm752, %v1313, 0
        %v1326 = vsel %vm752, %v1323, 0
        %1328 = vmatpush.xpose.msra.mxu0 0.0
        %1329 = vmatpush.xpose.msra.mxu0 0.0
        %1330 = vmatpush.xpose.msra.mxu0 0.0
        %1331 = vmatpush.xpose.msra.mxu0 0.0
        %1332 = vmatpush.xpose.msra.mxu0 0.0
        %1333 = vmatpush.xpose.msra.mxu0 0.0
        %1334 = vmatpush.xpose.msra.mxu0 0.0
        %1335 = vmatpush.xpose.msra.mxu0 0.0
        %1336 = vmatpush.xpose.msra.mxu0 0.0
        %1337 = vmatpush.xpose.msra.mxu0 0.0
        %1338 = vmatpush.xpose.msra.mxu0 0.0
        %1339 = vmatpush.xpose.msra.mxu0 0.0
        %1340 = vmatpush.xpose.msra.mxu0 0.0
        %1341 = vmatpush.xpose.msra.mxu0 0.0
        %1342 = vmatpush.xpose.msra.mxu0 0.0
        %1343 = vmatpush.xpose.msra.mxu0 %v1326
        %1344 = vmatmul.f32.gmra.mxu0 %v1324
        %v1345 = vpop.f32.mrf.mxu0
        %v1346 = vadd.f32 0.0, %v1345
        %1347 = vdwg.mxu0
        %v1348 = vmul.f32 %v1346, 0.35355338
        %v1349 = vsel %vm752, %v1348, -inf
        %1350 = vmax.xlane.f32.xlu0 %v1349
        %v1351 = vpop.xlane.xlu0 %1350
        %v1352 = vsub.f32 %v1348, %v1351
        %v1353 = vmul.f32 %v1352, 1.442695
        %v1354 = vpow.pop %v1353
        %v1355 = vsel %vm752, %v1354, 0.0
        %1356 = vadd.xlane.f32.xlu0 %v1355
        %v1357 = vpop.xlane.xlu0 %1356
        %v1358 = vrcp.pop %v1357
        %v1359 = vmul.f32 %v1354, %v1358
        %1360 = vrot.lane.b32.xlu0 %v1313, 64
        %v1361 = vpop.permute.xlu0 %1360
        %v1364 = vsel %vm752, %v1359, 0
        %1366 = vmatpush.msra.mxu0 0.0
        %1367 = vmatpush.msra.mxu0 0.0
        %1368 = vmatpush.msra.mxu0 0.0
        %1369 = vmatpush.msra.mxu0 0.0
        %1370 = vmatpush.msra.mxu0 0.0
        %1371 = vmatpush.msra.mxu0 0.0
        %1372 = vmatpush.msra.mxu0 0.0
        %1373 = vmatpush.msra.mxu0 0.0
        %1374 = vmatpush.msra.mxu0 0.0
        %1375 = vmatpush.msra.mxu0 0.0
        %1376 = vmatpush.msra.mxu0 0.0
        %1377 = vmatpush.msra.mxu0 0.0
        %1378 = vmatpush.msra.mxu0 0.0
        %1379 = vmatpush.msra.mxu0 0.0
        %1380 = vmatpush.msra.mxu0 0.0
        %1381 = vmatpush.msra.mxu0 %v1361
        %1382 = vmatmul.f32.gmra.mxu0 %v1364
        %v1383 = vpop.f32.mrf.mxu0
        %v1384 = vadd.f32 0.0, %v1383
        %1385 = vdwg.mxu0
        %1386 = vrot.lane.b32.xlu0 %v1313, 120
        %v1387 = vpop.permute.xlu0 %1386
        %1388 = vrot.lane.b32.xlu0 %v1313, 88
        %v1389 = vpop.permute.xlu0 %1388
        %v1390 = vsel %vm752, %v1387, 0
        %v1392 = vsel %vm752, %v1389, 0
        %1394 = vmatpush.xpose.msra.mxu0 0.0
        %1395 = vmatpush.xpose.msra.mxu0 0.0
        %1396 = vmatpush.xpose.msra.mxu0 0.0
        %1397 = vmatpush.xpose.msra.mxu0 0.0
        %1398 = vmatpush.xpose.msra.mxu0 0.0
        %1399 = vmatpush.xpose.msra.mxu0 0.0
        %1400 = vmatpush.xpose.msra.mxu0 0.0
        %1401 = vmatpush.xpose.msra.mxu0 0.0
        %1402 = vmatpush.xpose.msra.mxu0 0.0
        %1403 = vmatpush.xpose.msra.mxu0 0.0
        %1404 = vmatpush.xpose.msra.mxu0 0.0
        %1405 = vmatpush.xpose.msra.mxu0 0.0
        %1406 = vmatpush.xpose.msra.mxu0 0.0
        %1407 = vmatpush.xpose.msra.mxu0 0.0
        %1408 = vmatpush.xpose.msra.mxu0 0.0
        %1409 = vmatpush.xpose.msra.mxu0 %v1392
        %1410 = vmatmul.f32.gmra.mxu0 %v1390
        %v1411 = vpop.f32.mrf.mxu0
        %v1412 = vadd.f32 0.0, %v1411
        %1413 = vdwg.mxu0
        %v1414 = vmul.f32 %v1412, 0.35355338
        %v1415 = vsel %vm752, %v1414, -inf
        %1416 = vmax.xlane.f32.xlu0 %v1415
        %v1417 = vpop.xlane.xlu0 %1416
        %v1418 = vsub.f32 %v1414, %v1417
        %v1419 = vmul.f32 %v1418, 1.442695
        %v1420 = vpow.pop %v1419
        %v1421 = vsel %vm752, %v1420, 0.0
        %1422 = vadd.xlane.f32.xlu0 %v1421
        %v1423 = vpop.xlane.xlu0 %1422
        %v1424 = vrcp.pop %v1423
        %v1425 = vmul.f32 %v1420, %v1424
        %1426 = vrot.lane.b32.xlu0 %v1313, 56
        %v1427 = vpop.permute.xlu0 %1426
        %v1430 = vsel %vm752, %v1425, 0
        %1432 = vmatpush.msra.mxu0 0.0
        %1433 = vmatpush.msra.mxu0 0.0
        %1434 = vmatpush.msra.mxu0 0.0
        %1435 = vmatpush.msra.mxu0 0.0
        %1436 = vmatpush.msra.mxu0 0.0
        %1437 = vmatpush.msra.mxu0 0.0
        %1438 = vmatpush.msra.mxu0 0.0
        %1439 = vmatpush.msra.mxu0 0.0
        %1440 = vmatpush.msra.mxu0 0.0
        %1441 = vmatpush.msra.mxu0 0.0
        %1442 = vmatpush.msra.mxu0 0.0
        %1443 = vmatpush.msra.mxu0 0.0
        %1444 = vmatpush.msra.mxu0 0.0
        %1445 = vmatpush.msra.mxu0 0.0
        %1446 = vmatpush.msra.mxu0 0.0
        %1447 = vmatpush.msra.mxu0 %v1427
        %1448 = vmatmul.f32.gmra.mxu0 %v1430
        %v1449 = vpop.f32.mrf.mxu0
        %v1450 = vadd.f32 0.0, %v1449
        %1451 = vdwg.mxu0
        %v1453 = vsel %vm752, %v1450, 0
        %1455 = vmatpush.msra.mxu0 0.0
        %1456 = vmatpush.msra.mxu0 0.0
        %1457 = vmatpush.msra.mxu0 0.0
        %1458 = vmatpush.msra.mxu0 0.0
        %1459 = vmatpush.msra.mxu0 0.0
        %1460 = vmatpush.msra.mxu0 0.0
        %1461 = vmatpush.msra.mxu0 0.0
        %1462 = vmatpush.msra.mxu0 0.0
        %1463 = vmatpush.msra.mxu0 0.0
        %1464 = vmatpush.msra.mxu0 0.0
        %1465 = vmatpush.msra.mxu0 0.0
        %1466 = vmatpush.msra.mxu0 0.0
        %1467 = vmatpush.msra.mxu0 0.0
        %1468 = vmatpush.msra.mxu0 0.0
        %1469 = vmatpush.msra.mxu0 0.0
        %1470 = vmatpush.msra.mxu0 %v1318
        %1471 = vmatmul.f32.gmra.mxu0 %v1453
        %v1472 = vpop.f32.mrf.mxu0
        %v1473 = vadd.f32 0.0, %v1472
        %1474 = vdwg.mxu0
        %v1476 = vsel %vm752, %v1384, 0
        %1478 = vmatpush.msra.mxu0 0.0
        %1479 = vmatpush.msra.mxu0 0.0
        %1480 = vmatpush.msra.mxu0 0.0
        %1481 = vmatpush.msra.mxu0 0.0
        %1482 = vmatpush.msra.mxu0 0.0
        %1483 = vmatpush.msra.mxu0 0.0
        %1484 = vmatpush.msra.mxu0 0.0
        %1485 = vmatpush.msra.mxu0 0.0
        %1486 = vmatpush.msra.mxu0 0.0
        %1487 = vmatpush.msra.mxu0 0.0
        %1488 = vmatpush.msra.mxu0 0.0
        %1489 = vmatpush.msra.mxu0 0.0
        %1490 = vmatpush.msra.mxu0 0.0
        %1491 = vmatpush.msra.mxu0 0.0
        %1492 = vmatpush.msra.mxu0 0.0
        %1493 = vmatpush.msra.mxu0 %v1317
        %1494 = vmatmul.f32.gmra.mxu0 %v1476
        %v1495 = vpop.f32.mrf.mxu0
        %v1496 = vadd.f32 %v1473, %v1495
        %1497 = vdwg.mxu0
        %1498 = vrot.lane.b32.xlu0 %v1313, 112
        %v1499 = vpop.permute.xlu0 %1498
        %1500 = vrot.lane.b32.xlu0 %v1313, 80
        %v1501 = vpop.permute.xlu0 %1500
        %v1502 = vsel %vm752, %v1499, 0
        %v1504 = vsel %vm752, %v1501, 0
        %1506 = vmatpush.xpose.msra.mxu0 0.0
        %1507 = vmatpush.xpose.msra.mxu0 0.0
        %1508 = vmatpush.xpose.msra.mxu0 0.0
        %1509 = vmatpush.xpose.msra.mxu0 0.0
        %1510 = vmatpush.xpose.msra.mxu0 0.0
        %1511 = vmatpush.xpose.msra.mxu0 0.0
        %1512 = vmatpush.xpose.msra.mxu0 0.0
        %1513 = vmatpush.xpose.msra.mxu0 0.0
        %1514 = vmatpush.xpose.msra.mxu0 0.0
        %1515 = vmatpush.xpose.msra.mxu0 0.0
        %1516 = vmatpush.xpose.msra.mxu0 0.0
        %1517 = vmatpush.xpose.msra.mxu0 0.0
        %1518 = vmatpush.xpose.msra.mxu0 0.0
        %1519 = vmatpush.xpose.msra.mxu0 0.0
        %1520 = vmatpush.xpose.msra.mxu0 0.0
        %1521 = vmatpush.xpose.msra.mxu0 %v1504
        %1522 = vmatmul.f32.gmra.mxu0 %v1502
        %v1523 = vpop.f32.mrf.mxu0
        %v1524 = vadd.f32 0.0, %v1523
        %1525 = vdwg.mxu0
        %v1526 = vmul.f32 %v1524, 0.35355338
        %v1527 = vsel %vm752, %v1526, -inf
        %1528 = vmax.xlane.f32.xlu0 %v1527
        %v1529 = vpop.xlane.xlu0 %1528
        %v1530 = vsub.f32 %v1526, %v1529
        %v1531 = vmul.f32 %v1530, 1.442695
        %v1532 = vpow.pop %v1531
        %v1533 = vsel %vm752, %v1532, 0.0
        %1534 = vadd.xlane.f32.xlu0 %v1533
        %v1535 = vpop.xlane.xlu0 %1534
        %v1536 = vrcp.pop %v1535
        %v1537 = vmul.f32 %v1532, %v1536
        %1538 = vrot.lane.b32.xlu0 %v1313, 48
        %v1539 = vpop.permute.xlu0 %1538
        %v1542 = vsel %vm752, %v1537, 0
        %1544 = vmatpush.msra.mxu0 0.0
        %1545 = vmatpush.msra.mxu0 0.0
        %1546 = vmatpush.msra.mxu0 0.0
        %1547 = vmatpush.msra.mxu0 0.0
        %1548 = vmatpush.msra.mxu0 0.0
        %1549 = vmatpush.msra.mxu0 0.0
        %1550 = vmatpush.msra.mxu0 0.0
        %1551 = vmatpush.msra.mxu0 0.0
        %1552 = vmatpush.msra.mxu0 0.0
        %1553 = vmatpush.msra.mxu0 0.0
        %1554 = vmatpush.msra.mxu0 0.0
        %1555 = vmatpush.msra.mxu0 0.0
        %1556 = vmatpush.msra.mxu0 0.0
        %1557 = vmatpush.msra.mxu0 0.0
        %1558 = vmatpush.msra.mxu0 0.0
        %1559 = vmatpush.msra.mxu0 %v1539
        %1560 = vmatmul.f32.gmra.mxu0 %v1542
        %v1561 = vpop.f32.mrf.mxu0
        %v1562 = vadd.f32 0.0, %v1561
        %1563 = vdwg.mxu0
        %v1565 = vsel %vm752, %v1562, 0
        %1567 = vmatpush.msra.mxu0 0.0
        %1568 = vmatpush.msra.mxu0 0.0
        %1569 = vmatpush.msra.mxu0 0.0
        %1570 = vmatpush.msra.mxu0 0.0
        %1571 = vmatpush.msra.mxu0 0.0
        %1572 = vmatpush.msra.mxu0 0.0
        %1573 = vmatpush.msra.mxu0 0.0
        %1574 = vmatpush.msra.mxu0 0.0
        %1575 = vmatpush.msra.mxu0 0.0
        %1576 = vmatpush.msra.mxu0 0.0
        %1577 = vmatpush.msra.mxu0 0.0
        %1578 = vmatpush.msra.mxu0 0.0
        %1579 = vmatpush.msra.mxu0 0.0
        %1580 = vmatpush.msra.mxu0 0.0
        %1581 = vmatpush.msra.mxu0 0.0
        %1582 = vmatpush.msra.mxu0 %v1319
        %1583 = vmatmul.f32.gmra.mxu0 %v1565
        %v1584 = vpop.f32.mrf.mxu0
        %v1585 = vadd.f32 0.0, %v1584
        %1586 = vdwg.mxu0
        %v1587 = vadd.f32 %v1496, %v1585
        %1588 = vrot.lane.b32.xlu0 %v1313, 104
        %v1589 = vpop.permute.xlu0 %1588
        %1590 = vrot.lane.b32.xlu0 %v1313, 72
        %v1591 = vpop.permute.xlu0 %1590
        %v1592 = vsel %vm752, %v1589, 0
        %v1594 = vsel %vm752, %v1591, 0
        %1596 = vmatpush.xpose.msra.mxu0 0.0
        %1597 = vmatpush.xpose.msra.mxu0 0.0
        %1598 = vmatpush.xpose.msra.mxu0 0.0
        %1599 = vmatpush.xpose.msra.mxu0 0.0
        %1600 = vmatpush.xpose.msra.mxu0 0.0
        %1601 = vmatpush.xpose.msra.mxu0 0.0
        %1602 = vmatpush.xpose.msra.mxu0 0.0
        %1603 = vmatpush.xpose.msra.mxu0 0.0
        %1604 = vmatpush.xpose.msra.mxu0 0.0
        %1605 = vmatpush.xpose.msra.mxu0 0.0
        %1606 = vmatpush.xpose.msra.mxu0 0.0
        %1607 = vmatpush.xpose.msra.mxu0 0.0
        %1608 = vmatpush.xpose.msra.mxu0 0.0
        %1609 = vmatpush.xpose.msra.mxu0 0.0
        %1610 = vmatpush.xpose.msra.mxu0 0.0
        %1611 = vmatpush.xpose.msra.mxu0 %v1594
        %1612 = vmatmul.f32.gmra.mxu0 %v1592
        %v1613 = vpop.f32.mrf.mxu0
        %v1614 = vadd.f32 0.0, %v1613
        %1615 = vdwg.mxu0
        %v1616 = vmul.f32 %v1614, 0.35355338
        %v1617 = vsel %vm752, %v1616, -inf
        %1618 = vmax.xlane.f32.xlu0 %v1617
        %v1619 = vpop.xlane.xlu0 %1618
        %v1620 = vsub.f32 %v1616, %v1619
        %v1621 = vmul.f32 %v1620, 1.442695
        %v1622 = vpow.pop %v1621
        %v1623 = vsel %vm752, %v1622, 0.0
        %1624 = vadd.xlane.f32.xlu0 %v1623
        %v1625 = vpop.xlane.xlu0 %1624
        %v1626 = vrcp.pop %v1625
        %v1627 = vmul.f32 %v1622, %v1626
        %1628 = vrot.lane.b32.xlu0 %v1313, 40
        %v1629 = vpop.permute.xlu0 %1628
        %v1632 = vsel %vm752, %v1627, 0
        %1634 = vmatpush.msra.mxu0 0.0
        %1635 = vmatpush.msra.mxu0 0.0
        %1636 = vmatpush.msra.mxu0 0.0
        %1637 = vmatpush.msra.mxu0 0.0
        %1638 = vmatpush.msra.mxu0 0.0
        %1639 = vmatpush.msra.mxu0 0.0
        %1640 = vmatpush.msra.mxu0 0.0
        %1641 = vmatpush.msra.mxu0 0.0
        %1642 = vmatpush.msra.mxu0 0.0
        %1643 = vmatpush.msra.mxu0 0.0
        %1644 = vmatpush.msra.mxu0 0.0
        %1645 = vmatpush.msra.mxu0 0.0
        %1646 = vmatpush.msra.mxu0 0.0
        %1647 = vmatpush.msra.mxu0 0.0
        %1648 = vmatpush.msra.mxu0 0.0
        %1649 = vmatpush.msra.mxu0 %v1629
        %1650 = vmatmul.f32.gmra.mxu0 %v1632
        %v1651 = vpop.f32.mrf.mxu0
        %v1652 = vadd.f32 0.0, %v1651
        %1653 = vdwg.mxu0
        %v1655 = vsel %vm752, %v1652, 0
        %1657 = vmatpush.msra.mxu0 0.0
        %1658 = vmatpush.msra.mxu0 0.0
        %1659 = vmatpush.msra.mxu0 0.0
        %1660 = vmatpush.msra.mxu0 0.0
        %1661 = vmatpush.msra.mxu0 0.0
        %1662 = vmatpush.msra.mxu0 0.0
        %1663 = vmatpush.msra.mxu0 0.0
        %1664 = vmatpush.msra.mxu0 0.0
        %1665 = vmatpush.msra.mxu0 0.0
        %1666 = vmatpush.msra.mxu0 0.0
        %1667 = vmatpush.msra.mxu0 0.0
        %1668 = vmatpush.msra.mxu0 0.0
        %1669 = vmatpush.msra.mxu0 0.0
        %1670 = vmatpush.msra.mxu0 0.0
        %1671 = vmatpush.msra.mxu0 0.0
        %1672 = vmatpush.msra.mxu0 %v1320
        %1673 = vmatmul.f32.gmra.mxu0 %v1655
        %v1674 = vpop.f32.mrf.mxu0
        %v1675 = vadd.f32 0.0, %v1674
        %1676 = vdwg.mxu0
        %v1677 = vadd.f32 %v1587, %v1675
        %s1678 = scalar_lea.vmem %s6, 1
        %v1679 = vld [vmem:[%s1678] sm:$0x1]
        %v1681 = vperm.slane %v1679, 0
        %v1683 = vadd.f32 %v1677, %v1681
        %v1684 = vadd.f32 %v1276, %v1683
        %s1685 = scalar_lea.vmem %s7, 1
        %v1686 = vld [vmem:[%s1685] sm:$0x1]
        %s1687 = scalar_lea.vmem %s8, 1
        %v1688 = vld [vmem:[%s1687] sm:$0x1]
        %v1689 = vsel %vm728, %v1684, 0.0
        %1690 = vadd.xlane.f32.xlu0 %v1689
        %v1691 = vpop.xlane.xlu0 %1690
        %v1692 = vmul.f32 %v1691, %v1124
        %v1693 = vsub.f32 %v1684, %v1692
        %v1694 = vmul.f32 %v1693, %v1693
        %v1695 = vsel %vm728, %v1694, 0.0
        %1696 = vadd.xlane.f32.xlu0 %v1695
        %v1697 = vpop.xlane.xlu0 %1696
        %v1698 = vmul.f32 %v1697, %v1124
        %v1699 = vadd.f32 %v1698, 1e-05
        %v1700 = vrsqrt.pop %v1699
        %v1701 = vmul.f32 %v1700, %v1699
        %v1702 = vmul.f32 %v1701, %v1700
        %v1703 = vmul.f32 0.5, %v1702
        %v1704 = vsub.f32 1.5, %v1703
        %v1705 = vmul.f32 %v1700, %v1704
        %vm1706 = vweird.f32 %v1699
        %vm1707 = vweird.f32 %v1700
        %vm1708 = vmor %vm1706, %vm1707
        %v1709 = vsel %vm1708, %v1700, %v1705
        %v1710 = vmul.f32 %v1693, %v1709
        %v1712 = vperm.slane %v1686, 0
        %v1714 = vmul.f32 %v1710, %v1712
        %v1716 = vperm.slane %v1688, 0
        %v1718 = vadd.f32 %v1714, %v1716
        %s1719 = scalar_lea.vmem [#allocation6], 16
        %v1720 = vld [vmem:[%s1719] sm:$0xf]
        %v1721 = vld [vmem:[%s1719 + $0x4] sm:$0xf]
        %v1722 = vld [vmem:[%s1719 + $0x8] sm:$0xf]
        %v1723 = vld [vmem:[%s1719 + $0xc] sm:$0xf]
        %v1724 = vpack.c.bf16 %v1718, %v1718
        %s1725 = scalar_lea.vmem %s10, 1
        %v1726 = vld [vmem:[%s1725] sm:$0x1]
        %v1728 = vperm.slane %v1726, 0
        %v1734 = vunpack.c.l.b16 %v1720
        %v1735 = vunpack.c.l.b16 %v1721
        %v1736 = vunpack.c.l.b16 %v1722
        %v1737 = vunpack.c.l.b16 %v1723
        %v1738 = vpack.c.b16 %v1735, %v1734
        %v1739 = vpack.c.b16 %v1737, %v1736
        %v1743 = vsel %vm728, %v1724, 0
        %1745 = vmatpush.bf16.msra.mxu0 0
        %1746 = vmatpush.bf16.msra.mxu0 0
        %1747 = vmatpush.bf16.msra.mxu0 0
        %1748 = vmatpush.bf16.msra.mxu0 0
        %1749 = vmatpush.bf16.msra.mxu0 0
        %1750 = vmatpush.bf16.msra.mxu0 0
        %1751 = vmatpush.bf16.msra.mxu0 %v1739
        %1752 = vmatpush.bf16.msra.mxu0 %v1738
        %1753 = vmatmul.bf16.gmra.mxu0 %v1743
        %v1754 = vpop.f32.mrf.mxu0
        %v1755 = vadd.f32 %v1728, %v1754
        %v1756 = vpop.f32.mrf.mxu0
        %1757 = vdwg.mxu0
        %v1758 = vmax.f32 %v1755, 0.0
        %s1759 = scalar_lea.vmem %s11, 32
        %v1760 = vld [vmem:[%s1759] sm:$0xf]
        %v1761 = vld [vmem:[%s1759 + $0x4] sm:$0xf]
        %v1762 = vld [vmem:[%s1759 + $0x8] sm:$0xf]
        %v1763 = vld [vmem:[%s1759 + $0xc] sm:$0xf]
        %v1764 = vld [vmem:[%s1759 + $0x10] sm:$0xf]
        %v1765 = vld [vmem:[%s1759 + $0x14] sm:$0xf]
        %v1766 = vld [vmem:[%s1759 + $0x18] sm:$0xf]
        %v1767 = vld [vmem:[%s1759 + $0x1c] sm:$0xf]
        %v1768 = vpack.c.bf16 %v1758, %v1758
        %s1769 = scalar_lea.vmem %s12, 1
        %v1770 = vld [vmem:[%s1769] sm:$0x1]
        %v1772 = vperm.slane %v1770, 0
        %v1782 = vunpack.c.l.b16 %v1760
        %v1783 = vunpack.c.l.b16 %v1761
        %v1784 = vunpack.c.l.b16 %v1762
        %v1785 = vunpack.c.l.b16 %v1763
        %v1786 = vunpack.c.l.b16 %v1764
        %v1787 = vunpack.c.l.b16 %v1765
        %v1788 = vunpack.c.l.b16 %v1766
        %v1789 = vunpack.c.l.b16 %v1767
        %v1790 = vpack.c.b16 %v1783, %v1782
        %v1791 = vpack.c.b16 %v1785, %v1784
        %v1792 = vpack.c.b16 %v1787, %v1786
        %v1793 = vpack.c.b16 %v1789, %v1788
        %v1799 = vsel %vm1227, %v1768, 0
        %1801 = vmatpush.bf16.msra.mxu0 0
        %1802 = vmatpush.bf16.msra.mxu0 0
        %1803 = vmatpush.bf16.msra.mxu0 0
        %1804 = vmatpush.bf16.msra.mxu0 0
        %1805 = vmatpush.bf16.msra.mxu0 %v1793
        %1806 = vmatpush.bf16.msra.mxu0 %v1792
        %1807 = vmatpush.bf16.msra.mxu0 %v1791
        %1808 = vmatpush.bf16.msra.mxu0 %v1790
        %1809 = vmatmul.bf16.gmra.mxu0 %v1799
        %v1810 = vpop.f32.mrf.mxu0
        %v1811 = vadd.f32 %v1772, %v1810
        %v1812 = vpop.f32.mrf.mxu0
        %1813 = vdwg.mxu0
        %v1814 = vadd.f32 %v1718, %v1811
        %s1815 = scalar_lea.vmem %s13, 1
        %v1816 = vld [vmem:[%s1815] sm:$0x1]
        %s1817 = scalar_lea.vmem %s14, 1
        %v1818 = vld [vmem:[%s1817] sm:$0x1]
        %v1819 = vsel %vm728, %v1814, 0.0
        %1820 = vadd.xlane.f32.xlu0 %v1819
        %v1821 = vpop.xlane.xlu0 %1820
        %v1822 = vmul.f32 %v1821, %v1124
        %v1823 = vsub.f32 %v1814, %v1822
        %v1824 = vmul.f32 %v1823, %v1823
        %v1825 = vsel %vm728, %v1824, 0.0
        %1826 = vadd.xlane.f32.xlu0 %v1825
        %v1827 = vpop.xlane.xlu0 %1826
        %v1828 = vmul.f32 %v1827, %v1124
        %v1829 = vadd.f32 %v1828, 1e-05
        %v1830 = vrsqrt.pop %v1829
        %v1831 = vmul.f32 %v1830, %v1829
        %v1832 = vmul.f32 %v1831, %v1830
        %v1833 = vmul.f32 0.5, %v1832
        %v1834 = vsub.f32 1.5, %v1833
        %v1835 = vmul.f32 %v1830, %v1834
        %vm1836 = vweird.f32 %v1829
        %vm1837 = vweird.f32 %v1830
        %vm1838 = vmor %vm1836, %vm1837
        %v1839 = vsel %vm1838, %v1830, %v1835
        %v1840 = vmul.f32 %v1823, %v1839
        %v1842 = vperm.slane %v1816, 0
        %v1844 = vmul.f32 %v1840, %v1842
        %v1846 = vperm.slane %v1818, 0
        %v1848 = vadd.f32 %v1844, %v1846
        %v1849 = vld [vmem:[#allocation8] sm:$0xff]
        %v1850 = vld [vmem:[#allocation8 + $0x8] sm:$0xff]
        %v1851 = vld [vmem:[#allocation8 + $0x10] sm:$0xff]
        %v1852 = vld [vmem:[#allocation8 + $0x18] sm:$0xff]
        %v1853 = vpack.c.bf16 %v1848, %v1848
        %v1854 = vld [vmem:[%s16] sm:$0x3]
        %v1856 = vperm.slane %v1854, 0
        %v1857 = vperm.slane %v1854, 1
        %v1864 = vunpack.c.l.b16 %v1849
        %v1865 = vunpack.c.h.b16 %v1849
        %v1866 = vunpack.c.l.b16 %v1850
        %v1867 = vunpack.c.h.b16 %v1850
        %v1868 = vunpack.c.l.b16 %v1851
        %v1869 = vunpack.c.h.b16 %v1851
        %v1870 = vunpack.c.l.b16 %v1852
        %v1871 = vunpack.c.h.b16 %v1852
        %v1872 = vpack.c.b16 %v1866, %v1864
        %v1873 = vpack.c.b16 %v1867, %v1865
        %v1874 = vpack.c.b16 %v1870, %v1868
        %v1875 = vpack.c.b16 %v1871, %v1869
        %v1881 = vsel %vm728, %v1853, 0
        %1883 = vmatpush.bf16.msra.mxu0 0
        %1884 = vmatpush.bf16.msra.mxu0 0
        %1885 = vmatpush.bf16.msra.mxu0 0
        %1886 = vmatpush.bf16.msra.mxu0 0
        %1887 = vmatpush.bf16.msra.mxu0 0
        %1888 = vmatpush.bf16.msra.mxu0 0
        %1889 = vmatpush.bf16.msra.mxu0 %v1874
        %1890 = vmatpush.bf16.msra.mxu0 %v1872
        %1891 = vmatmul.bf16.gmra.mxu0 %v1881
        %v1892 = vpop.f32.mrf.mxu0
        %v1893 = vadd.f32 %v1856, %v1892
        %v1894 = vpop.f32.mrf.mxu0
        %1895 = vdwg.mxu0
        %1896 = vmatpush.bf16.msra.mxu0 0
        %1897 = vmatpush.bf16.msra.mxu0 0
        %1898 = vmatpush.bf16.msra.mxu0 0
        %1899 = vmatpush.bf16.msra.mxu0 0
        %1900 = vmatpush.bf16.msra.mxu0 0
        %1901 = vmatpush.bf16.msra.mxu0 0
        %1902 = vmatpush.bf16.msra.mxu0 %v1875
        %1903 = vmatpush.bf16.msra.mxu0 %v1873
        %1904 = vmatmul.bf16.gmra.mxu0 %v1881
        %v1905 = vpop.f32.mrf.mxu0
        %v1906 = vadd.f32 %v1857, %v1905
        %v1907 = vpop.f32.mrf.mxu0
        %1908 = vdwg.mxu0
        %1909 = vst [vmem:[#allocation2] sm:$0xff] %v1893
        %1910 = vst [vmem:[#allocation2 + $0x8] sm:$0xff] %v1906
        %v1911 = vld [vmem:[#allocation9] sm:$0xff]
        %v1912 = vld [vmem:[#allocation9 + $0x8] sm:$0xff]
        %v1913 = vld [vmem:[#allocation9 + $0x10] sm:$0xff]
        %v1914 = vld [vmem:[#allocation9 + $0x18] sm:$0xff]
        %v1915 = vld [vmem:[#allocation9 + $0x20] sm:$0xff]
        %v1916 = vld [vmem:[#allocation9 + $0x28] sm:$0xff]
        %v1917 = vld [vmem:[#allocation9 + $0x30] sm:$0xff]
        %v1918 = vld [vmem:[#allocation9 + $0x38] sm:$0xff]
        %v1919 = vld [vmem:[#allocation9 + $0x40] sm:$0xff]
        %v1920 = vld [vmem:[#allocation9 + $0x48] sm:$0xff]
        %v1921 = vld [vmem:[#allocation9 + $0x50] sm:$0xff]
        %v1922 = vld [vmem:[#allocation9 + $0x58] sm:$0xff]
        %v1923 = vld [vmem:[#allocation9 + $0x60] sm:$0xff]
        %v1924 = vld [vmem:[#allocation9 + $0x68] sm:$0xff]
        %v1925 = vld [vmem:[#allocation9 + $0x70] sm:$0xff]
        %v1926 = vld [vmem:[#allocation9 + $0x78] sm:$0xff]
        %v1927 = vld [vmem:[#allocation2] ss:$8 sm:$0x3]
        %v1929 = vsel %vm1227, 0.0, 0
        %1931 = vmatpush.msra.mxu0 0.0
        %1932 = vmatpush.msra.mxu0 0.0
        %1933 = vmatpush.msra.mxu0 0.0
        %1934 = vmatpush.msra.mxu0 0.0
        %1935 = vmatpush.msra.mxu0 0.0
        %1936 = vmatpush.msra.mxu0 0.0
        %1937 = vmatpush.msra.mxu0 0.0
        %1938 = vmatpush.msra.mxu0 0.0
        %1939 = vmatpush.msra.mxu0 %v1925
        %1940 = vmatpush.msra.mxu0 %v1923
        %1941 = vmatpush.msra.mxu0 %v1921
        %1942 = vmatpush.msra.mxu0 %v1919
        %1943 = vmatpush.msra.mxu0 %v1917
        %1944 = vmatpush.msra.mxu0 %v1915
        %1945 = vmatpush.msra.mxu0 %v1913
        %1946 = vmatpush.msra.mxu0 %v1911
        %1947 = vmatmul.f32.gmra.mxu0 %v1929
        %v1948 = vpop.f32.mrf.mxu0
        %v1949 = vadd.f32 0.0, %v1948
        %1950 = vdwg.mxu0
        %1951 = vmatpush.msra.mxu0 0.0
        %1952 = vmatpush.msra.mxu0 0.0
        %1953 = vmatpush.msra.mxu0 0.0
        %1954 = vmatpush.msra.mxu0 0.0
        %1955 = vmatpush.msra.mxu0 0.0
        %1956 = vmatpush.msra.mxu0 0.0
        %1957 = vmatpush.msra.mxu0 0.0
        %1958 = vmatpush.msra.mxu0 0.0
        %1959 = vmatpush.msra.mxu0 %v1926
        %1960 = vmatpush.msra.mxu0 %v1924
        %1961 = vmatpush.msra.mxu0 %v1922
        %1962 = vmatpush.msra.mxu0 %v1920
        %1963 = vmatpush.msra.mxu0 %v1918
        %1964 = vmatpush.msra.mxu0 %v1916
        %1965 = vmatpush.msra.mxu0 %v1914
        %1966 = vmatpush.msra.mxu0 %v1912
        %1967 = vmatmul.f32.gmra.mxu0 %v1929
        %v1968 = vpop.f32.mrf.mxu0
        %v1969 = vadd.f32 0.0, %v1968
        %1970 = vdwg.mxu0
        %v1973 = vrot.slane %v1969, 7
        %vm1974 = vcmask 1040384
        %v1975 = vsel %vm1974, %v1949, %v1973
        %v1977 = vadd.f32 %v1927, %v1975
        %v1978 = vxor.u32 %v1977, 2147483648
        %v1979 = vmul.f32 %v1978, 1.442695
        %v1980 = vpow.pop %v1979
        %v1981 = vadd.f32 %v1980, 1.0
        %v1982 = vrcp.pop %v1981
        %v1983 = vmul.f32 %v1981, %v1982
        %v1984 = vsub.f32 1.0, %v1983
        %v1985 = vmul.f32 %v1982, %v1984
        %v1986 = vadd.f32 %v1982, %v1985
        %vm1987 = vweird.f32 %v1981
        %vm1988 = vweird.f32 %v1982
        %vm1989 = vmor %vm1987, %vm1988
        %v1990 = vsel %vm1989, %v1982, %v1986
        %v1991 = vand.u32 2147483647, %v1981
        %vm1992 = vcmp.eq.f32.partialorder %v1991, 8.507059e+37
        %v1993 = vand.u32 %v1981, 2147483648
        %v1994 = vor.u32 1.1754944e-38, %v1993
        %v1995 = vsel %vm1992, %v1994, %v1990
        %v1996 = vmul.f32 1.0, %v1995
        %v1998 = vrot.slane %v1977, 1
        %v2000 = vtanh.pop %v1998
        %2001 = vrot.lane.b32.xlu0 %v1977, 64
        %v2002 = vpop.permute.xlu0 %2001
        %v2003 = vrot.slane %v2002, 1
        %v2005 = vxor.u32 %v2003, 2147483648
        %v2006 = vmul.f32 %v2005, 1.442695
        %v2007 = vpow.pop %v2006
        %v2008 = vadd.f32 %v2007, 1.0
        %v2009 = vrcp.pop %v2008
        %v2010 = vmul.f32 %v2008, %v2009
        %v2011 = vsub.f32 1.0, %v2010
        %v2012 = vmul.f32 %v2009, %v2011
        %v2013 = vadd.f32 %v2009, %v2012
        %vm2014 = vweird.f32 %v2008
        %vm2015 = vweird.f32 %v2009
        %vm2016 = vmor %vm2014, %vm2015
        %v2017 = vsel %vm2016, %v2009, %v2013
        %v2018 = vand.u32 2147483647, %v2008
        %vm2019 = vcmp.eq.f32.partialorder %v2018, 8.507059e+37
        %v2020 = vand.u32 %v2008, 2147483648
        %v2021 = vor.u32 1.1754944e-38, %v2020
        %v2022 = vsel %vm2019, %v2021, %v2017
        %v2023 = vmul.f32 1.0, %v2022
        %v2024 = vmul.f32 %v1996, 0.0
        %v2025 = vmul.f32 %v1996, %v2000
        %2027 = vrot.lane.b32.xlu0 %v2025, 64
        %v2028 = vpop.permute.xlu0 %2027
        %v2030 = vadd.f32 %v2024, %v2028
        %v2031 = vtanh.pop %v2030
        %2033 = vrot.lane.b32.xlu0 %v2031, 64
        %v2034 = vpop.permute.xlu0 %2033
        %v2036 = vmul.f32 %v2023, %v2034
        %s2037 = scalar_lea.vmem [#allocation2], 1
        %v2038 = vld [vmem:[%s2037] ss:$8 sm:$0x3]
        %v2040 = vsel %vm1227, %v2036, 0
        %2042 = vmatpush.msra.mxu0 0.0
        %2043 = vmatpush.msra.mxu0 0.0
        %2044 = vmatpush.msra.mxu0 0.0
        %2045 = vmatpush.msra.mxu0 0.0
        %2046 = vmatpush.msra.mxu0 0.0
        %2047 = vmatpush.msra.mxu0 0.0
        %2048 = vmatpush.msra.mxu0 0.0
        %2049 = vmatpush.msra.mxu0 0.0
        %2050 = vmatpush.msra.mxu0 %v1925
        %2051 = vmatpush.msra.mxu0 %v1923
        %2052 = vmatpush.msra.mxu0 %v1921
        %2053 = vmatpush.msra.mxu0 %v1919
        %2054 = vmatpush.msra.mxu0 %v1917
        %2055 = vmatpush.msra.mxu0 %v1915
        %2056 = vmatpush.msra.mxu0 %v1913
        %2057 = vmatpush.msra.mxu0 %v1911
        %2058 = vmatmul.f32.gmra.mxu0 %v2040
        %v2059 = vpop.f32.mrf.mxu0
        %v2060 = vadd.f32 0.0, %v2059
        %2061 = vdwg.mxu0
        %2062 = vmatpush.msra.mxu0 0.0
        %2063 = vmatpush.msra.mxu0 0.0
        %2064 = vmatpush.msra.mxu0 0.0
        %2065 = vmatpush.msra.mxu0 0.0
        %2066 = vmatpush.msra.mxu0 0.0
        %2067 = vmatpush.msra.mxu0 0.0
        %2068 = vmatpush.msra.mxu0 0.0
        %2069 = vmatpush.msra.mxu0 0.0
        %2070 = vmatpush.msra.mxu0 %v1926
        %2071 = vmatpush.msra.mxu0 %v1924
        %2072 = vmatpush.msra.mxu0 %v1922
        %2073 = vmatpush.msra.mxu0 %v1920
        %2074 = vmatpush.msra.mxu0 %v1918
        %2075 = vmatpush.msra.mxu0 %v1916
        %2076 = vmatpush.msra.mxu0 %v1914
        %2077 = vmatpush.msra.mxu0 %v1912
        %2078 = vmatmul.f32.gmra.mxu0 %v2040
        %v2079 = vpop.f32.mrf.mxu0
        %v2080 = vadd.f32 0.0, %v2079
        %2081 = vdwg.mxu0
        %v2084 = vrot.slane %v2080, 7
        %v2085 = vsel %vm1974, %v2060, %v2084
        %v2087 = vadd.f32 %v2038, %v2085
        %v2088 = vxor.u32 %v2087, 2147483648
        %v2089 = vmul.f32 %v2088, 1.442695
        %v2090 = vpow.pop %v2089
        %v2091 = vadd.f32 %v2090, 1.0
        %v2092 = vrcp.pop %v2091
        %v2093 = vmul.f32 %v2091, %v2092
        %v2094 = vsub.f32 1.0, %v2093
        %v2095 = vmul.f32 %v2092, %v2094
        %v2096 = vadd.f32 %v2092, %v2095
        %vm2097 = vweird.f32 %v2091
        %vm2098 = vweird.f32 %v2092
        %vm2099 = vmor %vm2097, %vm2098
        %v2100 = vsel %vm2099, %v2092, %v2096
        %v2101 = vand.u32 2147483647, %v2091
        %vm2102 = vcmp.eq.f32.partialorder %v2101, 8.507059e+37
        %v2103 = vand.u32 %v2091, 2147483648
        %v2104 = vor.u32 1.1754944e-38, %v2103
        %v2105 = vsel %vm2102, %v2104, %v2100
        %v2106 = vmul.f32 1.0, %v2105
        %v2108 = vrot.slane %v2087, 1
        %v2110 = vtanh.pop %v2108
        %2111 = vrot.lane.b32.xlu0 %v2087, 64
        %v2112 = vpop.permute.xlu0 %2111
        %v2113 = vrot.slane %v2112, 1
        %v2115 = vxor.u32 %v2113, 2147483648
        %v2116 = vmul.f32 %v2115, 1.442695
        %v2117 = vpow.pop %v2116
        %v2118 = vadd.f32 %v2117, 1.0
        %v2119 = vrcp.pop %v2118
        %v2120 = vmul.f32 %v2118, %v2119
        %v2121 = vsub.f32 1.0, %v2120
        %v2122 = vmul.f32 %v2119, %v2121
        %v2123 = vadd.f32 %v2119, %v2122
        %vm2124 = vweird.f32 %v2118
        %vm2125 = vweird.f32 %v2119
        %vm2126 = vmor %vm2124, %vm2125
        %v2127 = vsel %vm2126, %v2119, %v2123
        %v2128 = vand.u32 2147483647, %v2118
        %vm2129 = vcmp.eq.f32.partialorder %v2128, 8.507059e+37
        %v2130 = vand.u32 %v2118, 2147483648
        %v2131 = vor.u32 1.1754944e-38, %v2130
        %v2132 = vsel %vm2129, %v2131, %v2127
        %v2133 = vmul.f32 1.0, %v2132
        %v2134 = vmul.f32 %v2106, %v2030
        %v2135 = vmul.f32 %v2106, %v2110
        %2137 = vrot.lane.b32.xlu0 %v2135, 64
        %v2138 = vpop.permute.xlu0 %2137
        %v2140 = vadd.f32 %v2134, %v2138
        %v2141 = vtanh.pop %v2140
        %2143 = vrot.lane.b32.xlu0 %v2141, 64
        %v2144 = vpop.permute.xlu0 %2143
        %v2146 = vmul.f32 %v2133, %v2144
        %s2147 = scalar_lea.vmem [#allocation2], 2
        %v2148 = vld [vmem:[%s2147] ss:$8 sm:$0x3]
        %v2150 = vsel %vm1227, %v2146, 0
        %2152 = vmatpush.msra.mxu0 0.0
        %2153 = vmatpush.msra.mxu0 0.0
        %2154 = vmatpush.msra.mxu0 0.0
        %2155 = vmatpush.msra.mxu0 0.0
        %2156 = vmatpush.msra.mxu0 0.0
        %2157 = vmatpush.msra.mxu0 0.0
        %2158 = vmatpush.msra.mxu0 0.0
        %2159 = vmatpush.msra.mxu0 0.0
        %2160 = vmatpush.msra.mxu0 %v1925
        %2161 = vmatpush.msra.mxu0 %v1923
        %2162 = vmatpush.msra.mxu0 %v1921
        %2163 = vmatpush.msra.mxu0 %v1919
        %2164 = vmatpush.msra.mxu0 %v1917
        %2165 = vmatpush.msra.mxu0 %v1915
        %2166 = vmatpush.msra.mxu0 %v1913
        %2167 = vmatpush.msra.mxu0 %v1911
        %2168 = vmatmul.f32.gmra.mxu0 %v2150
        %v2169 = vpop.f32.mrf.mxu0
        %v2170 = vadd.f32 0.0, %v2169
        %2171 = vdwg.mxu0
        %2172 = vmatpush.msra.mxu0 0.0
        %2173 = vmatpush.msra.mxu0 0.0
        %2174 = vmatpush.msra.mxu0 0.0
        %2175 = vmatpush.msra.mxu0 0.0
        %2176 = vmatpush.msra.mxu0 0.0
        %2177 = vmatpush.msra.mxu0 0.0
        %2178 = vmatpush.msra.mxu0 0.0
        %2179 = vmatpush.msra.mxu0 0.0
        %2180 = vmatpush.msra.mxu0 %v1926
        %2181 = vmatpush.msra.mxu0 %v1924
        %2182 = vmatpush.msra.mxu0 %v1922
        %2183 = vmatpush.msra.mxu0 %v1920
        %2184 = vmatpush.msra.mxu0 %v1918
        %2185 = vmatpush.msra.mxu0 %v1916
        %2186 = vmatpush.msra.mxu0 %v1914
        %2187 = vmatpush.msra.mxu0 %v1912
        %2188 = vmatmul.f32.gmra.mxu0 %v2150
        %v2189 = vpop.f32.mrf.mxu0
        %v2190 = vadd.f32 0.0, %v2189
        %2191 = vdwg.mxu0
        %v2194 = vrot.slane %v2190, 7
        %v2195 = vsel %vm1974, %v2170, %v2194
        %v2197 = vadd.f32 %v2148, %v2195
        %v2198 = vxor.u32 %v2197, 2147483648
        %v2199 = vmul.f32 %v2198, 1.442695
        %v2200 = vpow.pop %v2199
        %v2201 = vadd.f32 %v2200, 1.0
        %v2202 = vrcp.pop %v2201
        %v2203 = vmul.f32 %v2201, %v2202
        %v2204 = vsub.f32 1.0, %v2203
        %v2205 = vmul.f32 %v2202, %v2204
        %v2206 = vadd.f32 %v2202, %v2205
        %vm2207 = vweird.f32 %v2201
        %vm2208 = vweird.f32 %v2202
        %vm2209 = vmor %vm2207, %vm2208
        %v2210 = vsel %vm2209, %v2202, %v2206
        %v2211 = vand.u32 2147483647, %v2201
        %vm2212 = vcmp.eq.f32.partialorder %v2211, 8.507059e+37
        %v2213 = vand.u32 %v2201, 2147483648
        %v2214 = vor.u32 1.1754944e-38, %v2213
        %v2215 = vsel %vm2212, %v2214, %v2210
        %v2216 = vmul.f32 1.0, %v2215
        %v2218 = vrot.slane %v2197, 1
        %v2220 = vtanh.pop %v2218
        %2221 = vrot.lane.b32.xlu0 %v2197, 64
        %v2222 = vpop.permute.xlu0 %2221
        %v2223 = vrot.slane %v2222, 1
        %v2225 = vxor.u32 %v2223, 2147483648
        %v2226 = vmul.f32 %v2225, 1.442695
        %v2227 = vpow.pop %v2226
        %v2228 = vadd.f32 %v2227, 1.0
        %v2229 = vrcp.pop %v2228
        %v2230 = vmul.f32 %v2228, %v2229
        %v2231 = vsub.f32 1.0, %v2230
        %v2232 = vmul.f32 %v2229, %v2231
        %v2233 = vadd.f32 %v2229, %v2232
        %vm2234 = vweird.f32 %v2228
        %vm2235 = vweird.f32 %v2229
        %vm2236 = vmor %vm2234, %vm2235
        %v2237 = vsel %vm2236, %v2229, %v2233
        %v2238 = vand.u32 2147483647, %v2228
        %vm2239 = vcmp.eq.f32.partialorder %v2238, 8.507059e+37
        %v2240 = vand.u32 %v2228, 2147483648
        %v2241 = vor.u32 1.1754944e-38, %v2240
        %v2242 = vsel %vm2239, %v2241, %v2237
        %v2243 = vmul.f32 1.0, %v2242
        %v2244 = vmul.f32 %v2216, %v2140
        %v2245 = vmul.f32 %v2216, %v2220
        %2247 = vrot.lane.b32.xlu0 %v2245, 64
        %v2248 = vpop.permute.xlu0 %2247
        %v2250 = vadd.f32 %v2244, %v2248
        %v2251 = vtanh.pop %v2250
        %2253 = vrot.lane.b32.xlu0 %v2251, 64
        %v2254 = vpop.permute.xlu0 %2253
        %v2256 = vmul.f32 %v2243, %v2254
        %s2257 = scalar_lea.vmem [#allocation2], 3
        %v2258 = vld [vmem:[%s2257] ss:$8 sm:$0x3]
        %v2260 = vsel %vm1227, %v2256, 0
        %2262 = vmatpush.msra.mxu0 0.0
        %2263 = vmatpush.msra.mxu0 0.0
        %2264 = vmatpush.msra.mxu0 0.0
        %2265 = vmatpush.msra.mxu0 0.0
        %2266 = vmatpush.msra.mxu0 0.0
        %2267 = vmatpush.msra.mxu0 0.0
        %2268 = vmatpush.msra.mxu0 0.0
        %2269 = vmatpush.msra.mxu0 0.0
        %2270 = vmatpush.msra.mxu0 %v1925
        %2271 = vmatpush.msra.mxu0 %v1923
        %2272 = vmatpush.msra.mxu0 %v1921
        %2273 = vmatpush.msra.mxu0 %v1919
        %2274 = vmatpush.msra.mxu0 %v1917
        %2275 = vmatpush.msra.mxu0 %v1915
        %2276 = vmatpush.msra.mxu0 %v1913
        %2277 = vmatpush.msra.mxu0 %v1911
        %2278 = vmatmul.f32.gmra.mxu0 %v2260
        %v2279 = vpop.f32.mrf.mxu0
        %v2280 = vadd.f32 0.0, %v2279
        %2281 = vdwg.mxu0
        %2282 = vmatpush.msra.mxu0 0.0
        %2283 = vmatpush.msra.mxu0 0.0
        %2284 = vmatpush.msra.mxu0 0.0
        %2285 = vmatpush.msra.mxu0 0.0
        %2286 = vmatpush.msra.mxu0 0.0
        %2287 = vmatpush.msra.mxu0 0.0
        %2288 = vmatpush.msra.mxu0 0.0
        %2289 = vmatpush.msra.mxu0 0.0
        %2290 = vmatpush.msra.mxu0 %v1926
        %2291 = vmatpush.msra.mxu0 %v1924
        %2292 = vmatpush.msra.mxu0 %v1922
        %2293 = vmatpush.msra.mxu0 %v1920
        %2294 = vmatpush.msra.mxu0 %v1918
        %2295 = vmatpush.msra.mxu0 %v1916
        %2296 = vmatpush.msra.mxu0 %v1914
        %2297 = vmatpush.msra.mxu0 %v1912
        %2298 = vmatmul.f32.gmra.mxu0 %v2260
        %v2299 = vpop.f32.mrf.mxu0
        %v2300 = vadd.f32 0.0, %v2299
        %2301 = vdwg.mxu0
        %v2304 = vrot.slane %v2300, 7
        %v2305 = vsel %vm1974, %v2280, %v2304
        %v2307 = vadd.f32 %v2258, %v2305
        %v2308 = vxor.u32 %v2307, 2147483648
        %v2309 = vmul.f32 %v2308, 1.442695
        %v2310 = vpow.pop %v2309
        %v2311 = vadd.f32 %v2310, 1.0
        %v2312 = vrcp.pop %v2311
        %v2313 = vmul.f32 %v2311, %v2312
        %v2314 = vsub.f32 1.0, %v2313
        %v2315 = vmul.f32 %v2312, %v2314
        %v2316 = vadd.f32 %v2312, %v2315
        %vm2317 = vweird.f32 %v2311
        %vm2318 = vweird.f32 %v2312
        %vm2319 = vmor %vm2317, %vm2318
        %v2320 = vsel %vm2319, %v2312, %v2316
        %v2321 = vand.u32 2147483647, %v2311
        %vm2322 = vcmp.eq.f32.partialorder %v2321, 8.507059e+37
        %v2323 = vand.u32 %v2311, 2147483648
        %v2324 = vor.u32 1.1754944e-38, %v2323
        %v2325 = vsel %vm2322, %v2324, %v2320
        %v2326 = vmul.f32 1.0, %v2325
        %v2328 = vrot.slane %v2307, 1
        %v2330 = vtanh.pop %v2328
        %2331 = vrot.lane.b32.xlu0 %v2307, 64
        %v2332 = vpop.permute.xlu0 %2331
        %v2333 = vrot.slane %v2332, 1
        %v2335 = vxor.u32 %v2333, 2147483648
        %v2336 = vmul.f32 %v2335, 1.442695
        %v2337 = vpow.pop %v2336
        %v2338 = vadd.f32 %v2337, 1.0
        %v2339 = vrcp.pop %v2338
        %v2340 = vmul.f32 %v2338, %v2339
        %v2341 = vsub.f32 1.0, %v2340
        %v2342 = vmul.f32 %v2339, %v2341
        %v2343 = vadd.f32 %v2339, %v2342
        %vm2344 = vweird.f32 %v2338
        %vm2345 = vweird.f32 %v2339
        %vm2346 = vmor %vm2344, %vm2345
        %v2347 = vsel %vm2346, %v2339, %v2343
        %v2348 = vand.u32 2147483647, %v2338
        %vm2349 = vcmp.eq.f32.partialorder %v2348, 8.507059e+37
        %v2350 = vand.u32 %v2338, 2147483648
        %v2351 = vor.u32 1.1754944e-38, %v2350
        %v2352 = vsel %vm2349, %v2351, %v2347
        %v2353 = vmul.f32 1.0, %v2352
        %v2354 = vmul.f32 %v2326, %v2250
        %v2355 = vmul.f32 %v2326, %v2330
        %2357 = vrot.lane.b32.xlu0 %v2355, 64
        %v2358 = vpop.permute.xlu0 %2357
        %v2360 = vadd.f32 %v2354, %v2358
        %v2361 = vtanh.pop %v2360
        %2363 = vrot.lane.b32.xlu0 %v2361, 64
        %v2364 = vpop.permute.xlu0 %2363
        %v2366 = vmul.f32 %v2353, %v2364
        %s2367 = scalar_lea.vmem [#allocation2], 4
        %v2368 = vld [vmem:[%s2367] ss:$8 sm:$0x3]
        %v2370 = vsel %vm1227, %v2366, 0
        %2372 = vmatpush.msra.mxu0 0.0
        %2373 = vmatpush.msra.mxu0 0.0
        %2374 = vmatpush.msra.mxu0 0.0
        %2375 = vmatpush.msra.mxu0 0.0
        %2376 = vmatpush.msra.mxu0 0.0
        %2377 = vmatpush.msra.mxu0 0.0
        %2378 = vmatpush.msra.mxu0 0.0
        %2379 = vmatpush.msra.mxu0 0.0
        %2380 = vmatpush.msra.mxu0 %v1925
        %2381 = vmatpush.msra.mxu0 %v1923
        %2382 = vmatpush.msra.mxu0 %v1921
        %2383 = vmatpush.msra.mxu0 %v1919
        %2384 = vmatpush.msra.mxu0 %v1917
        %2385 = vmatpush.msra.mxu0 %v1915
        %2386 = vmatpush.msra.mxu0 %v1913
        %2387 = vmatpush.msra.mxu0 %v1911
        %2388 = vmatmul.f32.gmra.mxu0 %v2370
        %v2389 = vpop.f32.mrf.mxu0
        %v2390 = vadd.f32 0.0, %v2389
        %2391 = vdwg.mxu0
        %2392 = vmatpush.msra.mxu0 0.0
        %2393 = vmatpush.msra.mxu0 0.0
        %2394 = vmatpush.msra.mxu0 0.0
        %2395 = vmatpush.msra.mxu0 0.0
        %2396 = vmatpush.msra.mxu0 0.0
        %2397 = vmatpush.msra.mxu0 0.0
        %2398 = vmatpush.msra.mxu0 0.0
        %2399 = vmatpush.msra.mxu0 0.0
        %2400 = vmatpush.msra.mxu0 %v1926
        %2401 = vmatpush.msra.mxu0 %v1924
        %2402 = vmatpush.msra.mxu0 %v1922
        %2403 = vmatpush.msra.mxu0 %v1920
        %2404 = vmatpush.msra.mxu0 %v1918
        %2405 = vmatpush.msra.mxu0 %v1916
        %2406 = vmatpush.msra.mxu0 %v1914
        %2407 = vmatpush.msra.mxu0 %v1912
        %2408 = vmatmul.f32.gmra.mxu0 %v2370
        %v2409 = vpop.f32.mrf.mxu0
        %v2410 = vadd.f32 0.0, %v2409
        %2411 = vdwg.mxu0
        %v2414 = vrot.slane %v2410, 7
        %v2415 = vsel %vm1974, %v2390, %v2414
        %v2417 = vadd.f32 %v2368, %v2415
        %v2418 = vxor.u32 %v2417, 2147483648
        %v2419 = vmul.f32 %v2418, 1.442695
        %v2420 = vpow.pop %v2419
        %v2421 = vadd.f32 %v2420, 1.0
        %v2422 = vrcp.pop %v2421
        %v2423 = vmul.f32 %v2421, %v2422
        %v2424 = vsub.f32 1.0, %v2423
        %v2425 = vmul.f32 %v2422, %v2424
        %v2426 = vadd.f32 %v2422, %v2425
        %vm2427 = vweird.f32 %v2421
        %vm2428 = vweird.f32 %v2422
        %vm2429 = vmor %vm2427, %vm2428
        %v2430 = vsel %vm2429, %v2422, %v2426
        %v2431 = vand.u32 2147483647, %v2421
        %vm2432 = vcmp.eq.f32.partialorder %v2431, 8.507059e+37
        %v2433 = vand.u32 %v2421, 2147483648
        %v2434 = vor.u32 1.1754944e-38, %v2433
        %v2435 = vsel %vm2432, %v2434, %v2430
        %v2436 = vmul.f32 1.0, %v2435
        %v2438 = vrot.slane %v2417, 1
        %v2440 = vtanh.pop %v2438
        %2441 = vrot.lane.b32.xlu0 %v2417, 64
        %v2442 = vpop.permute.xlu0 %2441
        %v2443 = vrot.slane %v2442, 1
        %v2445 = vxor.u32 %v2443, 2147483648
        %v2446 = vmul.f32 %v2445, 1.442695
        %v2447 = vpow.pop %v2446
        %v2448 = vadd.f32 %v2447, 1.0
        %v2449 = vrcp.pop %v2448
        %v2450 = vmul.f32 %v2448, %v2449
        %v2451 = vsub.f32 1.0, %v2450
        %v2452 = vmul.f32 %v2449, %v2451
        %v2453 = vadd.f32 %v2449, %v2452
        %vm2454 = vweird.f32 %v2448
        %vm2455 = vweird.f32 %v2449
        %vm2456 = vmor %vm2454, %vm2455
        %v2457 = vsel %vm2456, %v2449, %v2453
        %v2458 = vand.u32 2147483647, %v2448
        %vm2459 = vcmp.eq.f32.partialorder %v2458, 8.507059e+37
        %v2460 = vand.u32 %v2448, 2147483648
        %v2461 = vor.u32 1.1754944e-38, %v2460
        %v2462 = vsel %vm2459, %v2461, %v2457
        %v2463 = vmul.f32 1.0, %v2462
        %v2464 = vmul.f32 %v2436, %v2360
        %v2465 = vmul.f32 %v2436, %v2440
        %2467 = vrot.lane.b32.xlu0 %v2465, 64
        %v2468 = vpop.permute.xlu0 %2467
        %v2470 = vadd.f32 %v2464, %v2468
        %v2471 = vtanh.pop %v2470
        %2473 = vrot.lane.b32.xlu0 %v2471, 64
        %v2474 = vpop.permute.xlu0 %2473
        %v2476 = vmul.f32 %v2463, %v2474
        %s2477 = scalar_lea.vmem [#allocation2], 5
        %v2478 = vld [vmem:[%s2477] ss:$8 sm:$0x3]
        %v2480 = vsel %vm1227, %v2476, 0
        %2482 = vmatpush.msra.mxu0 0.0
        %2483 = vmatpush.msra.mxu0 0.0
        %2484 = vmatpush.msra.mxu0 0.0
        %2485 = vmatpush.msra.mxu0 0.0
        %2486 = vmatpush.msra.mxu0 0.0
        %2487 = vmatpush.msra.mxu0 0.0
        %2488 = vmatpush.msra.mxu0 0.0
        %2489 = vmatpush.msra.mxu0 0.0
        %2490 = vmatpush.msra.mxu0 %v1925
        %2491 = vmatpush.msra.mxu0 %v1923
        %2492 = vmatpush.msra.mxu0 %v1921
        %2493 = vmatpush.msra.mxu0 %v1919
        %2494 = vmatpush.msra.mxu0 %v1917
        %2495 = vmatpush.msra.mxu0 %v1915
        %2496 = vmatpush.msra.mxu0 %v1913
        %2497 = vmatpush.msra.mxu0 %v1911
        %2498 = vmatmul.f32.gmra.mxu0 %v2480
        %v2499 = vpop.f32.mrf.mxu0
        %v2500 = vadd.f32 0.0, %v2499
        %2501 = vdwg.mxu0
        %2502 = vmatpush.msra.mxu0 0.0
        %2503 = vmatpush.msra.mxu0 0.0
        %2504 = vmatpush.msra.mxu0 0.0
        %2505 = vmatpush.msra.mxu0 0.0
        %2506 = vmatpush.msra.mxu0 0.0
        %2507 = vmatpush.msra.mxu0 0.0
        %2508 = vmatpush.msra.mxu0 0.0
        %2509 = vmatpush.msra.mxu0 0.0
        %2510 = vmatpush.msra.mxu0 %v1926
        %2511 = vmatpush.msra.mxu0 %v1924
        %2512 = vmatpush.msra.mxu0 %v1922
        %2513 = vmatpush.msra.mxu0 %v1920
        %2514 = vmatpush.msra.mxu0 %v1918
        %2515 = vmatpush.msra.mxu0 %v1916
        %2516 = vmatpush.msra.mxu0 %v1914
        %2517 = vmatpush.msra.mxu0 %v1912
        %2518 = vmatmul.f32.gmra.mxu0 %v2480
        %v2519 = vpop.f32.mrf.mxu0
        %v2520 = vadd.f32 0.0, %v2519
        %2521 = vdwg.mxu0
        %v2524 = vrot.slane %v2520, 7
        %v2525 = vsel %vm1974, %v2500, %v2524
        %v2527 = vadd.f32 %v2478, %v2525
        %v2528 = vxor.u32 %v2527, 2147483648
        %v2529 = vmul.f32 %v2528, 1.442695
        %v2530 = vpow.pop %v2529
        %v2531 = vadd.f32 %v2530, 1.0
        %v2532 = vrcp.pop %v2531
        %v2533 = vmul.f32 %v2531, %v2532
        %v2534 = vsub.f32 1.0, %v2533
        %v2535 = vmul.f32 %v2532, %v2534
        %v2536 = vadd.f32 %v2532, %v2535
        %vm2537 = vweird.f32 %v2531
        %vm2538 = vweird.f32 %v2532
        %vm2539 = vmor %vm2537, %vm2538
        %v2540 = vsel %vm2539, %v2532, %v2536
        %v2541 = vand.u32 2147483647, %v2531
        %vm2542 = vcmp.eq.f32.partialorder %v2541, 8.507059e+37
        %v2543 = vand.u32 %v2531, 2147483648
        %v2544 = vor.u32 1.1754944e-38, %v2543
        %v2545 = vsel %vm2542, %v2544, %v2540
        %v2546 = vmul.f32 1.0, %v2545
        %v2548 = vrot.slane %v2527, 1
        %v2550 = vtanh.pop %v2548
        %2551 = vrot.lane.b32.xlu0 %v2527, 64
        %v2552 = vpop.permute.xlu0 %2551
        %v2553 = vrot.slane %v2552, 1
        %v2555 = vxor.u32 %v2553, 2147483648
        %v2556 = vmul.f32 %v2555, 1.442695
        %v2557 = vpow.pop %v2556
        %v2558 = vadd.f32 %v2557, 1.0
        %v2559 = vrcp.pop %v2558
        %v2560 = vmul.f32 %v2558, %v2559
        %v2561 = vsub.f32 1.0, %v2560
        %v2562 = vmul.f32 %v2559, %v2561
        %v2563 = vadd.f32 %v2559, %v2562
        %vm2564 = vweird.f32 %v2558
        %vm2565 = vweird.f32 %v2559
        %vm2566 = vmor %vm2564, %vm2565
        %v2567 = vsel %vm2566, %v2559, %v2563
        %v2568 = vand.u32 2147483647, %v2558
        %vm2569 = vcmp.eq.f32.partialorder %v2568, 8.507059e+37
        %v2570 = vand.u32 %v2558, 2147483648
        %v2571 = vor.u32 1.1754944e-38, %v2570
        %v2572 = vsel %vm2569, %v2571, %v2567
        %v2573 = vmul.f32 1.0, %v2572
        %v2574 = vmul.f32 %v2546, %v2470
        %v2575 = vmul.f32 %v2546, %v2550
        %2577 = vrot.lane.b32.xlu0 %v2575, 64
        %v2578 = vpop.permute.xlu0 %2577
        %v2580 = vadd.f32 %v2574, %v2578
        %v2581 = vtanh.pop %v2580
        %2583 = vrot.lane.b32.xlu0 %v2581, 64
        %v2584 = vpop.permute.xlu0 %2583
        %v2586 = vmul.f32 %v2573, %v2584
        %s2587 = scalar_lea.vmem [#allocation2], 6
        %v2588 = vld [vmem:[%s2587] ss:$8 sm:$0x3]
        %v2590 = vsel %vm1227, %v2586, 0
        %2592 = vmatpush.msra.mxu0 0.0
        %2593 = vmatpush.msra.mxu0 0.0
        %2594 = vmatpush.msra.mxu0 0.0
        %2595 = vmatpush.msra.mxu0 0.0
        %2596 = vmatpush.msra.mxu0 0.0
        %2597 = vmatpush.msra.mxu0 0.0
        %2598 = vmatpush.msra.mxu0 0.0
        %2599 = vmatpush.msra.mxu0 0.0
        %2600 = vmatpush.msra.mxu0 %v1925
        %2601 = vmatpush.msra.mxu0 %v1923
        %2602 = vmatpush.msra.mxu0 %v1921
        %2603 = vmatpush.msra.mxu0 %v1919
        %2604 = vmatpush.msra.mxu0 %v1917
        %2605 = vmatpush.msra.mxu0 %v1915
        %2606 = vmatpush.msra.mxu0 %v1913
        %2607 = vmatpush.msra.mxu0 %v1911
        %2608 = vmatmul.f32.gmra.mxu0 %v2590
        %v2609 = vpop.f32.mrf.mxu0
        %v2610 = vadd.f32 0.0, %v2609
        %2611 = vdwg.mxu0
        %2612 = vmatpush.msra.mxu0 0.0
        %2613 = vmatpush.msra.mxu0 0.0
        %2614 = vmatpush.msra.mxu0 0.0
        %2615 = vmatpush.msra.mxu0 0.0
        %2616 = vmatpush.msra.mxu0 0.0
        %2617 = vmatpush.msra.mxu0 0.0
        %2618 = vmatpush.msra.mxu0 0.0
        %2619 = vmatpush.msra.mxu0 0.0
        %2620 = vmatpush.msra.mxu0 %v1926
        %2621 = vmatpush.msra.mxu0 %v1924
        %2622 = vmatpush.msra.mxu0 %v1922
        %2623 = vmatpush.msra.mxu0 %v1920
        %2624 = vmatpush.msra.mxu0 %v1918
        %2625 = vmatpush.msra.mxu0 %v1916
        %2626 = vmatpush.msra.mxu0 %v1914
        %2627 = vmatpush.msra.mxu0 %v1912
        %2628 = vmatmul.f32.gmra.mxu0 %v2590
        %v2629 = vpop.f32.mrf.mxu0
        %v2630 = vadd.f32 0.0, %v2629
        %2631 = vdwg.mxu0
        %v2634 = vrot.slane %v2630, 7
        %v2635 = vsel %vm1974, %v2610, %v2634
        %v2637 = vadd.f32 %v2588, %v2635
        %v2638 = vxor.u32 %v2637, 2147483648
        %v2639 = vmul.f32 %v2638, 1.442695
        %v2640 = vpow.pop %v2639
        %v2641 = vadd.f32 %v2640, 1.0
        %v2642 = vrcp.pop %v2641
        %v2643 = vmul.f32 %v2641, %v2642
        %v2644 = vsub.f32 1.0, %v2643
        %v2645 = vmul.f32 %v2642, %v2644
        %v2646 = vadd.f32 %v2642, %v2645
        %vm2647 = vweird.f32 %v2641
        %vm2648 = vweird.f32 %v2642
        %vm2649 = vmor %vm2647, %vm2648
        %v2650 = vsel %vm2649, %v2642, %v2646
        %v2651 = vand.u32 2147483647, %v2641
        %vm2652 = vcmp.eq.f32.partialorder %v2651, 8.507059e+37
        %v2653 = vand.u32 %v2641, 2147483648
        %v2654 = vor.u32 1.1754944e-38, %v2653
        %v2655 = vsel %vm2652, %v2654, %v2650
        %v2656 = vmul.f32 1.0, %v2655
        %v2658 = vrot.slane %v2637, 1
        %v2660 = vtanh.pop %v2658
        %2661 = vrot.lane.b32.xlu0 %v2637, 64
        %v2662 = vpop.permute.xlu0 %2661
        %v2663 = vrot.slane %v2662, 1
        %v2665 = vxor.u32 %v2663, 2147483648
        %v2666 = vmul.f32 %v2665, 1.442695
        %v2667 = vpow.pop %v2666
        %v2668 = vadd.f32 %v2667, 1.0
        %v2669 = vrcp.pop %v2668
        %v2670 = vmul.f32 %v2668, %v2669
        %v2671 = vsub.f32 1.0, %v2670
        %v2672 = vmul.f32 %v2669, %v2671
        %v2673 = vadd.f32 %v2669, %v2672
        %vm2674 = vweird.f32 %v2668
        %vm2675 = vweird.f32 %v2669
        %vm2676 = vmor %vm2674, %vm2675
        %v2677 = vsel %vm2676, %v2669, %v2673
        %v2678 = vand.u32 2147483647, %v2668
        %vm2679 = vcmp.eq.f32.partialorder %v2678, 8.507059e+37
        %v2680 = vand.u32 %v2668, 2147483648
        %v2681 = vor.u32 1.1754944e-38, %v2680
        %v2682 = vsel %vm2679, %v2681, %v2677
        %v2683 = vmul.f32 1.0, %v2682
        %v2684 = vmul.f32 %v2656, %v2580
        %v2685 = vmul.f32 %v2656, %v2660
        %2687 = vrot.lane.b32.xlu0 %v2685, 64
        %v2688 = vpop.permute.xlu0 %2687
        %v2690 = vadd.f32 %v2684, %v2688
        %v2691 = vtanh.pop %v2690
        %2693 = vrot.lane.b32.xlu0 %v2691, 64
        %v2694 = vpop.permute.xlu0 %2693
        %v2696 = vmul.f32 %v2683, %v2694
        %s2697 = scalar_lea.vmem [#allocation2], 7
        %v2698 = vld [vmem:[%s2697] ss:$8 sm:$0x3]
        %v2700 = vsel %vm1227, %v2696, 0
        %2702 = vmatpush.msra.mxu0 0.0
        %2703 = vmatpush.msra.mxu0 0.0
        %2704 = vmatpush.msra.mxu0 0.0
        %2705 = vmatpush.msra.mxu0 0.0
        %2706 = vmatpush.msra.mxu0 0.0
        %2707 = vmatpush.msra.mxu0 0.0
        %2708 = vmatpush.msra.mxu0 0.0
        %2709 = vmatpush.msra.mxu0 0.0
        %2710 = vmatpush.msra.mxu0 %v1925
        %2711 = vmatpush.msra.mxu0 %v1923
        %2712 = vmatpush.msra.mxu0 %v1921
        %2713 = vmatpush.msra.mxu0 %v1919
        %2714 = vmatpush.msra.mxu0 %v1917
        %2715 = vmatpush.msra.mxu0 %v1915
        %2716 = vmatpush.msra.mxu0 %v1913
        %2717 = vmatpush.msra.mxu0 %v1911
        %2718 = vmatmul.f32.gmra.mxu0 %v2700
        %v2719 = vpop.f32.mrf.mxu0
        %v2720 = vadd.f32 0.0, %v2719
        %2721 = vdwg.mxu0
        %2722 = vmatpush.msra.mxu0 0.0
        %2723 = vmatpush.msra.mxu0 0.0
        %2724 = vmatpush.msra.mxu0 0.0
        %2725 = vmatpush.msra.mxu0 0.0
        %2726 = vmatpush.msra.mxu0 0.0
        %2727 = vmatpush.msra.mxu0 0.0
        %2728 = vmatpush.msra.mxu0 0.0
        %2729 = vmatpush.msra.mxu0 0.0
        %2730 = vmatpush.msra.mxu0 %v1926
        %2731 = vmatpush.msra.mxu0 %v1924
        %2732 = vmatpush.msra.mxu0 %v1922
        %2733 = vmatpush.msra.mxu0 %v1920
        %2734 = vmatpush.msra.mxu0 %v1918
        %2735 = vmatpush.msra.mxu0 %v1916
        %2736 = vmatpush.msra.mxu0 %v1914
        %2737 = vmatpush.msra.mxu0 %v1912
        %2738 = vmatmul.f32.gmra.mxu0 %v2700
        %v2739 = vpop.f32.mrf.mxu0
        %v2740 = vadd.f32 0.0, %v2739
        %2741 = vdwg.mxu0
        %v2744 = vrot.slane %v2740, 7
        %v2745 = vsel %vm1974, %v2720, %v2744
        %v2747 = vadd.f32 %v2698, %v2745
        %v2748 = vxor.u32 %v2747, 2147483648
        %v2749 = vmul.f32 %v2748, 1.442695
        %v2750 = vpow.pop %v2749
        %v2751 = vadd.f32 %v2750, 1.0
        %v2752 = vrcp.pop %v2751
        %v2753 = vmul.f32 %v2751, %v2752
        %v2754 = vsub.f32 1.0, %v2753
        %v2755 = vmul.f32 %v2752, %v2754
        %v2756 = vadd.f32 %v2752, %v2755
        %vm2757 = vweird.f32 %v2751
        %vm2758 = vweird.f32 %v2752
        %vm2759 = vmor %vm2757, %vm2758
        %v2760 = vsel %vm2759, %v2752, %v2756
        %v2761 = vand.u32 2147483647, %v2751
        %vm2762 = vcmp.eq.f32.partialorder %v2761, 8.507059e+37
        %v2763 = vand.u32 %v2751, 2147483648
        %v2764 = vor.u32 1.1754944e-38, %v2763
        %v2765 = vsel %vm2762, %v2764, %v2760
        %v2766 = vmul.f32 1.0, %v2765
        %v2768 = vrot.slane %v2747, 1
        %v2770 = vtanh.pop %v2768
        %2771 = vrot.lane.b32.xlu0 %v2747, 64
        %v2772 = vpop.permute.xlu0 %2771
        %v2773 = vrot.slane %v2772, 1
        %v2775 = vxor.u32 %v2773, 2147483648
        %v2776 = vmul.f32 %v2775, 1.442695
        %v2777 = vpow.pop %v2776
        %v2778 = vadd.f32 %v2777, 1.0
        %v2779 = vrcp.pop %v2778
        %v2780 = vmul.f32 %v2778, %v2779
        %v2781 = vsub.f32 1.0, %v2780
        %v2782 = vmul.f32 %v2779, %v2781
        %v2783 = vadd.f32 %v2779, %v2782
        %vm2784 = vweird.f32 %v2778
        %vm2785 = vweird.f32 %v2779
        %vm2786 = vmor %vm2784, %vm2785
        %v2787 = vsel %vm2786, %v2779, %v2783
        %v2788 = vand.u32 2147483647, %v2778
        %vm2789 = vcmp.eq.f32.partialorder %v2788, 8.507059e+37
        %v2790 = vand.u32 %v2778, 2147483648
        %v2791 = vor.u32 1.1754944e-38, %v2790
        %v2792 = vsel %vm2789, %v2791, %v2787
        %v2793 = vmul.f32 1.0, %v2792
        %v2794 = vmul.f32 %v2766, %v2690
        %v2795 = vmul.f32 %v2766, %v2770
        %2797 = vrot.lane.b32.xlu0 %v2795, 64
        %v2798 = vpop.permute.xlu0 %2797
        %v2800 = vadd.f32 %v2794, %v2798
        %v2801 = vtanh.pop %v2800
        %2803 = vrot.lane.b32.xlu0 %v2801, 64
        %v2804 = vpop.permute.xlu0 %2803
        %v2806 = vmul.f32 %v2793, %v2804
        %v2807 = vld [vmem:[%s18] sm:$0x1]
        %v2808 = vmul.f32 %v2806, %v2807
        %vm2809 = vcmask 516096
        %v2810 = vsel %vm2809, %v2808, 0.0
        %2811 = vadd.xlane.f32.xlu0 %v2810
        %v2812 = vpop.xlane.xlu0 %2811
        %v2813 = vld [vmem:[#allocation3] sm:$0x1]
        %v2814 = vadd.f32 %v2812, %v2813
        %vm2815 = vcmask 0
        %2816 = vst.msk [vmem:[%s689] sm:$0x1] %vm2815, %v2814
        %p2817 = scmp.lt.s32.totalorder %s36, 1
        %s2818 = scalar_select %p2817, %s36, 1
        %s2819 = scalar_lea.vmem %s20, %s2818
        // Predicated region
        $region117: #{tpu_custom_call.1} parent=99 // pred_check
          %p2820 = pneg %p479
        $region118: #{tpu_custom_call.1} parent=99 // pred_check_branch
          %2822 = sbr.rel (%p2820) target = $region120
        $region119: #{tpu_custom_call.1} parent=99 // pred_region
          _
        $region120: #{tpu_custom_call.1} parent=99 // pred_fallthru
          _
      $region100: #{tpu_custom_call.1} parent=5 // pred_fallthru
        _
      %p2823 = scmp.le.s32.totalorder 2, %s31
      // Predicated region
      $region121: #{tpu_custom_call.1} parent=5 // pred_check
        %p2824 = pneg %p2823
      $region122: #{tpu_custom_call.1} parent=5 // pred_check_branch
        %2826 = sbr.rel (%p2824) target = $region124
      $region123: #{tpu_custom_call.1} parent=5 // pred_region
        %s2827 = ssub.s32 %s31, 2
        // Predicated region
        $region125: #{tpu_custom_call.1} parent=123 // pred_check
          %p2828 = pneg %p485
        $region126: #{tpu_custom_call.1} parent=123 // pred_check_branch
          %2830 = sbr.rel (%p2828) target = $region128
        $region127: #{tpu_custom_call.1} parent=123 // pred_region
          %p2831 = scmp.lt.s32.totalorder %s37, 1
          %s2832 = scalar_select %p2831, %s37, 1
          %s2833 = scalar_lea.vmem %s20, %s2832
        $region128: #{tpu_custom_call.1} parent=123 // pred_fallthru
          _
      $region124: #{tpu_custom_call.1} parent=5 // pred_fallthru
        _
    $region6: #{tpu_custom_call.1} parent=1 // loop_footer
      %s35 = sadd.s32 1, %s31
    $region7: #{tpu_custom_call.1} parent=1 // loop_footer_branch
      %30 = sbr.rel target = $region3
    $region8: #{tpu_custom_call.1} parent=1 // loop_exit
      _
    %2834 = vsyncpa [#allocation5], 1
    %s2835 = scalar_lea.sflag [#allocation5], 1
    %2836 = vsyncpa %s2835, 1
    %2837 = vsyncpa [#allocation7], 1
    %2838 = vsyncpa [#allocation10], 1

</llo_original>
